<compile_context>
chip_gen: v6e
topology: v6e:2x2x1
jax: 0.10.0
libtpu: 0.0.40
codegen_flags: <defaults>
</compile_context>

<pallas_src>
from functools import partial

import jax
import jax.numpy as jnp
from jax.experimental import pallas as pl
from jax.experimental.pallas import tpu as pltpu

NEG_SLOPE = 0.01  # nn.LeakyReLU() default


def _leaky_relu(x):
    return jnp.where(x > 0, x, NEG_SLOPE * x)


def _bf16(x):
    return x.astype(jnp.bfloat16)


# ---------------------------------------------------------------------------
# Kernel 1: fused embeddings + ISAT graph convolution stack.
# TODO(synk): the original ISATconvolution class definition is not provided in
# the source file; this implements a representative dense message-passing hot
# path (masked neighbor aggregation + edge aggregation + interaction-node term
# + LeakyReLU) with the same hidden_dim / layer-count / activation, and ignores
# d_edge and the attention-score output (score is only returned when
# get_score=True).
# ---------------------------------------------------------------------------
def _isat_conv_kernel(adj_ref, rn_ref, in_ref, re_ref,
                      w_rn_ref, w_in_ref, w_e_ref, w_msg_ref, w_si_ref,
                      o_ref, *, n_layers):
    Bt, N, H = o_ref.shape
    node_dim = rn_ref.shape[-1]
    edge_dim = re_ref.shape[-1]

    adj = adj_ref[...]                                  # (Bt, N, N) f32 0/1
    adj_b = _bf16(adj)

    # --- fused embeddings -------------------------------------------------
    # real-node embedding: (Bt*N, node_dim) @ (node_dim, H)  on the MXU
    rn2 = rn_ref[...].reshape(Bt * N, node_dim)
    h2 = jnp.dot(_bf16(rn2), w_rn_ref[...],
                 preferred_element_type=jnp.float32)    # (Bt*N, H) f32

    # interaction-node embedding: Linear(1->H, no bias) == outer product (VPU)
    hi2 = in_ref[...].reshape(Bt * N, 1) * w_in_ref[...]    # (Bt*N, H) f32
    hi2_b = _bf16(hi2)

    # edge path, re-associated: mask-aggregate RAW edges (edge_dim wide) first,
    # then project through the bias-free edge linear.  Mathematically identical
    # to projecting every edge then aggregating, but never materializes
    # [B, N, N, H].
    # TODO(synk): aggregation is over axis j of adj[b, i, j] * r_edge[b, i, j, :]
    # and is added as a layer-invariant skip term; verify against the original
    # ISATconvolution once its definition is available.
    masked = (adj[..., None] * re_ref[...]).reshape(Bt * N, N, edge_dim)
    agg_raw = jnp.sum(masked, axis=1)                       # (Bt*N, edge_dim)
    agg_e2 = jnp.dot(_bf16(agg_raw), w_e_ref[...],
                     preferred_element_type=jnp.float32)    # (Bt*N, H) f32

    # --- GCN layers ---------------------------------------------------------
    for l in range(n_layers):                           # static layer count
        msg2 = _leaky_relu(jnp.dot(_bf16(h2), w_msg_ref[l],
                                   preferred_element_type=jnp.float32))
        # neighbor aggregation: batched adjacency matmul (MXU, per-graph)
        agg_n = jnp.einsum('bij,bjh->bih', adj_b,
                           _bf16(msg2.reshape(Bt, N, H)),
                           preferred_element_type=jnp.float32)
        agg_n2 = agg_n.reshape(Bt * N, H)
        # fused self + interaction projections: one (2H, H) matmul
        cat = jnp.concatenate([_bf16(h2), hi2_b], axis=-1)   # (Bt*N, 2H)
        h2 = _leaky_relu(
            jnp.dot(cat, w_si_ref[l], preferred_element_type=jnp.float32)
            + agg_n2 + agg_e2)

    o_ref[...] = h2.reshape(Bt, N, H)


def _pick_block_b(B, N, H, edge_dim, budget_bytes=4 * 1024 * 1024):
    """Largest divisor of B whose per-step block footprint stays small."""
    best = 1
    for bt in range(1, B + 1):
        if B % bt:
            continue
        per_block = 4 * bt * (N * N * (1 + edge_dim) + N * (2 * H + 1))
        if per_block <= budget_bytes:
            best = bt
    return best


def isat_conv(adj, r_node, i_node, r_edge, w_rn, w_in, w_e, w_msg, w_si,
              *, block_b=None):
    B, N, node_dim = r_node.shape
    edge_dim = r_edge.shape[-1]
    H = w_rn.shape[1]
    L = w_msg.shape[0]
    Bt = block_b or _pick_block_b(B, N, H, edge_dim)
    kernel = partial(_isat_conv_kernel, n_layers=L)
    return pl.pallas_call(
        kernel,
        grid=(B // Bt,),
        in_specs=[
            pl.BlockSpec((Bt, N, N), lambda b: (b, 0, 0)),
            pl.BlockSpec((Bt, N, node_dim), lambda b: (b, 0, 0)),
            pl.BlockSpec((Bt, N, 1), lambda b: (b, 0, 0)),
            pl.BlockSpec((Bt, N, N, edge_dim), lambda b: (b, 0, 0, 0)),
            pl.BlockSpec((node_dim, H), lambda b: (0, 0)),
            pl.BlockSpec((1, H), lambda b: (0, 0)),
            pl.BlockSpec((edge_dim, H), lambda b: (0, 0)),
            pl.BlockSpec((L, H, H), lambda b: (0, 0, 0)),
            pl.BlockSpec((L, 2 * H, H), lambda b: (0, 0, 0)),
        ],
        out_specs=pl.BlockSpec((Bt, N, H), lambda b: (b, 0, 0)),
        out_shape=jax.ShapeDtypeStruct((B, N, H), jnp.float32),
        compiler_params=pltpu.CompilerParams(dimension_semantics=("parallel",)),
    )(adj, r_node, i_node, r_edge, w_rn, w_in, w_e, w_msg, w_si)


# ---------------------------------------------------------------------------
# Kernel 2: SumPooling over nodes + Linears MLP (ReLU hidden layers + final
# Linear to target_dim).  Dropout = identity (eval mode).
# ---------------------------------------------------------------------------
def _pool_mlp_kernel(h_ref, wh_ref, bh_ref, wl_ref, bl_ref, o_ref, *, n_hidden):
    pooled = jnp.sum(h_ref[...], axis=1)                # (Bt, H)  SumPooling
    h = pooled
    for l in range(n_hidden):                           # hidden Linear + ReLU
        h = jnp.maximum(
            jnp.dot(_bf16(h), wh_ref[l], preferred_element_type=jnp.float32)
            + bh_ref[l],
            0.0,
        )
    o_ref[...] = (jnp.dot(_bf16(h), wl_ref[...],
                          preferred_element_type=jnp.float32) + bl_ref[...])


def _pick_pool_bt(B, cap=128):
    if B <= cap:
        return B
    for bt in range(cap, 0, -1):
        if B % bt == 0 and bt % 8 == 0:
            return bt
    return B


def pool_mlp(h, w_hid, b_hid, w_last, b_last, *, block_b=None):
    B, N, H = h.shape
    Lh = w_hid.shape[0]
    T = w_last.shape[1]
    Bt = block_b or _pick_pool_bt(B)
    kernel = partial(_pool_mlp_kernel, n_hidden=Lh)
    return pl.pallas_call(
        kernel,
        grid=(B // Bt,),
        in_specs=[
            pl.BlockSpec((Bt, N, H), lambda i: (i, 0, 0)),
            pl.BlockSpec((Lh, H, H), lambda i: (0, 0, 0)),
            pl.BlockSpec((Lh, 1, H), lambda i: (0, 0, 0)),
            pl.BlockSpec((H, T), lambda i: (0, 0)),
            pl.BlockSpec((1, T), lambda i: (0, 0)),
        ],
        out_specs=pl.BlockSpec((Bt, T), lambda i: (i, 0)),
        out_shape=jax.ShapeDtypeStruct((B, T), jnp.float32),
        compiler_params=pltpu.CompilerParams(dimension_semantics=("parallel",)),
    )(h, w_hid, b_hid, w_last, b_last)


# ---------------------------------------------------------------------------
# Full network forward (two Pallas calls total).
# ---------------------------------------------------------------------------
def network_forward(params, adj, r_node, i_node, r_edge, d_edge):
    # TODO(synk): d_edge (r<->i distance edges) and the attention-score output
    # are unused — the original ISATconvolution that consumes them is not
    # available in the source file.
    del d_edge
    adj = adj.astype(jnp.float32)
    r_node = r_node.astype(jnp.float32)
    i_node = i_node.astype(jnp.float32)
    r_edge = r_edge.astype(jnp.float32)

    h = isat_conv(adj, r_node, i_node, r_edge,
                  params["W_rnode"], params["W_inode"], params["W_edge"],
                  params["W_msg"], params["W_si"])
    return pool_mlp(h, params["W_hid"], params["b_hid"],
                    params["W_last"], params["b_last"])


def init_params(key, node_dim, edge_dim, hidden_dim, target_dim,
                gcn_layers, linear_layers):
    ks = jax.random.split(key, 8)

    def w(k, shape, fan_in):
        return jax.random.normal(k, shape, jnp.float32) / jnp.sqrt(float(fan_in))

    n_hidden = linear_layers - 1
    H = hidden_dim
    w_self = w(ks[4], (gcn_layers, H, H), H)
    w_int = w(ks[5], (gcn_layers, H, H), H)
    return {
        # matmul weights stored bf16 (MXU operands); accumulation stays f32.
        "W_rnode": w(ks[0], (node_dim, H), node_dim).astype(jnp.bfloat16),
        "W_inode": w(ks[1], (1, H), 1),                    # VPU outer product (f32)
        "W_edge": w(ks[2], (edge_dim, H), edge_dim).astype(jnp.bfloat16),
        "W_msg": w(ks[3], (gcn_layers, H, H), H).astype(jnp.bfloat16),
        # fused [self ; interaction] weight -> one (2H, H) matmul per layer
        "W_si": jnp.concatenate([w_self, w_int], axis=1).astype(jnp.bfloat16),
        "W_hid": w(ks[6], (n_hidden, H, H), H).astype(jnp.bfloat16),
        "b_hid": jnp.zeros((n_hidden, 1, H), jnp.float32),
        "W_last": w(ks[7], (H, target_dim), H).astype(jnp.bfloat16),
        "b_last": jnp.zeros((1, target_dim), jnp.float32),
    }


if __name__ == "__main__":
    # small config consistent with the module (lane-dense hidden_dim)
    B, N = 4, 16
    node_dim, edge_dim = 8, 6
    hidden_dim, target_dim = 128, 2
    gcn_layers, linear_layers = 4, 4

    key = jax.random.PRNGKey(0)
    k_p, k_rn, k_in, k_re, k_de, k_adj = jax.random.split(key, 6)

    params = init_params(k_p, node_dim, edge_dim, hidden_dim, target_dim,
                         gcn_layers, linear_layers)

    r_node = jax.random.normal(k_rn, (B, N, node_dim), jnp.float32)
    i_node = jax.random.normal(k_in, (B, N, 1), jnp.float32)
    r_edge = jax.random.normal(k_re, (B, N, N, edge_dim), jnp.float32)
    d_edge = jax.random.normal(k_de, (B, N, N, 1), jnp.float32)
    adj = (jax.random.uniform(k_adj, (B, N, N)) > 0.5).astype(jnp.float32)
    adj = jnp.maximum(adj, jnp.transpose(adj, (0, 2, 1)))  # symmetric mask

    fwd = jax.jit(network_forward)
    out = fwd(params, adj, r_node, i_node, r_edge, d_edge)
    out = jax.block_until_ready(out)
    assert out.shape == (B, target_dim)
    print("KERNEL_OK")
</pallas_src>

<mosaic_0001>
module attributes {stable_mosaic.version = 11 : i64} {
  func.func @_isat_conv_kernel(%arg0: i32, %arg1: memref<4x16x16xf32, #tpu.memory_space<vmem>>, %arg2: memref<4x16x8xf32, #tpu.memory_space<vmem>>, %arg3: memref<4x16x1xf32, #tpu.memory_space<vmem>>, %arg4: memref<4x16x16x6xf32, #tpu.memory_space<vmem>>, %arg5: memref<8x128xbf16, #tpu.memory_space<vmem>>, %arg6: memref<1x128xf32, #tpu.memory_space<vmem>>, %arg7: memref<6x128xbf16, #tpu.memory_space<vmem>>, %arg8: memref<4x128x128xbf16, #tpu.memory_space<vmem>>, %arg9: memref<4x256x128xbf16, #tpu.memory_space<vmem>>, %arg10: memref<4x16x128xf32, #tpu.memory_space<vmem>>) attributes {dimension_semantics = [#tpu.dimension_semantics<parallel>], iteration_bounds = array<i64: 1>, scalar_prefetch = 0 : i64, scratch_operands = 0 : i64, tpu.core_type = #tpu.core_type<tc>, window_params = [{transform_indices = @transform_0, window_bounds = array<i64: 4, 16, 16>}, {transform_indices = @transform_1, window_bounds = array<i64: 4, 16, 8>}, {transform_indices = @transform_2, window_bounds = array<i64: 4, 16, 1>}, {transform_indices = @transform_3, window_bounds = array<i64: 4, 16, 16, 6>}, {pipeline_mode = #tpu.pipeline_mode<synchronous>, transform_indices = @transform_4, window_bounds = array<i64: 8, 128>}, {pipeline_mode = #tpu.pipeline_mode<synchronous>, transform_indices = @transform_5, window_bounds = array<i64: 1, 128>}, {pipeline_mode = #tpu.pipeline_mode<synchronous>, transform_indices = @transform_6, window_bounds = array<i64: 6, 128>}, {pipeline_mode = #tpu.pipeline_mode<synchronous>, transform_indices = @transform_7, window_bounds = array<i64: 4, 128, 128>}, {pipeline_mode = #tpu.pipeline_mode<synchronous>, transform_indices = @transform_8, window_bounds = array<i64: 4, 256, 128>}, {transform_indices = @transform_9, window_bounds = array<i64: 4, 16, 128>}]} {
    %c0 = arith.constant 0 : index
    %c0_0 = arith.constant 0 : index
    %c0_1 = arith.constant 0 : index
    %0 = vector.load %arg1[%c0, %c0_0, %c0_1] : memref<4x16x16xf32, #tpu.memory_space<vmem>>, vector<4x16x16xf32>
    %1 = arith.truncf %0 : vector<4x16x16xf32> to vector<4x16x16xbf16>
    %c0_2 = arith.constant 0 : index
    %c0_3 = arith.constant 0 : index
    %c0_4 = arith.constant 0 : index
    %2 = vector.load %arg2[%c0_2, %c0_3, %c0_4] : memref<4x16x8xf32, #tpu.memory_space<vmem>>, vector<4x16x8xf32>
    %3 = vector.shape_cast %2 : vector<4x16x8xf32> to vector<64x8xf32>
    %4 = arith.truncf %3 : vector<64x8xf32> to vector<64x8xbf16>
    %c0_5 = arith.constant 0 : index
    %c0_6 = arith.constant 0 : index
    %5 = vector.load %arg5[%c0_5, %c0_6] : memref<8x128xbf16, #tpu.memory_space<vmem>>, vector<8x128xbf16>
    %cst = arith.constant dense<0.000000e+00> : vector<64x128xf32>
    %6 = tpu.matmul %4, %5, %cst {dimension_numbers = #tpu.dot_dimension_numbers<[1], [0], [0], [1], [0, 0, 1, 1], [], []>} : vector<64x8xbf16>, vector<8x128xbf16>, vector<64x128xf32> -> vector<64x128xf32>
    %c0_7 = arith.constant 0 : index
    %c0_8 = arith.constant 0 : index
    %c0_9 = arith.constant 0 : index
    %7 = vector.load %arg3[%c0_7, %c0_8, %c0_9] : memref<4x16x1xf32, #tpu.memory_space<vmem>>, vector<4x16x1xf32>
    %8 = vector.shape_cast %7 : vector<4x16x1xf32> to vector<64x1xf32>
    %c0_10 = arith.constant 0 : index
    %c0_11 = arith.constant 0 : index
    %9 = vector.load %arg6[%c0_10, %c0_11] : memref<1x128xf32, #tpu.memory_space<vmem>>, vector<1x128xf32>
    %10 = vector.broadcast %8 : vector<64x1xf32> to vector<64x128xf32>
    %11 = vector.broadcast %9 : vector<1x128xf32> to vector<64x128xf32>
    %12 = arith.mulf %10, %11 : vector<64x128xf32>
    %13 = arith.truncf %12 : vector<64x128xf32> to vector<64x128xbf16>
    %14 = vector.shape_cast %0 : vector<4x16x16xf32> to vector<4x16x16x1xf32>
    %c0_12 = arith.constant 0 : index
    %c0_13 = arith.constant 0 : index
    %c0_14 = arith.constant 0 : index
    %c0_15 = arith.constant 0 : index
    %15 = vector.load %arg4[%c0_12, %c0_13, %c0_14, %c0_15] : memref<4x16x16x6xf32, #tpu.memory_space<vmem>>, vector<4x16x16x6xf32>
    %16 = vector.broadcast %14 : vector<4x16x16x1xf32> to vector<4x16x16x6xf32>
    %17 = arith.mulf %16, %15 : vector<4x16x16x6xf32>
    %18 = vector.shape_cast %17 : vector<4x16x16x6xf32> to vector<64x16x6xf32>
    %cst_16 = arith.constant dense<0.000000e+00> : vector<64x6xf32>
    %19 = vector.multi_reduction <add>, %18, %cst_16 [1] : vector<64x16x6xf32> to vector<64x6xf32>
    %20 = arith.truncf %19 : vector<64x6xf32> to vector<64x6xbf16>
    %c0_17 = arith.constant 0 : index
    %c0_18 = arith.constant 0 : index
    %21 = vector.load %arg7[%c0_17, %c0_18] : memref<6x128xbf16, #tpu.memory_space<vmem>>, vector<6x128xbf16>
    %cst_19 = arith.constant dense<0.000000e+00> : vector<64x128xf32>
    %22 = tpu.matmul %20, %21, %cst_19 {dimension_numbers = #tpu.dot_dimension_numbers<[1], [0], [0], [1], [0, 0, 1, 1], [], []>} : vector<64x6xbf16>, vector<6x128xbf16>, vector<64x128xf32> -> vector<64x128xf32>
    %23 = arith.truncf %6 : vector<64x128xf32> to vector<64x128xbf16>
    %c0_20 = arith.constant 0 : index
    %c0_21 = arith.constant 0 : index
    %c0_22 = arith.constant 0 : index
    %24 = vector.load %arg8[%c0_20, %c0_21, %c0_22] : memref<4x128x128xbf16, #tpu.memory_space<vmem>>, vector<1x128x128xbf16>
    %25 = vector.shape_cast %24 : vector<1x128x128xbf16> to vector<128x128xbf16>
    %cst_23 = arith.constant dense<0.000000e+00> : vector<64x128xf32>
    %26 = tpu.matmul %23, %25, %cst_23 {dimension_numbers = #tpu.dot_dimension_numbers<[1], [0], [0], [1], [0, 0, 1, 1], [], []>} : vector<64x128xbf16>, vector<128x128xbf16>, vector<64x128xf32> -> vector<64x128xf32>
    %cst_24 = arith.constant 0.000000e+00 : f32
    %27 = vector.broadcast %cst_24 : f32 to vector<64x128xf32>
    %28 = arith.cmpf ogt, %26, %27 : vector<64x128xf32>
    %cst_25 = arith.constant 0.00999999977 : f32
    %29 = vector.broadcast %cst_25 : f32 to vector<64x128xf32>
    %30 = arith.mulf %29, %26 : vector<64x128xf32>
    %31 = arith.select %28, %26, %30 : vector<64x128xi1>, vector<64x128xf32>
    %32 = vector.shape_cast %31 : vector<64x128xf32> to vector<4x16x128xf32>
    %33 = arith.truncf %32 : vector<4x16x128xf32> to vector<4x16x128xbf16>
    "tpu.trace_start"() <{level = 10 : i32, message = "bij,bjh->bih"}> : () -> ()
    %cst_26 = arith.constant dense<0.000000e+00> : vector<4x16x128xf32>
    %34 = tpu.matmul %1, %33, %cst_26 {dimension_numbers = #tpu.dot_dimension_numbers<[2], [1], [1], [2], [0, 0, 0, 1, 1, 2], [0], [0]>} : vector<4x16x16xbf16>, vector<4x16x128xbf16>, vector<4x16x128xf32> -> vector<4x16x128xf32>
    "tpu.trace_stop"() : () -> ()
    %35 = vector.shape_cast %34 : vector<4x16x128xf32> to vector<64x128xf32>
    %36 = arith.truncf %6 : vector<64x128xf32> to vector<64x128xbf16>
    %37 = tpu.concatenate %36, %13 in 1 : vector<64x128xbf16>, vector<64x128xbf16> -> vector<64x256xbf16>
    %c0_27 = arith.constant 0 : index
    %c0_28 = arith.constant 0 : index
    %c0_29 = arith.constant 0 : index
    %38 = vector.load %arg9[%c0_27, %c0_28, %c0_29] : memref<4x256x128xbf16, #tpu.memory_space<vmem>>, vector<1x256x128xbf16>
    %39 = vector.shape_cast %38 : vector<1x256x128xbf16> to vector<256x128xbf16>
    %cst_30 = arith.constant dense<0.000000e+00> : vector<64x128xf32>
    %40 = tpu.matmul %37, %39, %cst_30 {dimension_numbers = #tpu.dot_dimension_numbers<[1], [0], [0], [1], [0, 0, 1, 1], [], []>} : vector<64x256xbf16>, vector<256x128xbf16>, vector<64x128xf32> -> vector<64x128xf32>
    %41 = arith.addf %40, %35 : vector<64x128xf32>
    %42 = arith.addf %41, %22 : vector<64x128xf32>
    %cst_31 = arith.constant 0.000000e+00 : f32
    %43 = vector.broadcast %cst_31 : f32 to vector<64x128xf32>
    %44 = arith.cmpf ogt, %42, %43 : vector<64x128xf32>
    %cst_32 = arith.constant 0.00999999977 : f32
    %45 = vector.broadcast %cst_32 : f32 to vector<64x128xf32>
    %46 = arith.mulf %45, %42 : vector<64x128xf32>
    %47 = arith.select %44, %42, %46 : vector<64x128xi1>, vector<64x128xf32>
    %48 = arith.truncf %47 : vector<64x128xf32> to vector<64x128xbf16>
    %c1 = arith.constant 1 : index
    %c0_33 = arith.constant 0 : index
    %c0_34 = arith.constant 0 : index
    %49 = vector.load %arg8[%c1, %c0_33, %c0_34] : memref<4x128x128xbf16, #tpu.memory_space<vmem>>, vector<1x128x128xbf16>
    %50 = vector.shape_cast %49 : vector<1x128x128xbf16> to vector<128x128xbf16>
    %cst_35 = arith.constant dense<0.000000e+00> : vector<64x128xf32>
    %51 = tpu.matmul %48, %50, %cst_35 {dimension_numbers = #tpu.dot_dimension_numbers<[1], [0], [0], [1], [0, 0, 1, 1], [], []>} : vector<64x128xbf16>, vector<128x128xbf16>, vector<64x128xf32> -> vector<64x128xf32>
    %cst_36 = arith.constant 0.000000e+00 : f32
    %52 = vector.broadcast %cst_36 : f32 to vector<64x128xf32>
    %53 = arith.cmpf ogt, %51, %52 : vector<64x128xf32>
    %cst_37 = arith.constant 0.00999999977 : f32
    %54 = vector.broadcast %cst_37 : f32 to vector<64x128xf32>
    %55 = arith.mulf %54, %51 : vector<64x128xf32>
    %56 = arith.select %53, %51, %55 : vector<64x128xi1>, vector<64x128xf32>
    %57 = vector.shape_cast %56 : vector<64x128xf32> to vector<4x16x128xf32>
    %58 = arith.truncf %57 : vector<4x16x128xf32> to vector<4x16x128xbf16>
    "tpu.trace_start"() <{level = 10 : i32, message = "bij,bjh->bih"}> : () -> ()
    %cst_38 = arith.constant dense<0.000000e+00> : vector<4x16x128xf32>
    %59 = tpu.matmul %1, %58, %cst_38 {dimension_numbers = #tpu.dot_dimension_numbers<[2], [1], [1], [2], [0, 0, 0, 1, 1, 2], [0], [0]>} : vector<4x16x16xbf16>, vector<4x16x128xbf16>, vector<4x16x128xf32> -> vector<4x16x128xf32>
    "tpu.trace_stop"() : () -> ()
    %60 = vector.shape_cast %59 : vector<4x16x128xf32> to vector<64x128xf32>
    %61 = arith.truncf %47 : vector<64x128xf32> to vector<64x128xbf16>
    %62 = tpu.concatenate %61, %13 in 1 : vector<64x128xbf16>, vector<64x128xbf16> -> vector<64x256xbf16>
    %c1_39 = arith.constant 1 : index
    %c0_40 = arith.constant 0 : index
    %c0_41 = arith.constant 0 : index
    %63 = vector.load %arg9[%c1_39, %c0_40, %c0_41] : memref<4x256x128xbf16, #tpu.memory_space<vmem>>, vector<1x256x128xbf16>
    %64 = vector.shape_cast %63 : vector<1x256x128xbf16> to vector<256x128xbf16>
    %cst_42 = arith.constant dense<0.000000e+00> : vector<64x128xf32>
    %65 = tpu.matmul %62, %64, %cst_42 {dimension_numbers = #tpu.dot_dimension_numbers<[1], [0], [0], [1], [0, 0, 1, 1], [], []>} : vector<64x256xbf16>, vector<256x128xbf16>, vector<64x128xf32> -> vector<64x128xf32>
    %66 = arith.addf %65, %60 : vector<64x128xf32>
    %67 = arith.addf %66, %22 : vector<64x128xf32>
    %cst_43 = arith.constant 0.000000e+00 : f32
    %68 = vector.broadcast %cst_43 : f32 to vector<64x128xf32>
    %69 = arith.cmpf ogt, %67, %68 : vector<64x128xf32>
    %cst_44 = arith.constant 0.00999999977 : f32
    %70 = vector.broadcast %cst_44 : f32 to vector<64x128xf32>
    %71 = arith.mulf %70, %67 : vector<64x128xf32>
    %72 = arith.select %69, %67, %71 : vector<64x128xi1>, vector<64x128xf32>
    %73 = arith.truncf %72 : vector<64x128xf32> to vector<64x128xbf16>
    %c2 = arith.constant 2 : index
    %c0_45 = arith.constant 0 : index
    %c0_46 = arith.constant 0 : index
    %74 = vector.load %arg8[%c2, %c0_45, %c0_46] : memref<4x128x128xbf16, #tpu.memory_space<vmem>>, vector<1x128x128xbf16>
    %75 = vector.shape_cast %74 : vector<1x128x128xbf16> to vector<128x128xbf16>
    %cst_47 = arith.constant dense<0.000000e+00> : vector<64x128xf32>
    %76 = tpu.matmul %73, %75, %cst_47 {dimension_numbers = #tpu.dot_dimension_numbers<[1], [0], [0], [1], [0, 0, 1, 1], [], []>} : vector<64x128xbf16>, vector<128x128xbf16>, vector<64x128xf32> -> vector<64x128xf32>
    %cst_48 = arith.constant 0.000000e+00 : f32
    %77 = vector.broadcast %cst_48 : f32 to vector<64x128xf32>
    %78 = arith.cmpf ogt, %76, %77 : vector<64x128xf32>
    %cst_49 = arith.constant 0.00999999977 : f32
    %79 = vector.broadcast %cst_49 : f32 to vector<64x128xf32>
    %80 = arith.mulf %79, %76 : vector<64x128xf32>
    %81 = arith.select %78, %76, %80 : vector<64x128xi1>, vector<64x128xf32>
    %82 = vector.shape_cast %81 : vector<64x128xf32> to vector<4x16x128xf32>
    %83 = arith.truncf %82 : vector<4x16x128xf32> to vector<4x16x128xbf16>
    "tpu.trace_start"() <{level = 10 : i32, message = "bij,bjh->bih"}> : () -> ()
    %cst_50 = arith.constant dense<0.000000e+00> : vector<4x16x128xf32>
    %84 = tpu.matmul %1, %83, %cst_50 {dimension_numbers = #tpu.dot_dimension_numbers<[2], [1], [1], [2], [0, 0, 0, 1, 1, 2], [0], [0]>} : vector<4x16x16xbf16>, vector<4x16x128xbf16>, vector<4x16x128xf32> -> vector<4x16x128xf32>
    "tpu.trace_stop"() : () -> ()
    %85 = vector.shape_cast %84 : vector<4x16x128xf32> to vector<64x128xf32>
    %86 = arith.truncf %72 : vector<64x128xf32> to vector<64x128xbf16>
    %87 = tpu.concatenate %86, %13 in 1 : vector<64x128xbf16>, vector<64x128xbf16> -> vector<64x256xbf16>
    %c2_51 = arith.constant 2 : index
    %c0_52 = arith.constant 0 : index
    %c0_53 = arith.constant 0 : index
    %88 = vector.load %arg9[%c2_51, %c0_52, %c0_53] : memref<4x256x128xbf16, #tpu.memory_space<vmem>>, vector<1x256x128xbf16>
    %89 = vector.shape_cast %88 : vector<1x256x128xbf16> to vector<256x128xbf16>
    %cst_54 = arith.constant dense<0.000000e+00> : vector<64x128xf32>
    %90 = tpu.matmul %87, %89, %cst_54 {dimension_numbers = #tpu.dot_dimension_numbers<[1], [0], [0], [1], [0, 0, 1, 1], [], []>} : vector<64x256xbf16>, vector<256x128xbf16>, vector<64x128xf32> -> vector<64x128xf32>
    %91 = arith.addf %90, %85 : vector<64x128xf32>
    %92 = arith.addf %91, %22 : vector<64x128xf32>
    %cst_55 = arith.constant 0.000000e+00 : f32
    %93 = vector.broadcast %cst_55 : f32 to vector<64x128xf32>
    %94 = arith.cmpf ogt, %92, %93 : vector<64x128xf32>
    %cst_56 = arith.constant 0.00999999977 : f32
    %95 = vector.broadcast %cst_56 : f32 to vector<64x128xf32>
    %96 = arith.mulf %95, %92 : vector<64x128xf32>
    %97 = arith.select %94, %92, %96 : vector<64x128xi1>, vector<64x128xf32>
    %98 = arith.truncf %97 : vector<64x128xf32> to vector<64x128xbf16>
    %c3 = arith.constant 3 : index
    %c0_57 = arith.constant 0 : index
    %c0_58 = arith.constant 0 : index
    %99 = vector.load %arg8[%c3, %c0_57, %c0_58] : memref<4x128x128xbf16, #tpu.memory_space<vmem>>, vector<1x128x128xbf16>
    %100 = vector.shape_cast %99 : vector<1x128x128xbf16> to vector<128x128xbf16>
    %cst_59 = arith.constant dense<0.000000e+00> : vector<64x128xf32>
    %101 = tpu.matmul %98, %100, %cst_59 {dimension_numbers = #tpu.dot_dimension_numbers<[1], [0], [0], [1], [0, 0, 1, 1], [], []>} : vector<64x128xbf16>, vector<128x128xbf16>, vector<64x128xf32> -> vector<64x128xf32>
    %cst_60 = arith.constant 0.000000e+00 : f32
    %102 = vector.broadcast %cst_60 : f32 to vector<64x128xf32>
    %103 = arith.cmpf ogt, %101, %102 : vector<64x128xf32>
    %cst_61 = arith.constant 0.00999999977 : f32
    %104 = vector.broadcast %cst_61 : f32 to vector<64x128xf32>
    %105 = arith.mulf %104, %101 : vector<64x128xf32>
    %106 = arith.select %103, %101, %105 : vector<64x128xi1>, vector<64x128xf32>
    %107 = vector.shape_cast %106 : vector<64x128xf32> to vector<4x16x128xf32>
    %108 = arith.truncf %107 : vector<4x16x128xf32> to vector<4x16x128xbf16>
    "tpu.trace_start"() <{level = 10 : i32, message = "bij,bjh->bih"}> : () -> ()
    %cst_62 = arith.constant dense<0.000000e+00> : vector<4x16x128xf32>
    %109 = tpu.matmul %1, %108, %cst_62 {dimension_numbers = #tpu.dot_dimension_numbers<[2], [1], [1], [2], [0, 0, 0, 1, 1, 2], [0], [0]>} : vector<4x16x16xbf16>, vector<4x16x128xbf16>, vector<4x16x128xf32> -> vector<4x16x128xf32>
    "tpu.trace_stop"() : () -> ()
    %110 = vector.shape_cast %109 : vector<4x16x128xf32> to vector<64x128xf32>
    %111 = arith.truncf %97 : vector<64x128xf32> to vector<64x128xbf16>
    %112 = tpu.concatenate %111, %13 in 1 : vector<64x128xbf16>, vector<64x128xbf16> -> vector<64x256xbf16>
    %c3_63 = arith.constant 3 : index
    %c0_64 = arith.constant 0 : index
    %c0_65 = arith.constant 0 : index
    %113 = vector.load %arg9[%c3_63, %c0_64, %c0_65] : memref<4x256x128xbf16, #tpu.memory_space<vmem>>, vector<1x256x128xbf16>
    %114 = vector.shape_cast %113 : vector<1x256x128xbf16> to vector<256x128xbf16>
    %cst_66 = arith.constant dense<0.000000e+00> : vector<64x128xf32>
    %115 = tpu.matmul %112, %114, %cst_66 {dimension_numbers = #tpu.dot_dimension_numbers<[1], [0], [0], [1], [0, 0, 1, 1], [], []>} : vector<64x256xbf16>, vector<256x128xbf16>, vector<64x128xf32> -> vector<64x128xf32>
    %116 = arith.addf %115, %110 : vector<64x128xf32>
    %117 = arith.addf %116, %22 : vector<64x128xf32>
    %cst_67 = arith.constant 0.000000e+00 : f32
    %118 = vector.broadcast %cst_67 : f32 to vector<64x128xf32>
    %119 = arith.cmpf ogt, %117, %118 : vector<64x128xf32>
    %cst_68 = arith.constant 0.00999999977 : f32
    %120 = vector.broadcast %cst_68 : f32 to vector<64x128xf32>
    %121 = arith.mulf %120, %117 : vector<64x128xf32>
    %122 = arith.select %119, %117, %121 : vector<64x128xi1>, vector<64x128xf32>
    %123 = vector.shape_cast %122 : vector<64x128xf32> to vector<4x16x128xf32>
    %c0_69 = arith.constant 0 : index
    %c0_70 = arith.constant 0 : index
    %c0_71 = arith.constant 0 : index
    %124 = vector.load %arg10[%c0_69, %c0_70, %c0_71] : memref<4x16x128xf32, #tpu.memory_space<vmem>>, vector<4x16x128xf32>
    tpu.vector_store %arg10[%c0_69, %c0_70, %c0_71], %123 {strides = array<i32>} : memref<4x16x128xf32, #tpu.memory_space<vmem>>, vector<4x16x128xf32>,
    return
  }
  func.func @transform_0(%arg0: i32) -> (i32, i32, i32) {
    %c0_i32 = arith.constant 0 : i32
    %c0_i32_0 = arith.constant 0 : i32
    %c0_i32_1 = arith.constant 0 : i32
    return %arg0, %c0_i32, %c0_i32_0 : i32, i32, i32
  }
  func.func @transform_1(%arg0: i32) -> (i32, i32, i32) {
    %c0_i32 = arith.constant 0 : i32
    %c0_i32_0 = arith.constant 0 : i32
    %c0_i32_1 = arith.constant 0 : i32
    return %arg0, %c0_i32, %c0_i32_0 : i32, i32, i32
  }
  func.func @transform_2(%arg0: i32) -> (i32, i32, i32) {
    %c0_i32 = arith.constant 0 : i32
    %c0_i32_0 = arith.constant 0 : i32
    %c0_i32_1 = arith.constant 0 : i32
    return %arg0, %c0_i32, %c0_i32_0 : i32, i32, i32
  }
  func.func @transform_3(%arg0: i32) -> (i32, i32, i32, i32) {
    %c0_i32 = arith.constant 0 : i32
    %c0_i32_0 = arith.constant 0 : i32
    %c0_i32_1 = arith.constant 0 : i32
    %c0_i32_2 = arith.constant 0 : i32
    return %arg0, %c0_i32, %c0_i32_0, %c0_i32_1 : i32, i32, i32, i32
  }
  func.func @transform_4(%arg0: i32) -> (i32, i32) {
    %c0_i32 = arith.constant 0 : i32
    %c0_i32_0 = arith.constant 0 : i32
    %c0_i32_1 = arith.constant 0 : i32
    return %c0_i32, %c0_i32_0 : i32, i32
  }
  func.func @transform_5(%arg0: i32) -> (i32, i32) {
    %c0_i32 = arith.constant 0 : i32
    %c0_i32_0 = arith.constant 0 : i32
    %c0_i32_1 = arith.constant 0 : i32
    return %c0_i32, %c0_i32_0 : i32, i32
  }
  func.func @transform_6(%arg0: i32) -> (i32, i32) {
    %c0_i32 = arith.constant 0 : i32
    %c0_i32_0 = arith.constant 0 : i32
    %c0_i32_1 = arith.constant 0 : i32
    return %c0_i32, %c0_i32_0 : i32, i32
  }
  func.func @transform_7(%arg0: i32) -> (i32, i32, i32) {
    %c0_i32 = arith.constant 0 : i32
    %c0_i32_0 = arith.constant 0 : i32
    %c0_i32_1 = arith.constant 0 : i32
    %c0_i32_2 = arith.constant 0 : i32
    return %c0_i32, %c0_i32_0, %c0_i32_1 : i32, i32, i32
  }
  func.func @transform_8(%arg0: i32) -> (i32, i32, i32) {
    %c0_i32 = arith.constant 0 : i32
    %c0_i32_0 = arith.constant 0 : i32
    %c0_i32_1 = arith.constant 0 : i32
    %c0_i32_2 = arith.constant 0 : i32
    return %c0_i32, %c0_i32_0, %c0_i32_1 : i32, i32, i32
  }
  func.func @transform_9(%arg0: i32) -> (i32, i32, i32) {
    %c0_i32 = arith.constant 0 : i32
    %c0_i32_0 = arith.constant 0 : i32
    %c0_i32_1 = arith.constant 0 : i32
    return %arg0, %c0_i32, %c0_i32_0 : i32, i32, i32
  }
}

module attributes {stable_mosaic.version = 11 : i64} {
  func.func @_pool_mlp_kernel(%arg0: i32, %arg1: memref<4x16x128xf32, #tpu.memory_space<vmem>>, %arg2: memref<3x128x128xbf16, #tpu.memory_space<vmem>>, %arg3: memref<3x1x128xf32, #tpu.memory_space<vmem>>, %arg4: memref<128x2xbf16, #tpu.memory_space<vmem>>, %arg5: memref<1x2xf32, #tpu.memory_space<vmem>>, %arg6: memref<4x2xf32, #tpu.memory_space<vmem>>) attributes {dimension_semantics = [#tpu.dimension_semantics<parallel>], iteration_bounds = array<i64: 1>, scalar_prefetch = 0 : i64, scratch_operands = 0 : i64, tpu.core_type = #tpu.core_type<tc>, window_params = [{transform_indices = @transform_0, window_bounds = array<i64: 4, 16, 128>}, {pipeline_mode = #tpu.pipeline_mode<synchronous>, transform_indices = @transform_1, window_bounds = array<i64: 3, 128, 128>}, {pipeline_mode = #tpu.pipeline_mode<synchronous>, transform_indices = @transform_2, window_bounds = array<i64: 3, 1, 128>}, {pipeline_mode = #tpu.pipeline_mode<synchronous>, transform_indices = @transform_3, window_bounds = array<i64: 128, 2>}, {pipeline_mode = #tpu.pipeline_mode<synchronous>, transform_indices = @transform_4, window_bounds = array<i64: 1, 2>}, {transform_indices = @transform_5, window_bounds = array<i64: 4, 2>}]} {
    %c0 = arith.constant 0 : index
    %c0_0 = arith.constant 0 : index
    %c0_1 = arith.constant 0 : index
    %0 = vector.load %arg1[%c0, %c0_0, %c0_1] : memref<4x16x128xf32, #tpu.memory_space<vmem>>, vector<4x16x128xf32>
    %cst = arith.constant dense<0.000000e+00> : vector<4x128xf32>
    %1 = vector.multi_reduction <add>, %0, %cst [1] : vector<4x16x128xf32> to vector<4x128xf32>
    %2 = arith.truncf %1 : vector<4x128xf32> to vector<4x128xbf16>
    %c0_2 = arith.constant 0 : index
    %c0_3 = arith.constant 0 : index
    %c0_4 = arith.constant 0 : index
    %3 = vector.load %arg2[%c0_2, %c0_3, %c0_4] : memref<3x128x128xbf16, #tpu.memory_space<vmem>>, vector<1x128x128xbf16>
    %4 = vector.shape_cast %3 : vector<1x128x128xbf16> to vector<128x128xbf16>
    %cst_5 = arith.constant dense<0.000000e+00> : vector<4x128xf32>
    %5 = tpu.matmul %2, %4, %cst_5 {dimension_numbers = #tpu.dot_dimension_numbers<[1], [0], [0], [1], [0, 0, 1, 1], [], []>} : vector<4x128xbf16>, vector<128x128xbf16>, vector<4x128xf32> -> vector<4x128xf32>
    %c0_6 = arith.constant 0 : index
    %c0_7 = arith.constant 0 : index
    %c0_8 = arith.constant 0 : index
    %6 = vector.load %arg3[%c0_6, %c0_7, %c0_8] : memref<3x1x128xf32, #tpu.memory_space<vmem>>, vector<1x1x128xf32>
    %7 = vector.shape_cast %6 : vector<1x1x128xf32> to vector<1x128xf32>
    %8 = vector.broadcast %7 : vector<1x128xf32> to vector<4x128xf32>
    %9 = arith.addf %5, %8 : vector<4x128xf32>
    %cst_9 = arith.constant 0.000000e+00 : f32
    %10 = vector.broadcast %cst_9 : f32 to vector<4x128xf32>
    %11 = arith.maximumf %9, %10 : vector<4x128xf32>
    %12 = arith.truncf %11 : vector<4x128xf32> to vector<4x128xbf16>
    %c1 = arith.constant 1 : index
    %c0_10 = arith.constant 0 : index
    %c0_11 = arith.constant 0 : index
    %13 = vector.load %arg2[%c1, %c0_10, %c0_11] : memref<3x128x128xbf16, #tpu.memory_space<vmem>>, vector<1x128x128xbf16>
    %14 = vector.shape_cast %13 : vector<1x128x128xbf16> to vector<128x128xbf16>
    %cst_12 = arith.constant dense<0.000000e+00> : vector<4x128xf32>
    %15 = tpu.matmul %12, %14, %cst_12 {dimension_numbers = #tpu.dot_dimension_numbers<[1], [0], [0], [1], [0, 0, 1, 1], [], []>} : vector<4x128xbf16>, vector<128x128xbf16>, vector<4x128xf32> -> vector<4x128xf32>
    %c1_13 = arith.constant 1 : index
    %c0_14 = arith.constant 0 : index
    %c0_15 = arith.constant 0 : index
    %16 = vector.load %arg3[%c1_13, %c0_14, %c0_15] : memref<3x1x128xf32, #tpu.memory_space<vmem>>, vector<1x1x128xf32>
    %17 = vector.shape_cast %16 : vector<1x1x128xf32> to vector<1x128xf32>
    %18 = vector.broadcast %17 : vector<1x128xf32> to vector<4x128xf32>
    %19 = arith.addf %15, %18 : vector<4x128xf32>
    %cst_16 = arith.constant 0.000000e+00 : f32
    %20 = vector.broadcast %cst_16 : f32 to vector<4x128xf32>
    %21 = arith.maximumf %19, %20 : vector<4x128xf32>
    %22 = arith.truncf %21 : vector<4x128xf32> to vector<4x128xbf16>
    %c2 = arith.constant 2 : index
    %c0_17 = arith.constant 0 : index
    %c0_18 = arith.constant 0 : index
    %23 = vector.load %arg2[%c2, %c0_17, %c0_18] : memref<3x128x128xbf16, #tpu.memory_space<vmem>>, vector<1x128x128xbf16>
    %24 = vector.shape_cast %23 : vector<1x128x128xbf16> to vector<128x128xbf16>
    %cst_19 = arith.constant dense<0.000000e+00> : vector<4x128xf32>
    %25 = tpu.matmul %22, %24, %cst_19 {dimension_numbers = #tpu.dot_dimension_numbers<[1], [0], [0], [1], [0, 0, 1, 1], [], []>} : vector<4x128xbf16>, vector<128x128xbf16>, vector<4x128xf32> -> vector<4x128xf32>
    %c2_20 = arith.constant 2 : index
    %c0_21 = arith.constant 0 : index
    %c0_22 = arith.constant 0 : index
    %26 = vector.load %arg3[%c2_20, %c0_21, %c0_22] : memref<3x1x128xf32, #tpu.memory_space<vmem>>, vector<1x1x128xf32>
    %27 = vector.shape_cast %26 : vector<1x1x128xf32> to vector<1x128xf32>
    %28 = vector.broadcast %27 : vector<1x128xf32> to vector<4x128xf32>
    %29 = arith.addf %25, %28 : vector<4x128xf32>
    %cst_23 = arith.constant 0.000000e+00 : f32
    %30 = vector.broadcast %cst_23 : f32 to vector<4x128xf32>
    %31 = arith.maximumf %29, %30 : vector<4x128xf32>
    %32 = arith.truncf %31 : vector<4x128xf32> to vector<4x128xbf16>
    %c0_24 = arith.constant 0 : index
    %c0_25 = arith.constant 0 : index
    %33 = vector.load %arg4[%c0_24, %c0_25] : memref<128x2xbf16, #tpu.memory_space<vmem>>, vector<128x2xbf16>
    %cst_26 = arith.constant dense<0.000000e+00> : vector<4x2xf32>
    %34 = tpu.matmul %32, %33, %cst_26 {dimension_numbers = #tpu.dot_dimension_numbers<[1], [0], [0], [1], [0, 0, 1, 1], [], []>} : vector<4x128xbf16>, vector<128x2xbf16>, vector<4x2xf32> -> vector<4x2xf32>
    %c0_27 = arith.constant 0 : index
    %c0_28 = arith.constant 0 : index
    %35 = vector.load %arg5[%c0_27, %c0_28] : memref<1x2xf32, #tpu.memory_space<vmem>>, vector<1x2xf32>
    %36 = vector.broadcast %35 : vector<1x2xf32> to vector<4x2xf32>
    %37 = arith.addf %34, %36 : vector<4x2xf32>
    %c0_29 = arith.constant 0 : index
    %c0_30 = arith.constant 0 : index
    %38 = vector.load %arg6[%c0_29, %c0_30] : memref<4x2xf32, #tpu.memory_space<vmem>>, vector<4x2xf32>
    tpu.vector_store %arg6[%c0_29, %c0_30], %37 {strides = array<i32>} : memref<4x2xf32, #tpu.memory_space<vmem>>, vector<4x2xf32>,
    return
  }
  func.func @transform_0(%arg0: i32) -> (i32, i32, i32) {
    %c0_i32 = arith.constant 0 : i32
    %c0_i32_0 = arith.constant 0 : i32
    %c0_i32_1 = arith.constant 0 : i32
    return %arg0, %c0_i32, %c0_i32_0 : i32, i32, i32
  }
  func.func @transform_1(%arg0: i32) -> (i32, i32, i32) {
    %c0_i32 = arith.constant 0 : i32
    %c0_i32_0 = arith.constant 0 : i32
    %c0_i32_1 = arith.constant 0 : i32
    %c0_i32_2 = arith.constant 0 : i32
    return %c0_i32, %c0_i32_0, %c0_i32_1 : i32, i32, i32
  }
  func.func @transform_2(%arg0: i32) -> (i32, i32, i32) {
    %c0_i32 = arith.constant 0 : i32
    %c0_i32_0 = arith.constant 0 : i32
    %c0_i32_1 = arith.constant 0 : i32
    %c0_i32_2 = arith.constant 0 : i32
    return %c0_i32, %c0_i32_0, %c0_i32_1 : i32, i32, i32
  }
  func.func @transform_3(%arg0: i32) -> (i32, i32) {
    %c0_i32 = arith.constant 0 : i32
    %c0_i32_0 = arith.constant 0 : i32
    %c0_i32_1 = arith.constant 0 : i32
    return %c0_i32, %c0_i32_0 : i32, i32
  }
  func.func @transform_4(%arg0: i32) -> (i32, i32) {
    %c0_i32 = arith.constant 0 : i32
    %c0_i32_0 = arith.constant 0 : i32
    %c0_i32_1 = arith.constant 0 : i32
    return %c0_i32, %c0_i32_0 : i32, i32
  }
  func.func @transform_5(%arg0: i32) -> (i32, i32) {
    %c0_i32 = arith.constant 0 : i32
    %c0_i32_0 = arith.constant 0 : i32
    return %arg0, %c0_i32 : i32, i32
  }
}

</mosaic_0001>

<llo_original>
// kernel: network_forward.3
$region0: #{network_forward.3}
  #allocation0 [shape = 'u32[]', space=smem, size = 0x4, offset = 0x4, fixed_abs, tag = 'smem constant byte address 0x4 - core index']
  #allocation1 [shape = 'u32[144,128]{1,0:T(1,128)}', space=vmem, size = 0x12000, scoped, tag = 'internal scratch']
  %s0 = inlined_call_operand.vmem [shape: f32[4,16,128], index: 0, kind: input, shape index: {}]
  %s1 = inlined_call_operand.vmem [shape: bf16[3,128,128], index: 1, kind: input, shape index: {}]
  %s2 = inlined_call_operand.vmem [shape: f32[3,1,128], index: 2, kind: input, shape index: {}]
  %s3 = inlined_call_operand.vmem [shape: bf16[128,2], index: 3, kind: input, shape index: {}]
  %s4 = inlined_call_operand.vmem [shape: f32[1,2], index: 4, kind: input, shape index: {}]
  %s5 = inlined_call_operand.vmem [shape: f32[4,2], index: 5, kind: output, shape index: {}]
  %s6 = sld [smem:[#allocation0]]
  $region30: #{network_forward.3} parent=0
    _
  %s8 = ssub.s32 1, %s6
  %s9 = scalar_select 0, %s8, %s6
  // Predicated region
  $region2: #{network_forward.3} parent=0 // pred_check
    _
  $region3: #{network_forward.3} parent=0 // pred_check_branch
    %11 = sbr.rel (0) target = $region5
  $region4: #{network_forward.3} parent=0 // pred_region
    _
  $region5: #{network_forward.3} parent=0 // pred_fallthru
    _
  // Predicated region
  $region6: #{network_forward.3} parent=0 // pred_check
    _
  $region7: #{network_forward.3} parent=0 // pred_check_branch
    %13 = sbr.rel (0) target = $region9
  $region8: #{network_forward.3} parent=0 // pred_region
    _
  $region9: #{network_forward.3} parent=0 // pred_fallthru
    _
  // Predicated region
  $region10: #{network_forward.3} parent=0 // pred_check
    _
  $region11: #{network_forward.3} parent=0 // pred_check_branch
    %15 = sbr.rel (0) target = $region13
  $region12: #{network_forward.3} parent=0 // pred_region
    _
  $region13: #{network_forward.3} parent=0 // pred_fallthru
    _
  // Predicated region
  $region14: #{network_forward.3} parent=0 // pred_check
    _
  $region15: #{network_forward.3} parent=0 // pred_check_branch
    %17 = sbr.rel (0) target = $region17
  $region16: #{network_forward.3} parent=0 // pred_region
    _
  $region17: #{network_forward.3} parent=0 // pred_fallthru
    _
  // Predicated region
  $region18: #{network_forward.3} parent=0 // pred_check
    _
  $region19: #{network_forward.3} parent=0 // pred_check_branch
    %19 = sbr.rel (0) target = $region21
  $region20: #{network_forward.3} parent=0 // pred_region
    _
  $region21: #{network_forward.3} parent=0 // pred_fallthru
    _
  %v21 = vld [vmem:[%s0] sm:$0xff]
  %v22 = vld [vmem:[%s0 + $0x8] sm:$0xff]
  %v23 = vld [vmem:[%s0 + $0x10] sm:$0xff]
  %v24 = vld [vmem:[%s0 + $0x18] sm:$0xff]
  %v25 = vld [vmem:[%s0 + $0x20] sm:$0xff]
  %v26 = vld [vmem:[%s0 + $0x28] sm:$0xff]
  %v27 = vld [vmem:[%s0 + $0x30] sm:$0xff]
  %v28 = vld [vmem:[%s0 + $0x38] sm:$0xff]
  %v29 = vadd.f32 %v21, %v22
  %v30 = vrot.slane %v29, 4
  %v31 = vadd.f32 %v29, %v30
  %v32 = vrot.slane %v31, 2
  %v33 = vadd.f32 %v31, %v32
  %v34 = vrot.slane %v33, 1
  %v35 = vadd.f32 %v33, %v34
  %v36 = vadd.f32 %v23, %v24
  %v37 = vrot.slane %v36, 4
  %v38 = vadd.f32 %v36, %v37
  %v39 = vrot.slane %v38, 2
  %v40 = vadd.f32 %v38, %v39
  %v41 = vrot.slane %v40, 1
  %v42 = vadd.f32 %v40, %v41
  %v43 = vadd.f32 %v25, %v26
  %v44 = vrot.slane %v43, 4
  %v45 = vadd.f32 %v43, %v44
  %v46 = vrot.slane %v45, 2
  %v47 = vadd.f32 %v45, %v46
  %v48 = vrot.slane %v47, 1
  %v49 = vadd.f32 %v47, %v48
  %v50 = vadd.f32 %v27, %v28
  %v51 = vrot.slane %v50, 4
  %v52 = vadd.f32 %v50, %v51
  %v53 = vrot.slane %v52, 2
  %v54 = vadd.f32 %v52, %v53
  %v55 = vrot.slane %v54, 1
  %v56 = vadd.f32 %v54, %v55
  %v57 = vpack.c.bf16 %v35, %v35
  %v58 = vpack.c.bf16 %v42, %v42
  %v59 = vpack.c.bf16 %v49, %v49
  %v60 = vpack.c.bf16 %v56, %v56
  %v61 = vld [vmem:[%s1] sm:$0xf]
  %v62 = vld [vmem:[%s1 + $0x4] sm:$0xf]
  %v63 = vld [vmem:[%s1 + $0x8] sm:$0xf]
  %v64 = vld [vmem:[%s1 + $0xc] sm:$0xf]
  %v65 = vld [vmem:[%s1 + $0x10] sm:$0xf]
  %v66 = vld [vmem:[%s1 + $0x14] sm:$0xf]
  %v67 = vld [vmem:[%s1 + $0x18] sm:$0xf]
  %v68 = vld [vmem:[%s1 + $0x1c] sm:$0xf]
  %v69 = vld [vmem:[%s1 + $0x20] sm:$0xf]
  %v70 = vld [vmem:[%s1 + $0x24] sm:$0xf]
  %v71 = vld [vmem:[%s1 + $0x28] sm:$0xf]
  %v72 = vld [vmem:[%s1 + $0x2c] sm:$0xf]
  %v73 = vld [vmem:[%s1 + $0x30] sm:$0xf]
  %v74 = vld [vmem:[%s1 + $0x34] sm:$0xf]
  %v75 = vld [vmem:[%s1 + $0x38] sm:$0xf]
  %v76 = vld [vmem:[%s1 + $0x3c] sm:$0xf]
  %v77 = vld [vmem:[%s2] sm:$0x1]
  %v79 = vlaneseq
  %v80 = vshrl.u32 %v79, 7
  %v81 = vsub.s32 0, %v80
  %v82 = vrot.slane %v77, %v81
  %v88 = vunpack.c.l.b16 %v57
  %v89 = vunpack.c.l.b16 %v58
  %v90 = vunpack.c.l.b16 %v59
  %v91 = vunpack.c.l.b16 %v60
  %vm92 = vcmask 1041409
  %v93 = vsel %vm92, %v89, %v88
  %vm94 = vcmask 1042434
  %v95 = vsel %vm94, %v90, %v93
  %vm96 = vcmask 1043459
  %v97 = vsel %vm96, %v91, %v95
  %v98 = vpack.c.b16 %v97, %v97
  %v116 = vunpack.c.l.b16 %v61
  %v117 = vunpack.c.l.b16 %v62
  %v118 = vunpack.c.l.b16 %v63
  %v119 = vunpack.c.l.b16 %v64
  %v120 = vunpack.c.l.b16 %v65
  %v121 = vunpack.c.l.b16 %v66
  %v122 = vunpack.c.l.b16 %v67
  %v123 = vunpack.c.l.b16 %v68
  %v124 = vunpack.c.l.b16 %v69
  %v125 = vunpack.c.l.b16 %v70
  %v126 = vunpack.c.l.b16 %v71
  %v127 = vunpack.c.l.b16 %v72
  %v128 = vunpack.c.l.b16 %v73
  %v129 = vunpack.c.l.b16 %v74
  %v130 = vunpack.c.l.b16 %v75
  %v131 = vunpack.c.l.b16 %v76
  %v132 = vpack.c.b16 %v117, %v116
  %v133 = vpack.c.b16 %v119, %v118
  %v134 = vpack.c.b16 %v121, %v120
  %v135 = vpack.c.b16 %v123, %v122
  %v136 = vpack.c.b16 %v125, %v124
  %v137 = vpack.c.b16 %v127, %v126
  %v138 = vpack.c.b16 %v129, %v128
  %v139 = vpack.c.b16 %v131, %v130
  %148 = vmatprep.subr.bf16.mxu0 0
  %149 = vmatpush1.bf16.msra.mxu0 %v139
  %150 = vmatprep.subr.bf16.mxu0 0
  %151 = vmatpush1.bf16.msra.mxu0 %v138
  %152 = vmatprep.subr.bf16.mxu0 0
  %153 = vmatpush1.bf16.msra.mxu0 %v137
  %154 = vmatprep.subr.bf16.mxu0 0
  %155 = vmatpush1.bf16.msra.mxu0 %v136
  %156 = vmatprep.subr.bf16.mxu0 0
  %157 = vmatpush1.bf16.msra.mxu0 %v135
  %158 = vmatprep.subr.bf16.mxu0 0
  %159 = vmatpush1.bf16.msra.mxu0 %v134
  %160 = vmatprep.subr.bf16.mxu0 0
  %161 = vmatpush1.bf16.msra.mxu0 %v133
  %162 = vmatprep.subr.bf16.mxu0 0
  %163 = vmatpush1.bf16.msra.mxu0 %v132
  %164 = vmatprep.subr.bf16.mxu0 0
  %165 = vmatpush2.bf16.msra.mxu0 0
  %166 = vmatprep.subr.bf16.mxu0 0
  %167 = vmatpush2.bf16.msra.mxu0 0
  %168 = vmatprep.subr.bf16.mxu0 0
  %169 = vmatpush2.bf16.msra.mxu0 0
  %170 = vmatprep.subr.bf16.mxu0 0
  %171 = vmatpush2.bf16.msra.mxu0 0
  %172 = vmatprep.subr.bf16.mxu0 0
  %173 = vmatpush2.bf16.msra.mxu0 0
  %174 = vmatprep.subr.bf16.mxu0 0
  %175 = vmatpush2.bf16.msra.mxu0 0
  %176 = vmatprep.subr.bf16.mxu0 0
  %177 = vmatpush2.bf16.msra.mxu0 0
  %178 = vmatprep.subr.bf16.mxu0 0
  %179 = vmatpush2.bf16.msra.mxu0 0
  %180 = vmatprep.mubr.bf16.mxu0 0
  %181 = vmatmul.mubr.bf16.gmra.mxu0 %v98
  %v182 = vpop.f32.mrf.mxu0
  %v183 = vadd.f32 %v82, %v182
  %v184 = vpop.f32.mrf.mxu0
  %v185 = vpop.f32.mrf.mxu0
  %v186 = vpop.f32.mrf.mxu0
  %187 = vdwg.mxu0
  %v188 = vmax.f32 %v183, 0.0
  %v189 = vpack.c.bf16 %v188, %v188
  %s190 = scalar_lea.vmem %s1, 64
  %v191 = vld [vmem:[%s190] sm:$0xf]
  %v192 = vld [vmem:[%s190 + $0x4] sm:$0xf]
  %v193 = vld [vmem:[%s190 + $0x8] sm:$0xf]
  %v194 = vld [vmem:[%s190 + $0xc] sm:$0xf]
  %v195 = vld [vmem:[%s190 + $0x10] sm:$0xf]
  %v196 = vld [vmem:[%s190 + $0x14] sm:$0xf]
  %v197 = vld [vmem:[%s190 + $0x18] sm:$0xf]
  %v198 = vld [vmem:[%s190 + $0x1c] sm:$0xf]
  %v199 = vld [vmem:[%s190 + $0x20] sm:$0xf]
  %v200 = vld [vmem:[%s190 + $0x24] sm:$0xf]
  %v201 = vld [vmem:[%s190 + $0x28] sm:$0xf]
  %v202 = vld [vmem:[%s190 + $0x2c] sm:$0xf]
  %v203 = vld [vmem:[%s190 + $0x30] sm:$0xf]
  %v204 = vld [vmem:[%s190 + $0x34] sm:$0xf]
  %v205 = vld [vmem:[%s190 + $0x38] sm:$0xf]
  %v206 = vld [vmem:[%s190 + $0x3c] sm:$0xf]
  %s207 = scalar_lea.vmem %s2, 1
  %v208 = vld [vmem:[%s207] sm:$0x1]
  %v210 = vlaneseq
  %v211 = vshrl.u32 %v210, 7
  %v212 = vsub.s32 0, %v211
  %v213 = vrot.slane %v208, %v212
  %v231 = vunpack.c.l.b16 %v191
  %v232 = vunpack.c.l.b16 %v192
  %v233 = vunpack.c.l.b16 %v193
  %v234 = vunpack.c.l.b16 %v194
  %v235 = vunpack.c.l.b16 %v195
  %v236 = vunpack.c.l.b16 %v196
  %v237 = vunpack.c.l.b16 %v197
  %v238 = vunpack.c.l.b16 %v198
  %v239 = vunpack.c.l.b16 %v199
  %v240 = vunpack.c.l.b16 %v200
  %v241 = vunpack.c.l.b16 %v201
  %v242 = vunpack.c.l.b16 %v202
  %v243 = vunpack.c.l.b16 %v203
  %v244 = vunpack.c.l.b16 %v204
  %v245 = vunpack.c.l.b16 %v205
  %v246 = vunpack.c.l.b16 %v206
  %v247 = vpack.c.b16 %v232, %v231
  %v248 = vpack.c.b16 %v234, %v233
  %v249 = vpack.c.b16 %v236, %v235
  %v250 = vpack.c.b16 %v238, %v237
  %v251 = vpack.c.b16 %v240, %v239
  %v252 = vpack.c.b16 %v242, %v241
  %v253 = vpack.c.b16 %v244, %v243
  %v254 = vpack.c.b16 %v246, %v245
  %263 = vmatprep.subr.bf16.mxu0 0
  %264 = vmatpush1.bf16.msra.mxu0 %v254
  %265 = vmatprep.subr.bf16.mxu0 0
  %266 = vmatpush1.bf16.msra.mxu0 %v253
  %267 = vmatprep.subr.bf16.mxu0 0
  %268 = vmatpush1.bf16.msra.mxu0 %v252
  %269 = vmatprep.subr.bf16.mxu0 0
  %270 = vmatpush1.bf16.msra.mxu0 %v251
  %271 = vmatprep.subr.bf16.mxu0 0
  %272 = vmatpush1.bf16.msra.mxu0 %v250
  %273 = vmatprep.subr.bf16.mxu0 0
  %274 = vmatpush1.bf16.msra.mxu0 %v249
  %275 = vmatprep.subr.bf16.mxu0 0
  %276 = vmatpush1.bf16.msra.mxu0 %v248
  %277 = vmatprep.subr.bf16.mxu0 0
  %278 = vmatpush1.bf16.msra.mxu0 %v247
  %279 = vmatprep.subr.bf16.mxu0 0
  %280 = vmatpush2.bf16.msra.mxu0 0
  %281 = vmatprep.subr.bf16.mxu0 0
  %282 = vmatpush2.bf16.msra.mxu0 0
  %283 = vmatprep.subr.bf16.mxu0 0
  %284 = vmatpush2.bf16.msra.mxu0 0
  %285 = vmatprep.subr.bf16.mxu0 0
  %286 = vmatpush2.bf16.msra.mxu0 0
  %287 = vmatprep.subr.bf16.mxu0 0
  %288 = vmatpush2.bf16.msra.mxu0 0
  %289 = vmatprep.subr.bf16.mxu0 0
  %290 = vmatpush2.bf16.msra.mxu0 0
  %291 = vmatprep.subr.bf16.mxu0 0
  %292 = vmatpush2.bf16.msra.mxu0 0
  %293 = vmatprep.subr.bf16.mxu0 0
  %294 = vmatpush2.bf16.msra.mxu0 0
  %295 = vmatprep.mubr.bf16.mxu0 0
  %296 = vmatmul.mubr.bf16.gmra.mxu0 %v189
  %v297 = vpop.f32.mrf.mxu0
  %v298 = vadd.f32 %v213, %v297
  %v299 = vpop.f32.mrf.mxu0
  %v300 = vpop.f32.mrf.mxu0
  %v301 = vpop.f32.mrf.mxu0
  %302 = vdwg.mxu0
  %v303 = vmax.f32 %v298, 0.0
  %v304 = vpack.c.bf16 %v303, %v303
  %s305 = scalar_lea.vmem %s1, 128
  %v306 = vld [vmem:[%s305] sm:$0xf]
  %v307 = vld [vmem:[%s305 + $0x4] sm:$0xf]
  %v308 = vld [vmem:[%s305 + $0x8] sm:$0xf]
  %v309 = vld [vmem:[%s305 + $0xc] sm:$0xf]
  %v310 = vld [vmem:[%s305 + $0x10] sm:$0xf]
  %v311 = vld [vmem:[%s305 + $0x14] sm:$0xf]
  %v312 = vld [vmem:[%s305 + $0x18] sm:$0xf]
  %v313 = vld [vmem:[%s305 + $0x1c] sm:$0xf]
  %v314 = vld [vmem:[%s305 + $0x20] sm:$0xf]
  %v315 = vld [vmem:[%s305 + $0x24] sm:$0xf]
  %v316 = vld [vmem:[%s305 + $0x28] sm:$0xf]
  %v317 = vld [vmem:[%s305 + $0x2c] sm:$0xf]
  %v318 = vld [vmem:[%s305 + $0x30] sm:$0xf]
  %v319 = vld [vmem:[%s305 + $0x34] sm:$0xf]
  %v320 = vld [vmem:[%s305 + $0x38] sm:$0xf]
  %v321 = vld [vmem:[%s305 + $0x3c] sm:$0xf]
  %s322 = scalar_lea.vmem %s2, 2
  %v323 = vld [vmem:[%s322] sm:$0x1]
  %v325 = vlaneseq
  %v326 = vshrl.u32 %v325, 7
  %v327 = vsub.s32 0, %v326
  %v328 = vrot.slane %v323, %v327
  %v346 = vunpack.c.l.b16 %v306
  %v347 = vunpack.c.l.b16 %v307
  %v348 = vunpack.c.l.b16 %v308
  %v349 = vunpack.c.l.b16 %v309
  %v350 = vunpack.c.l.b16 %v310
  %v351 = vunpack.c.l.b16 %v311
  %v352 = vunpack.c.l.b16 %v312
  %v353 = vunpack.c.l.b16 %v313
  %v354 = vunpack.c.l.b16 %v314
  %v355 = vunpack.c.l.b16 %v315
  %v356 = vunpack.c.l.b16 %v316
  %v357 = vunpack.c.l.b16 %v317
  %v358 = vunpack.c.l.b16 %v318
  %v359 = vunpack.c.l.b16 %v319
  %v360 = vunpack.c.l.b16 %v320
  %v361 = vunpack.c.l.b16 %v321
  %v362 = vpack.c.b16 %v347, %v346
  %v363 = vpack.c.b16 %v349, %v348
  %v364 = vpack.c.b16 %v351, %v350
  %v365 = vpack.c.b16 %v353, %v352
  %v366 = vpack.c.b16 %v355, %v354
  %v367 = vpack.c.b16 %v357, %v356
  %v368 = vpack.c.b16 %v359, %v358
  %v369 = vpack.c.b16 %v361, %v360
  %378 = vmatprep.subr.bf16.mxu0 0
  %379 = vmatpush1.bf16.msra.mxu0 %v369
  %380 = vmatprep.subr.bf16.mxu0 0
  %381 = vmatpush1.bf16.msra.mxu0 %v368
  %382 = vmatprep.subr.bf16.mxu0 0
  %383 = vmatpush1.bf16.msra.mxu0 %v367
  %384 = vmatprep.subr.bf16.mxu0 0
  %385 = vmatpush1.bf16.msra.mxu0 %v366
  %386 = vmatprep.subr.bf16.mxu0 0
  %387 = vmatpush1.bf16.msra.mxu0 %v365
  %388 = vmatprep.subr.bf16.mxu0 0
  %389 = vmatpush1.bf16.msra.mxu0 %v364
  %390 = vmatprep.subr.bf16.mxu0 0
  %391 = vmatpush1.bf16.msra.mxu0 %v363
  %392 = vmatprep.subr.bf16.mxu0 0
  %393 = vmatpush1.bf16.msra.mxu0 %v362
  %394 = vmatprep.subr.bf16.mxu0 0
  %395 = vmatpush2.bf16.msra.mxu0 0
  %396 = vmatprep.subr.bf16.mxu0 0
  %397 = vmatpush2.bf16.msra.mxu0 0
  %398 = vmatprep.subr.bf16.mxu0 0
  %399 = vmatpush2.bf16.msra.mxu0 0
  %400 = vmatprep.subr.bf16.mxu0 0
  %401 = vmatpush2.bf16.msra.mxu0 0
  %402 = vmatprep.subr.bf16.mxu0 0
  %403 = vmatpush2.bf16.msra.mxu0 0
  %404 = vmatprep.subr.bf16.mxu0 0
  %405 = vmatpush2.bf16.msra.mxu0 0
  %406 = vmatprep.subr.bf16.mxu0 0
  %407 = vmatpush2.bf16.msra.mxu0 0
  %408 = vmatprep.subr.bf16.mxu0 0
  %409 = vmatpush2.bf16.msra.mxu0 0
  %410 = vmatprep.mubr.bf16.mxu0 0
  %411 = vmatmul.mubr.bf16.gmra.mxu0 %v304
  %v412 = vpop.f32.mrf.mxu0
  %v413 = vadd.f32 %v328, %v412
  %v414 = vpop.f32.mrf.mxu0
  %v415 = vpop.f32.mrf.mxu0
  %v416 = vpop.f32.mrf.mxu0
  %417 = vdwg.mxu0
  %v418 = vmax.f32 %v413, 0.0
  %v419 = vpack.c.bf16 %v418, %v418
  %v420 = vld [vmem:[%s3] sm:$0xf]
  %v421 = vld [vmem:[%s3 + $0x4] sm:$0xf]
  %v422 = vld [vmem:[%s3 + $0x8] sm:$0xf]
  %v423 = vld [vmem:[%s3 + $0xc] sm:$0xf]
  %v424 = vld [vmem:[%s3 + $0x10] sm:$0xf]
  %v425 = vld [vmem:[%s3 + $0x14] sm:$0xf]
  %v426 = vld [vmem:[%s3 + $0x18] sm:$0xf]
  %v427 = vld [vmem:[%s3 + $0x1c] sm:$0xf]
  %v428 = vld [vmem:[%s3 + $0x20] sm:$0xf]
  %v429 = vld [vmem:[%s3 + $0x24] sm:$0xf]
  %v430 = vld [vmem:[%s3 + $0x28] sm:$0xf]
  %v431 = vld [vmem:[%s3 + $0x2c] sm:$0xf]
  %v432 = vld [vmem:[%s3 + $0x30] sm:$0xf]
  %v433 = vld [vmem:[%s3 + $0x34] sm:$0xf]
  %v434 = vld [vmem:[%s3 + $0x38] sm:$0xf]
  %v435 = vld [vmem:[%s3 + $0x3c] sm:$0xf]
  %v436 = vld [vmem:[%s4] sm:$0x1]
  %v438 = vlaneseq
  %v439 = vshrl.u32 %v438, 7
  %v440 = vsub.s32 0, %v439
  %v441 = vrot.slane %v436, %v440
  %v459 = vunpack.c.l.b16 %v420
  %v460 = vunpack.c.l.b16 %v421
  %v461 = vunpack.c.l.b16 %v422
  %v462 = vunpack.c.l.b16 %v423
  %v463 = vunpack.c.l.b16 %v424
  %v464 = vunpack.c.l.b16 %v425
  %v465 = vunpack.c.l.b16 %v426
  %v466 = vunpack.c.l.b16 %v427
  %v467 = vunpack.c.l.b16 %v428
  %v468 = vunpack.c.l.b16 %v429
  %v469 = vunpack.c.l.b16 %v430
  %v470 = vunpack.c.l.b16 %v431
  %v471 = vunpack.c.l.b16 %v432
  %v472 = vunpack.c.l.b16 %v433
  %v473 = vunpack.c.l.b16 %v434
  %v474 = vunpack.c.l.b16 %v435
  %v475 = vpack.c.b16 %v460, %v459
  %v476 = vpack.c.b16 %v462, %v461
  %v477 = vpack.c.b16 %v464, %v463
  %v478 = vpack.c.b16 %v466, %v465
  %v479 = vpack.c.b16 %v468, %v467
  %v480 = vpack.c.b16 %v470, %v469
  %v481 = vpack.c.b16 %v472, %v471
  %v482 = vpack.c.b16 %v474, %v473
  %491 = vmatprep.subr.bf16.mxu0 0
  %492 = vmatpush1.bf16.msra.mxu0 %v482
  %493 = vmatprep.subr.bf16.mxu0 0
  %494 = vmatpush1.bf16.msra.mxu0 %v481
  %495 = vmatprep.subr.bf16.mxu0 0
  %496 = vmatpush1.bf16.msra.mxu0 %v480
  %497 = vmatprep.subr.bf16.mxu0 0
  %498 = vmatpush1.bf16.msra.mxu0 %v479
  %499 = vmatprep.subr.bf16.mxu0 0
  %500 = vmatpush1.bf16.msra.mxu0 %v478
  %501 = vmatprep.subr.bf16.mxu0 0
  %502 = vmatpush1.bf16.msra.mxu0 %v477
  %503 = vmatprep.subr.bf16.mxu0 0
  %504 = vmatpush1.bf16.msra.mxu0 %v476
  %505 = vmatprep.subr.bf16.mxu0 0
  %506 = vmatpush1.bf16.msra.mxu0 %v475
  %507 = vmatprep.subr.bf16.mxu0 0
  %508 = vmatpush2.bf16.msra.mxu0 0
  %509 = vmatprep.subr.bf16.mxu0 0
  %510 = vmatpush2.bf16.msra.mxu0 0
  %511 = vmatprep.subr.bf16.mxu0 0
  %512 = vmatpush2.bf16.msra.mxu0 0
  %513 = vmatprep.subr.bf16.mxu0 0
  %514 = vmatpush2.bf16.msra.mxu0 0
  %515 = vmatprep.subr.bf16.mxu0 0
  %516 = vmatpush2.bf16.msra.mxu0 0
  %517 = vmatprep.subr.bf16.mxu0 0
  %518 = vmatpush2.bf16.msra.mxu0 0
  %519 = vmatprep.subr.bf16.mxu0 0
  %520 = vmatpush2.bf16.msra.mxu0 0
  %521 = vmatprep.subr.bf16.mxu0 0
  %522 = vmatpush2.bf16.msra.mxu0 0
  %523 = vmatprep.mubr.bf16.mxu0 0
  %524 = vmatmul.mubr.bf16.gmra.mxu0 %v419
  %v525 = vpop.f32.mrf.mxu0
  %v526 = vadd.f32 %v441, %v525
  %v527 = vpop.f32.mrf.mxu0
  %v528 = vpop.f32.mrf.mxu0
  %v529 = vpop.f32.mrf.mxu0
  %530 = vdwg.mxu0
  %vm531 = vcmask 11264
  %532 = vst.msk [vmem:[%s5] sm:$0xf] %vm531, %v526
  // Predicated region
  $region22: #{network_forward.3} parent=0 // pred_check
    _
  $region23: #{network_forward.3} parent=0 // pred_check_branch
    %534 = sbr.rel (0) target = $region25
  $region24: #{network_forward.3} parent=0 // pred_region
    _
  $region25: #{network_forward.3} parent=0 // pred_fallthru
    _
  // Predicated region
  $region26: #{network_forward.3} parent=0 // pred_check
    _
  $region27: #{network_forward.3} parent=0 // pred_check_branch
    %536 = sbr.rel (0) target = $region29
  $region28: #{network_forward.3} parent=0 // pred_region
    _
  $region29: #{network_forward.3} parent=0 // pred_fallthru
    _

// kernel: network_forward.2
$region0: #{network_forward.2}
  #allocation0 [shape = 'u32[]', space=smem, size = 0x4, offset = 0x4, fixed_abs, tag = 'smem constant byte address 0x4 - core index']
  #allocation1 [shape = 'u32[144,128]{1,0:T(1,128)}', space=vmem, size = 0x12000, scoped, tag = 'internal scratch']
  %s0 = inlined_call_operand.vmem [shape: f32[4,16,16], index: 0, kind: input, shape index: {}]
  %s1 = inlined_call_operand.vmem [shape: f32[4,16,8], index: 1, kind: input, shape index: {}]
  %s2 = inlined_call_operand.vmem [shape: f32[4,16,1], index: 2, kind: input, shape index: {}]
  %s3 = inlined_call_operand.vmem [shape: f32[4,16,16,6], index: 3, kind: input, shape index: {}]
  %s4 = inlined_call_operand.vmem [shape: bf16[8,128], index: 4, kind: input, shape index: {}]
  %s5 = inlined_call_operand.vmem [shape: f32[1,128], index: 5, kind: input, shape index: {}]
  %s6 = inlined_call_operand.vmem [shape: bf16[6,128], index: 6, kind: input, shape index: {}]
  %s7 = inlined_call_operand.vmem [shape: bf16[4,128,128], index: 7, kind: input, shape index: {}]
  %s8 = inlined_call_operand.vmem [shape: bf16[4,256,128], index: 8, kind: input, shape index: {}]
  %s9 = inlined_call_operand.vmem [shape: f32[4,16,128], index: 9, kind: output, shape index: {}]
  %s10 = sld [smem:[#allocation0]]
  $region46: #{network_forward.2} parent=0
    _
  %s12 = ssub.s32 1, %s10
  %s13 = scalar_select 0, %s12, %s10
  // Predicated region
  $region2: #{network_forward.2} parent=0 // pred_check
    _
  $region3: #{network_forward.2} parent=0 // pred_check_branch
    %15 = sbr.rel (0) target = $region5
  $region4: #{network_forward.2} parent=0 // pred_region
    _
  $region5: #{network_forward.2} parent=0 // pred_fallthru
    _
  // Predicated region
  $region6: #{network_forward.2} parent=0 // pred_check
    _
  $region7: #{network_forward.2} parent=0 // pred_check_branch
    %17 = sbr.rel (0) target = $region9
  $region8: #{network_forward.2} parent=0 // pred_region
    _
  $region9: #{network_forward.2} parent=0 // pred_fallthru
    _
  // Predicated region
  $region10: #{network_forward.2} parent=0 // pred_check
    _
  $region11: #{network_forward.2} parent=0 // pred_check_branch
    %19 = sbr.rel (0) target = $region13
  $region12: #{network_forward.2} parent=0 // pred_region
    _
  $region13: #{network_forward.2} parent=0 // pred_fallthru
    _
  // Predicated region
  $region14: #{network_forward.2} parent=0 // pred_check
    _
  $region15: #{network_forward.2} parent=0 // pred_check_branch
    %21 = sbr.rel (0) target = $region17
  $region16: #{network_forward.2} parent=0 // pred_region
    _
  $region17: #{network_forward.2} parent=0 // pred_fallthru
    _
  // Predicated region
  $region18: #{network_forward.2} parent=0 // pred_check
    _
  $region19: #{network_forward.2} parent=0 // pred_check_branch
    %23 = sbr.rel (0) target = $region21
  $region20: #{network_forward.2} parent=0 // pred_region
    _
  $region21: #{network_forward.2} parent=0 // pred_fallthru
    _
  // Predicated region
  $region22: #{network_forward.2} parent=0 // pred_check
    _
  $region23: #{network_forward.2} parent=0 // pred_check_branch
    %25 = sbr.rel (0) target = $region25
  $region24: #{network_forward.2} parent=0 // pred_region
    _
  $region25: #{network_forward.2} parent=0 // pred_fallthru
    _
  // Predicated region
  $region26: #{network_forward.2} parent=0 // pred_check
    _
  $region27: #{network_forward.2} parent=0 // pred_check_branch
    %27 = sbr.rel (0) target = $region29
  $region28: #{network_forward.2} parent=0 // pred_region
    _
  $region29: #{network_forward.2} parent=0 // pred_fallthru
    _
  // Predicated region
  $region30: #{network_forward.2} parent=0 // pred_check
    _
  $region31: #{network_forward.2} parent=0 // pred_check_branch
    %29 = sbr.rel (0) target = $region33
  $region32: #{network_forward.2} parent=0 // pred_region
    _
  $region33: #{network_forward.2} parent=0 // pred_fallthru
    _
  // Predicated region
  $region34: #{network_forward.2} parent=0 // pred_check
    _
  $region35: #{network_forward.2} parent=0 // pred_check_branch
    %31 = sbr.rel (0) target = $region37
  $region36: #{network_forward.2} parent=0 // pred_region
    _
  $region37: #{network_forward.2} parent=0 // pred_fallthru
    _
  %v33 = vld [vmem:[%s0] sm:$0xff]
  %v34 = vld [vmem:[%s0 + $0x8] sm:$0xff]
  %v35 = vld [vmem:[%s0 + $0x10] sm:$0xff]
  %v36 = vld [vmem:[%s0 + $0x18] sm:$0xff]
  %v37 = vld [vmem:[%s0 + $0x20] sm:$0xff]
  %v38 = vld [vmem:[%s0 + $0x28] sm:$0xff]
  %v39 = vld [vmem:[%s0 + $0x30] sm:$0xff]
  %v40 = vld [vmem:[%s0 + $0x38] sm:$0xff]
  %v41 = vpack.c.bf16 %v34, %v33
  %v42 = vpack.c.bf16 %v36, %v35
  %v43 = vpack.c.bf16 %v38, %v37
  %v44 = vpack.c.bf16 %v40, %v39
  %v45 = vld [vmem:[%s1] sm:$0xff]
  %v46 = vld [vmem:[%s1 + $0x8] sm:$0xff]
  %v47 = vld [vmem:[%s1 + $0x10] sm:$0xff]
  %v48 = vld [vmem:[%s1 + $0x18] sm:$0xff]
  %v49 = vld [vmem:[%s1 + $0x20] sm:$0xff]
  %v50 = vld [vmem:[%s1 + $0x28] sm:$0xff]
  %v51 = vld [vmem:[%s1 + $0x30] sm:$0xff]
  %v52 = vld [vmem:[%s1 + $0x38] sm:$0xff]
  %v53 = vpack.c.bf16 %v46, %v45
  %v54 = vpack.c.bf16 %v48, %v47
  %v55 = vpack.c.bf16 %v50, %v49
  %v56 = vpack.c.bf16 %v52, %v51
  %v57 = vld [vmem:[%s4] sm:$0xf]
  %vm58 = vcmask 64512
  %v60 = vsel %vm58, %v53, 0
  %v63 = vsel %vm58, %v54, 0
  %v66 = vsel %vm58, %v55, 0
  %v69 = vsel %vm58, %v56, 0
  %vm71 = vcmask 1043456
  %v73 = vsel %vm71, %v57, 0
  %75 = vmatprep.subr.bf16.mxu0 0
  %76 = vmatpush1.bf16.msra.mxu0 0
  %77 = vmatprep.subr.bf16.mxu0 0
  %78 = vmatpush1.bf16.msra.mxu0 0
  %79 = vmatprep.subr.bf16.mxu0 0
  %80 = vmatpush1.bf16.msra.mxu0 0
  %81 = vmatprep.subr.bf16.mxu0 0
  %82 = vmatpush1.bf16.msra.mxu0 0
  %83 = vmatprep.subr.bf16.mxu0 0
  %84 = vmatpush1.bf16.msra.mxu0 0
  %85 = vmatprep.subr.bf16.mxu0 0
  %86 = vmatpush1.bf16.msra.mxu0 0
  %87 = vmatprep.subr.bf16.mxu0 0
  %88 = vmatpush1.bf16.msra.mxu0 0
  %89 = vmatprep.subr.bf16.mxu0 0
  %90 = vmatpush1.bf16.msra.mxu0 %v73
  %91 = vmatprep.subr.bf16.mxu0 0
  %92 = vmatpush2.bf16.msra.mxu0 0
  %93 = vmatprep.subr.bf16.mxu0 0
  %94 = vmatpush2.bf16.msra.mxu0 0
  %95 = vmatprep.subr.bf16.mxu0 0
  %96 = vmatpush2.bf16.msra.mxu0 0
  %97 = vmatprep.subr.bf16.mxu0 0
  %98 = vmatpush2.bf16.msra.mxu0 0
  %99 = vmatprep.subr.bf16.mxu0 0
  %100 = vmatpush2.bf16.msra.mxu0 0
  %101 = vmatprep.subr.bf16.mxu0 0
  %102 = vmatpush2.bf16.msra.mxu0 0
  %103 = vmatprep.subr.bf16.mxu0 0
  %104 = vmatpush2.bf16.msra.mxu0 0
  %105 = vmatprep.subr.bf16.mxu0 0
  %106 = vmatpush2.bf16.msra.mxu0 0
  %107 = vmatprep.mubr.bf16.mxu0 0
  %108 = vmatmul.mubr.bf16.gmra.mxu0 %v60
  %v109 = vpop.f32.mrf.mxu0
  %v110 = vadd.f32 0.0, %v109
  %v111 = vpop.f32.mrf.mxu0
  %v112 = vpop.f32.mrf.mxu0
  %v113 = vadd.f32 0.0, %v112
  %v114 = vpop.f32.mrf.mxu0
  %115 = vmatprep.mubr.bf16.mxu0 0
  %116 = vmatmul.mubr.bf16.gmra.mxu0 %v63
  %v117 = vpop.f32.mrf.mxu0
  %v118 = vadd.f32 0.0, %v117
  %v119 = vpop.f32.mrf.mxu0
  %v120 = vpop.f32.mrf.mxu0
  %v121 = vadd.f32 0.0, %v120
  %v122 = vpop.f32.mrf.mxu0
  %123 = vmatprep.mubr.bf16.mxu0 0
  %124 = vmatmul.mubr.bf16.gmra.mxu0 %v66
  %v125 = vpop.f32.mrf.mxu0
  %v126 = vadd.f32 0.0, %v125
  %v127 = vpop.f32.mrf.mxu0
  %v128 = vpop.f32.mrf.mxu0
  %v129 = vadd.f32 0.0, %v128
  %v130 = vpop.f32.mrf.mxu0
  %131 = vmatprep.mubr.bf16.mxu0 0
  %132 = vmatmul.mubr.bf16.gmra.mxu0 %v69
  %v133 = vpop.f32.mrf.mxu0
  %v134 = vadd.f32 0.0, %v133
  %v135 = vpop.f32.mrf.mxu0
  %v136 = vpop.f32.mrf.mxu0
  %v137 = vadd.f32 0.0, %v136
  %v138 = vpop.f32.mrf.mxu0
  %139 = vdwg.mxu0
  %v140 = vld [vmem:[%s2] sm:$0xff]
  %v141 = vld [vmem:[%s2 + $0x8] sm:$0xff]
  %v142 = vld [vmem:[%s2 + $0x10] sm:$0xff]
  %v143 = vld [vmem:[%s2 + $0x18] sm:$0xff]
  %v144 = vld [vmem:[%s2 + $0x20] sm:$0xff]
  %v145 = vld [vmem:[%s2 + $0x28] sm:$0xff]
  %v146 = vld [vmem:[%s2 + $0x30] sm:$0xff]
  %v147 = vld [vmem:[%s2 + $0x38] sm:$0xff]
  %v148 = vld [vmem:[%s5] sm:$0x1]
  %150 = vset.pattern.permute.xlu0 0
  %151 = vperm.xlu0 %150, %v140
  %v152 = vpop.permute.xlu0 %151
  %155 = vset.pattern.permute.xlu0 0
  %156 = vperm.xlu0 %155, %v141
  %v157 = vpop.permute.xlu0 %156
  %160 = vset.pattern.permute.xlu0 0
  %161 = vperm.xlu0 %160, %v142
  %v162 = vpop.permute.xlu0 %161
  %165 = vset.pattern.permute.xlu0 0
  %166 = vperm.xlu0 %165, %v143
  %v167 = vpop.permute.xlu0 %166
  %170 = vset.pattern.permute.xlu0 0
  %171 = vperm.xlu0 %170, %v144
  %v172 = vpop.permute.xlu0 %171
  %175 = vset.pattern.permute.xlu0 0
  %176 = vperm.xlu0 %175, %v145
  %v177 = vpop.permute.xlu0 %176
  %180 = vset.pattern.permute.xlu0 0
  %181 = vperm.xlu0 %180, %v146
  %v182 = vpop.permute.xlu0 %181
  %185 = vset.pattern.permute.xlu0 0
  %186 = vperm.xlu0 %185, %v147
  %v187 = vpop.permute.xlu0 %186
  %v190 = vlaneseq
  %v191 = vshrl.u32 %v190, 7
  %v192 = vsub.s32 0, %v191
  %v193 = vrot.slane %v148, %v192
  %v195 = vmul.f32 %v152, %v193
  %v196 = vmul.f32 %v157, %v193
  %v197 = vmul.f32 %v162, %v193
  %v198 = vmul.f32 %v167, %v193
  %v199 = vmul.f32 %v172, %v193
  %v200 = vmul.f32 %v177, %v193
  %v201 = vmul.f32 %v182, %v193
  %v202 = vmul.f32 %v187, %v193
  %v203 = vpack.c.bf16 %v196, %v195
  %v204 = vpack.c.bf16 %v198, %v197
  %v205 = vpack.c.bf16 %v200, %v199
  %v206 = vpack.c.bf16 %v202, %v201
  %v207 = vlaneseq
  %v208 = vshrl.u32 %v207, 7
  %v209 = vsub.s32 0, %v208
  %v210 = vrot.slane %v33, %v209
  %212 = vbcast.lane.b32.xlu0 %v210, 256
  %v213 = vpop.permute.xlu0 %212
  %s215 = sor.u32 256, 8
  %216 = vbcast.lane.b32.xlu0 %v210, %s215
  %v217 = vpop.permute.xlu0 %216
  %v218 = vlaneseq
  %v219 = vshrl.u32 %v218, 7
  %v220 = vsub.s32 1, %v219
  %v221 = vrot.slane %v33, %v220
  %223 = vbcast.lane.b32.xlu0 %v221, 256
  %v224 = vpop.permute.xlu0 %223
  %s226 = sor.u32 256, 8
  %227 = vbcast.lane.b32.xlu0 %v221, %s226
  %v228 = vpop.permute.xlu0 %227
  %v229 = vlaneseq
  %v230 = vshrl.u32 %v229, 7
  %v231 = vsub.s32 2, %v230
  %v232 = vrot.slane %v33, %v231
  %234 = vbcast.lane.b32.xlu0 %v232, 256
  %v235 = vpop.permute.xlu0 %234
  %s237 = sor.u32 256, 8
  %238 = vbcast.lane.b32.xlu0 %v232, %s237
  %v239 = vpop.permute.xlu0 %238
  %v240 = vlaneseq
  %v241 = vshrl.u32 %v240, 7
  %v242 = vsub.s32 3, %v241
  %v243 = vrot.slane %v33, %v242
  %245 = vbcast.lane.b32.xlu0 %v243, 256
  %v246 = vpop.permute.xlu0 %245
  %s248 = sor.u32 256, 8
  %249 = vbcast.lane.b32.xlu0 %v243, %s248
  %v250 = vpop.permute.xlu0 %249
  %v251 = vlaneseq
  %v252 = vshrl.u32 %v251, 7
  %v253 = vsub.s32 4, %v252
  %v254 = vrot.slane %v33, %v253
  %256 = vbcast.lane.b32.xlu0 %v254, 256
  %v257 = vpop.permute.xlu0 %256
  %s259 = sor.u32 256, 8
  %260 = vbcast.lane.b32.xlu0 %v254, %s259
  %v261 = vpop.permute.xlu0 %260
  %v262 = vlaneseq
  %v263 = vshrl.u32 %v262, 7
  %v264 = vsub.s32 5, %v263
  %v265 = vrot.slane %v33, %v264
  %267 = vbcast.lane.b32.xlu0 %v265, 256
  %v268 = vpop.permute.xlu0 %267
  %s270 = sor.u32 256, 8
  %271 = vbcast.lane.b32.xlu0 %v265, %s270
  %v272 = vpop.permute.xlu0 %271
  %v273 = vlaneseq
  %v274 = vshrl.u32 %v273, 7
  %v275 = vsub.s32 6, %v274
  %v276 = vrot.slane %v33, %v275
  %278 = vbcast.lane.b32.xlu0 %v276, 256
  %v279 = vpop.permute.xlu0 %278
  %s281 = sor.u32 256, 8
  %282 = vbcast.lane.b32.xlu0 %v276, %s281
  %v283 = vpop.permute.xlu0 %282
  %v284 = vlaneseq
  %v285 = vshrl.u32 %v284, 7
  %v286 = vsub.s32 7, %v285
  %v287 = vrot.slane %v33, %v286
  %289 = vbcast.lane.b32.xlu0 %v287, 256
  %v290 = vpop.permute.xlu0 %289
  %s292 = sor.u32 256, 8
  %293 = vbcast.lane.b32.xlu0 %v287, %s292
  %v294 = vpop.permute.xlu0 %293
  %v295 = vlaneseq
  %v296 = vshrl.u32 %v295, 7
  %v297 = vsub.s32 0, %v296
  %v298 = vrot.slane %v34, %v297
  %300 = vbcast.lane.b32.xlu0 %v298, 256
  %v301 = vpop.permute.xlu0 %300
  %s303 = sor.u32 256, 8
  %304 = vbcast.lane.b32.xlu0 %v298, %s303
  %v305 = vpop.permute.xlu0 %304
  %v306 = vlaneseq
  %v307 = vshrl.u32 %v306, 7
  %v308 = vsub.s32 1, %v307
  %v309 = vrot.slane %v34, %v308
  %311 = vbcast.lane.b32.xlu0 %v309, 256
  %v312 = vpop.permute.xlu0 %311
  %s314 = sor.u32 256, 8
  %315 = vbcast.lane.b32.xlu0 %v309, %s314
  %v316 = vpop.permute.xlu0 %315
  %v317 = vlaneseq
  %v318 = vshrl.u32 %v317, 7
  %v319 = vsub.s32 2, %v318
  %v320 = vrot.slane %v34, %v319
  %322 = vbcast.lane.b32.xlu0 %v320, 256
  %v323 = vpop.permute.xlu0 %322
  %s325 = sor.u32 256, 8
  %326 = vbcast.lane.b32.xlu0 %v320, %s325
  %v327 = vpop.permute.xlu0 %326
  %v328 = vlaneseq
  %v329 = vshrl.u32 %v328, 7
  %v330 = vsub.s32 3, %v329
  %v331 = vrot.slane %v34, %v330
  %333 = vbcast.lane.b32.xlu0 %v331, 256
  %v334 = vpop.permute.xlu0 %333
  %s336 = sor.u32 256, 8
  %337 = vbcast.lane.b32.xlu0 %v331, %s336
  %v338 = vpop.permute.xlu0 %337
  %v339 = vlaneseq
  %v340 = vshrl.u32 %v339, 7
  %v341 = vsub.s32 4, %v340
  %v342 = vrot.slane %v34, %v341
  %344 = vbcast.lane.b32.xlu0 %v342, 256
  %v345 = vpop.permute.xlu0 %344
  %s347 = sor.u32 256, 8
  %348 = vbcast.lane.b32.xlu0 %v342, %s347
  %v349 = vpop.permute.xlu0 %348
  %v350 = vlaneseq
  %v351 = vshrl.u32 %v350, 7
  %v352 = vsub.s32 5, %v351
  %v353 = vrot.slane %v34, %v352
  %355 = vbcast.lane.b32.xlu0 %v353, 256
  %v356 = vpop.permute.xlu0 %355
  %s358 = sor.u32 256, 8
  %359 = vbcast.lane.b32.xlu0 %v353, %s358
  %v360 = vpop.permute.xlu0 %359
  %v361 = vlaneseq
  %v362 = vshrl.u32 %v361, 7
  %v363 = vsub.s32 6, %v362
  %v364 = vrot.slane %v34, %v363
  %366 = vbcast.lane.b32.xlu0 %v364, 256
  %v367 = vpop.permute.xlu0 %366
  %s369 = sor.u32 256, 8
  %370 = vbcast.lane.b32.xlu0 %v364, %s369
  %v371 = vpop.permute.xlu0 %370
  %v372 = vlaneseq
  %v373 = vshrl.u32 %v372, 7
  %v374 = vsub.s32 7, %v373
  %v375 = vrot.slane %v34, %v374
  %377 = vbcast.lane.b32.xlu0 %v375, 256
  %v378 = vpop.permute.xlu0 %377
  %s380 = sor.u32 256, 8
  %381 = vbcast.lane.b32.xlu0 %v375, %s380
  %v382 = vpop.permute.xlu0 %381
  %v383 = vlaneseq
  %v384 = vshrl.u32 %v383, 7
  %v385 = vsub.s32 0, %v384
  %v386 = vrot.slane %v35, %v385
  %388 = vbcast.lane.b32.xlu0 %v386, 256
  %v389 = vpop.permute.xlu0 %388
  %s391 = sor.u32 256, 8
  %392 = vbcast.lane.b32.xlu0 %v386, %s391
  %v393 = vpop.permute.xlu0 %392
  %v394 = vlaneseq
  %v395 = vshrl.u32 %v394, 7
  %v396 = vsub.s32 1, %v395
  %v397 = vrot.slane %v35, %v396
  %399 = vbcast.lane.b32.xlu0 %v397, 256
  %v400 = vpop.permute.xlu0 %399
  %s402 = sor.u32 256, 8
  %403 = vbcast.lane.b32.xlu0 %v397, %s402
  %v404 = vpop.permute.xlu0 %403
  %v405 = vlaneseq
  %v406 = vshrl.u32 %v405, 7
  %v407 = vsub.s32 2, %v406
  %v408 = vrot.slane %v35, %v407
  %410 = vbcast.lane.b32.xlu0 %v408, 256
  %v411 = vpop.permute.xlu0 %410
  %s413 = sor.u32 256, 8
  %414 = vbcast.lane.b32.xlu0 %v408, %s413
  %v415 = vpop.permute.xlu0 %414
  %v416 = vlaneseq
  %v417 = vshrl.u32 %v416, 7
  %v418 = vsub.s32 3, %v417
  %v419 = vrot.slane %v35, %v418
  %421 = vbcast.lane.b32.xlu0 %v419, 256
  %v422 = vpop.permute.xlu0 %421
  %s424 = sor.u32 256, 8
  %425 = vbcast.lane.b32.xlu0 %v419, %s424
  %v426 = vpop.permute.xlu0 %425
  %v427 = vlaneseq
  %v428 = vshrl.u32 %v427, 7
  %v429 = vsub.s32 4, %v428
  %v430 = vrot.slane %v35, %v429
  %432 = vbcast.lane.b32.xlu0 %v430, 256
  %v433 = vpop.permute.xlu0 %432
  %s435 = sor.u32 256, 8
  %436 = vbcast.lane.b32.xlu0 %v430, %s435
  %v437 = vpop.permute.xlu0 %436
  %v438 = vlaneseq
  %v439 = vshrl.u32 %v438, 7
  %v440 = vsub.s32 5, %v439
  %v441 = vrot.slane %v35, %v440
  %443 = vbcast.lane.b32.xlu0 %v441, 256
  %v444 = vpop.permute.xlu0 %443
  %s446 = sor.u32 256, 8
  %447 = vbcast.lane.b32.xlu0 %v441, %s446
  %v448 = vpop.permute.xlu0 %447
  %v449 = vlaneseq
  %v450 = vshrl.u32 %v449, 7
  %v451 = vsub.s32 6, %v450
  %v452 = vrot.slane %v35, %v451
  %454 = vbcast.lane.b32.xlu0 %v452, 256
  %v455 = vpop.permute.xlu0 %454
  %s457 = sor.u32 256, 8
  %458 = vbcast.lane.b32.xlu0 %v452, %s457
  %v459 = vpop.permute.xlu0 %458
  %v460 = vlaneseq
  %v461 = vshrl.u32 %v460, 7
  %v462 = vsub.s32 7, %v461
  %v463 = vrot.slane %v35, %v462
  %465 = vbcast.lane.b32.xlu0 %v463, 256
  %v466 = vpop.permute.xlu0 %465
  %s468 = sor.u32 256, 8
  %469 = vbcast.lane.b32.xlu0 %v463, %s468
  %v470 = vpop.permute.xlu0 %469
  %v471 = vlaneseq
  %v472 = vshrl.u32 %v471, 7
  %v473 = vsub.s32 0, %v472
  %v474 = vrot.slane %v36, %v473
  %476 = vbcast.lane.b32.xlu0 %v474, 256
  %v477 = vpop.permute.xlu0 %476
  %s479 = sor.u32 256, 8
  %480 = vbcast.lane.b32.xlu0 %v474, %s479
  %v481 = vpop.permute.xlu0 %480
  %v482 = vlaneseq
  %v483 = vshrl.u32 %v482, 7
  %v484 = vsub.s32 1, %v483
  %v485 = vrot.slane %v36, %v484
  %487 = vbcast.lane.b32.xlu0 %v485, 256
  %v488 = vpop.permute.xlu0 %487
  %s490 = sor.u32 256, 8
  %491 = vbcast.lane.b32.xlu0 %v485, %s490
  %v492 = vpop.permute.xlu0 %491
  %v493 = vlaneseq
  %v494 = vshrl.u32 %v493, 7
  %v495 = vsub.s32 2, %v494
  %v496 = vrot.slane %v36, %v495
  %498 = vbcast.lane.b32.xlu0 %v496, 256
  %v499 = vpop.permute.xlu0 %498
  %s501 = sor.u32 256, 8
  %502 = vbcast.lane.b32.xlu0 %v496, %s501
  %v503 = vpop.permute.xlu0 %502
  %v504 = vlaneseq
  %v505 = vshrl.u32 %v504, 7
  %v506 = vsub.s32 3, %v505
  %v507 = vrot.slane %v36, %v506
  %509 = vbcast.lane.b32.xlu0 %v507, 256
  %v510 = vpop.permute.xlu0 %509
  %s512 = sor.u32 256, 8
  %513 = vbcast.lane.b32.xlu0 %v507, %s512
  %v514 = vpop.permute.xlu0 %513
  %v515 = vlaneseq
  %v516 = vshrl.u32 %v515, 7
  %v517 = vsub.s32 4, %v516
  %v518 = vrot.slane %v36, %v517
  %520 = vbcast.lane.b32.xlu0 %v518, 256
  %v521 = vpop.permute.xlu0 %520
  %s523 = sor.u32 256, 8
  %524 = vbcast.lane.b32.xlu0 %v518, %s523
  %v525 = vpop.permute.xlu0 %524
  %v526 = vlaneseq
  %v527 = vshrl.u32 %v526, 7
  %v528 = vsub.s32 5, %v527
  %v529 = vrot.slane %v36, %v528
  %531 = vbcast.lane.b32.xlu0 %v529, 256
  %v532 = vpop.permute.xlu0 %531
  %s534 = sor.u32 256, 8
  %535 = vbcast.lane.b32.xlu0 %v529, %s534
  %v536 = vpop.permute.xlu0 %535
  %v537 = vlaneseq
  %v538 = vshrl.u32 %v537, 7
  %v539 = vsub.s32 6, %v538
  %v540 = vrot.slane %v36, %v539
  %542 = vbcast.lane.b32.xlu0 %v540, 256
  %v543 = vpop.permute.xlu0 %542
  %s545 = sor.u32 256, 8
  %546 = vbcast.lane.b32.xlu0 %v540, %s545
  %v547 = vpop.permute.xlu0 %546
  %v548 = vlaneseq
  %v549 = vshrl.u32 %v548, 7
  %v550 = vsub.s32 7, %v549
  %v551 = vrot.slane %v36, %v550
  %553 = vbcast.lane.b32.xlu0 %v551, 256
  %v554 = vpop.permute.xlu0 %553
  %s556 = sor.u32 256, 8
  %557 = vbcast.lane.b32.xlu0 %v551, %s556
  %v558 = vpop.permute.xlu0 %557
  %v559 = vlaneseq
  %v560 = vshrl.u32 %v559, 7
  %v561 = vsub.s32 0, %v560
  %v562 = vrot.slane %v37, %v561
  %564 = vbcast.lane.b32.xlu0 %v562, 256
  %v565 = vpop.permute.xlu0 %564
  %s567 = sor.u32 256, 8
  %568 = vbcast.lane.b32.xlu0 %v562, %s567
  %v569 = vpop.permute.xlu0 %568
  %v570 = vlaneseq
  %v571 = vshrl.u32 %v570, 7
  %v572 = vsub.s32 1, %v571
  %v573 = vrot.slane %v37, %v572
  %575 = vbcast.lane.b32.xlu0 %v573, 256
  %v576 = vpop.permute.xlu0 %575
  %s578 = sor.u32 256, 8
  %579 = vbcast.lane.b32.xlu0 %v573, %s578
  %v580 = vpop.permute.xlu0 %579
  %v581 = vlaneseq
  %v582 = vshrl.u32 %v581, 7
  %v583 = vsub.s32 2, %v582
  %v584 = vrot.slane %v37, %v583
  %586 = vbcast.lane.b32.xlu0 %v584, 256
  %v587 = vpop.permute.xlu0 %586
  %s589 = sor.u32 256, 8
  %590 = vbcast.lane.b32.xlu0 %v584, %s589
  %v591 = vpop.permute.xlu0 %590
  %v592 = vlaneseq
  %v593 = vshrl.u32 %v592, 7
  %v594 = vsub.s32 3, %v593
  %v595 = vrot.slane %v37, %v594
  %597 = vbcast.lane.b32.xlu0 %v595, 256
  %v598 = vpop.permute.xlu0 %597
  %s600 = sor.u32 256, 8
  %601 = vbcast.lane.b32.xlu0 %v595, %s600
  %v602 = vpop.permute.xlu0 %601
  %v603 = vlaneseq
  %v604 = vshrl.u32 %v603, 7
  %v605 = vsub.s32 4, %v604
  %v606 = vrot.slane %v37, %v605
  %608 = vbcast.lane.b32.xlu0 %v606, 256
  %v609 = vpop.permute.xlu0 %608
  %s611 = sor.u32 256, 8
  %612 = vbcast.lane.b32.xlu0 %v606, %s611
  %v613 = vpop.permute.xlu0 %612
  %v614 = vlaneseq
  %v615 = vshrl.u32 %v614, 7
  %v616 = vsub.s32 5, %v615
  %v617 = vrot.slane %v37, %v616
  %619 = vbcast.lane.b32.xlu0 %v617, 256
  %v620 = vpop.permute.xlu0 %619
  %s622 = sor.u32 256, 8
  %623 = vbcast.lane.b32.xlu0 %v617, %s622
  %v624 = vpop.permute.xlu0 %623
  %v625 = vlaneseq
  %v626 = vshrl.u32 %v625, 7
  %v627 = vsub.s32 6, %v626
  %v628 = vrot.slane %v37, %v627
  %630 = vbcast.lane.b32.xlu0 %v628, 256
  %v631 = vpop.permute.xlu0 %630
  %s633 = sor.u32 256, 8
  %634 = vbcast.lane.b32.xlu0 %v628, %s633
  %v635 = vpop.permute.xlu0 %634
  %v636 = vlaneseq
  %v637 = vshrl.u32 %v636, 7
  %v638 = vsub.s32 7, %v637
  %v639 = vrot.slane %v37, %v638
  %641 = vbcast.lane.b32.xlu0 %v639, 256
  %v642 = vpop.permute.xlu0 %641
  %s644 = sor.u32 256, 8
  %645 = vbcast.lane.b32.xlu0 %v639, %s644
  %v646 = vpop.permute.xlu0 %645
  %v647 = vlaneseq
  %v648 = vshrl.u32 %v647, 7
  %v649 = vsub.s32 0, %v648
  %v650 = vrot.slane %v38, %v649
  %652 = vbcast.lane.b32.xlu0 %v650, 256
  %v653 = vpop.permute.xlu0 %652
  %s655 = sor.u32 256, 8
  %656 = vbcast.lane.b32.xlu0 %v650, %s655
  %v657 = vpop.permute.xlu0 %656
  %v658 = vlaneseq
  %v659 = vshrl.u32 %v658, 7
  %v660 = vsub.s32 1, %v659
  %v661 = vrot.slane %v38, %v660
  %663 = vbcast.lane.b32.xlu0 %v661, 256
  %v664 = vpop.permute.xlu0 %663
  %s666 = sor.u32 256, 8
  %667 = vbcast.lane.b32.xlu0 %v661, %s666
  %v668 = vpop.permute.xlu0 %667
  %v669 = vlaneseq
  %v670 = vshrl.u32 %v669, 7
  %v671 = vsub.s32 2, %v670
  %v672 = vrot.slane %v38, %v671
  %674 = vbcast.lane.b32.xlu0 %v672, 256
  %v675 = vpop.permute.xlu0 %674
  %s677 = sor.u32 256, 8
  %678 = vbcast.lane.b32.xlu0 %v672, %s677
  %v679 = vpop.permute.xlu0 %678
  %v680 = vlaneseq
  %v681 = vshrl.u32 %v680, 7
  %v682 = vsub.s32 3, %v681
  %v683 = vrot.slane %v38, %v682
  %685 = vbcast.lane.b32.xlu0 %v683, 256
  %v686 = vpop.permute.xlu0 %685
  %s688 = sor.u32 256, 8
  %689 = vbcast.lane.b32.xlu0 %v683, %s688
  %v690 = vpop.permute.xlu0 %689
  %v691 = vlaneseq
  %v692 = vshrl.u32 %v691, 7
  %v693 = vsub.s32 4, %v692
  %v694 = vrot.slane %v38, %v693
  %696 = vbcast.lane.b32.xlu0 %v694, 256
  %v697 = vpop.permute.xlu0 %696
  %s699 = sor.u32 256, 8
  %700 = vbcast.lane.b32.xlu0 %v694, %s699
  %v701 = vpop.permute.xlu0 %700
  %v702 = vlaneseq
  %v703 = vshrl.u32 %v702, 7
  %v704 = vsub.s32 5, %v703
  %v705 = vrot.slane %v38, %v704
  %707 = vbcast.lane.b32.xlu0 %v705, 256
  %v708 = vpop.permute.xlu0 %707
  %s710 = sor.u32 256, 8
  %711 = vbcast.lane.b32.xlu0 %v705, %s710
  %v712 = vpop.permute.xlu0 %711
  %v713 = vlaneseq
  %v714 = vshrl.u32 %v713, 7
  %v715 = vsub.s32 6, %v714
  %v716 = vrot.slane %v38, %v715
  %718 = vbcast.lane.b32.xlu0 %v716, 256
  %v719 = vpop.permute.xlu0 %718
  %s721 = sor.u32 256, 8
  %722 = vbcast.lane.b32.xlu0 %v716, %s721
  %v723 = vpop.permute.xlu0 %722
  %v724 = vlaneseq
  %v725 = vshrl.u32 %v724, 7
  %v726 = vsub.s32 7, %v725
  %v727 = vrot.slane %v38, %v726
  %729 = vbcast.lane.b32.xlu0 %v727, 256
  %v730 = vpop.permute.xlu0 %729
  %s732 = sor.u32 256, 8
  %733 = vbcast.lane.b32.xlu0 %v727, %s732
  %v734 = vpop.permute.xlu0 %733
  %v735 = vlaneseq
  %v736 = vshrl.u32 %v735, 7
  %v737 = vsub.s32 0, %v736
  %v738 = vrot.slane %v39, %v737
  %740 = vbcast.lane.b32.xlu0 %v738, 256
  %v741 = vpop.permute.xlu0 %740
  %s743 = sor.u32 256, 8
  %744 = vbcast.lane.b32.xlu0 %v738, %s743
  %v745 = vpop.permute.xlu0 %744
  %v746 = vlaneseq
  %v747 = vshrl.u32 %v746, 7
  %v748 = vsub.s32 1, %v747
  %v749 = vrot.slane %v39, %v748
  %751 = vbcast.lane.b32.xlu0 %v749, 256
  %v752 = vpop.permute.xlu0 %751
  %s754 = sor.u32 256, 8
  %755 = vbcast.lane.b32.xlu0 %v749, %s754
  %v756 = vpop.permute.xlu0 %755
  %v757 = vlaneseq
  %v758 = vshrl.u32 %v757, 7
  %v759 = vsub.s32 2, %v758
  %v760 = vrot.slane %v39, %v759
  %762 = vbcast.lane.b32.xlu0 %v760, 256
  %v763 = vpop.permute.xlu0 %762
  %s765 = sor.u32 256, 8
  %766 = vbcast.lane.b32.xlu0 %v760, %s765
  %v767 = vpop.permute.xlu0 %766
  %v768 = vlaneseq
  %v769 = vshrl.u32 %v768, 7
  %v770 = vsub.s32 3, %v769
  %v771 = vrot.slane %v39, %v770
  %773 = vbcast.lane.b32.xlu0 %v771, 256
  %v774 = vpop.permute.xlu0 %773
  %s776 = sor.u32 256, 8
  %777 = vbcast.lane.b32.xlu0 %v771, %s776
  %v778 = vpop.permute.xlu0 %777
  %v779 = vlaneseq
  %v780 = vshrl.u32 %v779, 7
  %v781 = vsub.s32 4, %v780
  %v782 = vrot.slane %v39, %v781
  %784 = vbcast.lane.b32.xlu0 %v782, 256
  %v785 = vpop.permute.xlu0 %784
  %s787 = sor.u32 256, 8
  %788 = vbcast.lane.b32.xlu0 %v782, %s787
  %v789 = vpop.permute.xlu0 %788
  %v790 = vlaneseq
  %v791 = vshrl.u32 %v790, 7
  %v792 = vsub.s32 5, %v791
  %v793 = vrot.slane %v39, %v792
  %795 = vbcast.lane.b32.xlu0 %v793, 256
  %v796 = vpop.permute.xlu0 %795
  %s798 = sor.u32 256, 8
  %799 = vbcast.lane.b32.xlu0 %v793, %s798
  %v800 = vpop.permute.xlu0 %799
  %v801 = vlaneseq
  %v802 = vshrl.u32 %v801, 7
  %v803 = vsub.s32 6, %v802
  %v804 = vrot.slane %v39, %v803
  %806 = vbcast.lane.b32.xlu0 %v804, 256
  %v807 = vpop.permute.xlu0 %806
  %s809 = sor.u32 256, 8
  %810 = vbcast.lane.b32.xlu0 %v804, %s809
  %v811 = vpop.permute.xlu0 %810
  %v812 = vlaneseq
  %v813 = vshrl.u32 %v812, 7
  %v814 = vsub.s32 7, %v813
  %v815 = vrot.slane %v39, %v814
  %817 = vbcast.lane.b32.xlu0 %v815, 256
  %v818 = vpop.permute.xlu0 %817
  %s820 = sor.u32 256, 8
  %821 = vbcast.lane.b32.xlu0 %v815, %s820
  %v822 = vpop.permute.xlu0 %821
  %v823 = vlaneseq
  %v824 = vshrl.u32 %v823, 7
  %v825 = vsub.s32 0, %v824
  %v826 = vrot.slane %v40, %v825
  %828 = vbcast.lane.b32.xlu0 %v826, 256
  %v829 = vpop.permute.xlu0 %828
  %s831 = sor.u32 256, 8
  %832 = vbcast.lane.b32.xlu0 %v826, %s831
  %v833 = vpop.permute.xlu0 %832
  %v834 = vlaneseq
  %v835 = vshrl.u32 %v834, 7
  %v836 = vsub.s32 1, %v835
  %v837 = vrot.slane %v40, %v836
  %839 = vbcast.lane.b32.xlu0 %v837, 256
  %v840 = vpop.permute.xlu0 %839
  %s842 = sor.u32 256, 8
  %843 = vbcast.lane.b32.xlu0 %v837, %s842
  %v844 = vpop.permute.xlu0 %843
  %v845 = vlaneseq
  %v846 = vshrl.u32 %v845, 7
  %v847 = vsub.s32 2, %v846
  %v848 = vrot.slane %v40, %v847
  %850 = vbcast.lane.b32.xlu0 %v848, 256
  %v851 = vpop.permute.xlu0 %850
  %s853 = sor.u32 256, 8
  %854 = vbcast.lane.b32.xlu0 %v848, %s853
  %v855 = vpop.permute.xlu0 %854
  %v856 = vlaneseq
  %v857 = vshrl.u32 %v856, 7
  %v858 = vsub.s32 3, %v857
  %v859 = vrot.slane %v40, %v858
  %861 = vbcast.lane.b32.xlu0 %v859, 256
  %v862 = vpop.permute.xlu0 %861
  %s864 = sor.u32 256, 8
  %865 = vbcast.lane.b32.xlu0 %v859, %s864
  %v866 = vpop.permute.xlu0 %865
  %v867 = vlaneseq
  %v868 = vshrl.u32 %v867, 7
  %v869 = vsub.s32 4, %v868
  %v870 = vrot.slane %v40, %v869
  %872 = vbcast.lane.b32.xlu0 %v870, 256
  %v873 = vpop.permute.xlu0 %872
  %s875 = sor.u32 256, 8
  %876 = vbcast.lane.b32.xlu0 %v870, %s875
  %v877 = vpop.permute.xlu0 %876
  %v878 = vlaneseq
  %v879 = vshrl.u32 %v878, 7
  %v880 = vsub.s32 5, %v879
  %v881 = vrot.slane %v40, %v880
  %883 = vbcast.lane.b32.xlu0 %v881, 256
  %v884 = vpop.permute.xlu0 %883
  %s886 = sor.u32 256, 8
  %887 = vbcast.lane.b32.xlu0 %v881, %s886
  %v888 = vpop.permute.xlu0 %887
  %v889 = vlaneseq
  %v890 = vshrl.u32 %v889, 7
  %v891 = vsub.s32 6, %v890
  %v892 = vrot.slane %v40, %v891
  %894 = vbcast.lane.b32.xlu0 %v892, 256
  %v895 = vpop.permute.xlu0 %894
  %s897 = sor.u32 256, 8
  %898 = vbcast.lane.b32.xlu0 %v892, %s897
  %v899 = vpop.permute.xlu0 %898
  %v900 = vlaneseq
  %v901 = vshrl.u32 %v900, 7
  %v902 = vsub.s32 7, %v901
  %v903 = vrot.slane %v40, %v902
  %905 = vbcast.lane.b32.xlu0 %v903, 256
  %v906 = vpop.permute.xlu0 %905
  %s908 = sor.u32 256, 8
  %909 = vbcast.lane.b32.xlu0 %v903, %s908
  %v910 = vpop.permute.xlu0 %909
  %v911 = vld [vmem:[%s3] sm:$0xff]
  %v912 = vld [vmem:[%s3 + $0x8] sm:$0xff]
  %v913 = vld [vmem:[%s3 + $0x10] sm:$0xff]
  %v914 = vld [vmem:[%s3 + $0x18] sm:$0xff]
  %v915 = vld [vmem:[%s3 + $0x20] sm:$0xff]
  %v916 = vld [vmem:[%s3 + $0x28] sm:$0xff]
  %v917 = vld [vmem:[%s3 + $0x30] sm:$0xff]
  %v918 = vld [vmem:[%s3 + $0x38] sm:$0xff]
  %v919 = vld [vmem:[%s3 + $0x40] sm:$0xff]
  %v920 = vld [vmem:[%s3 + $0x48] sm:$0xff]
  %v921 = vld [vmem:[%s3 + $0x50] sm:$0xff]
  %v922 = vld [vmem:[%s3 + $0x58] sm:$0xff]
  %v923 = vld [vmem:[%s3 + $0x60] sm:$0xff]
  %v924 = vld [vmem:[%s3 + $0x68] sm:$0xff]
  %v925 = vld [vmem:[%s3 + $0x70] sm:$0xff]
  %v926 = vld [vmem:[%s3 + $0x78] sm:$0xff]
  %v927 = vld [vmem:[%s3 + $0x80] sm:$0xff]
  %v928 = vld [vmem:[%s3 + $0x88] sm:$0xff]
  %v929 = vld [vmem:[%s3 + $0x90] sm:$0xff]
  %v930 = vld [vmem:[%s3 + $0x98] sm:$0xff]
  %v931 = vld [vmem:[%s3 + $0xa0] sm:$0xff]
  %v932 = vld [vmem:[%s3 + $0xa8] sm:$0xff]
  %v933 = vld [vmem:[%s3 + $0xb0] sm:$0xff]
  %v934 = vld [vmem:[%s3 + $0xb8] sm:$0xff]
  %v935 = vld [vmem:[%s3 + $0xc0] sm:$0xff]
  %v936 = vld [vmem:[%s3 + $0xc8] sm:$0xff]
  %v937 = vld [vmem:[%s3 + $0xd0] sm:$0xff]
  %v938 = vld [vmem:[%s3 + $0xd8] sm:$0xff]
  %v939 = vld [vmem:[%s3 + $0xe0] sm:$0xff]
  %v940 = vld [vmem:[%s3 + $0xe8] sm:$0xff]
  %v941 = vld [vmem:[%s3 + $0xf0] sm:$0xff]
  %v942 = vld [vmem:[%s3 + $0xf8] sm:$0xff]
  %v943 = vld [vmem:[%s3 + $0x100] sm:$0xff]
  %v944 = vld [vmem:[%s3 + $0x108] sm:$0xff]
  %v945 = vld [vmem:[%s3 + $0x110] sm:$0xff]
  %v946 = vld [vmem:[%s3 + $0x118] sm:$0xff]
  %v947 = vld [vmem:[%s3 + $0x120] sm:$0xff]
  %v948 = vld [vmem:[%s3 + $0x128] sm:$0xff]
  %v949 = vld [vmem:[%s3 + $0x130] sm:$0xff]
  %v950 = vld [vmem:[%s3 + $0x138] sm:$0xff]
  %v951 = vld [vmem:[%s3 + $0x140] sm:$0xff]
  %v952 = vld [vmem:[%s3 + $0x148] sm:$0xff]
  %v953 = vld [vmem:[%s3 + $0x150] sm:$0xff]
  %v954 = vld [vmem:[%s3 + $0x158] sm:$0xff]
  %v955 = vld [vmem:[%s3 + $0x160] sm:$0xff]
  %v956 = vld [vmem:[%s3 + $0x168] sm:$0xff]
  %v957 = vld [vmem:[%s3 + $0x170] sm:$0xff]
  %v958 = vld [vmem:[%s3 + $0x178] sm:$0xff]
  %v959 = vld [vmem:[%s3 + $0x180] sm:$0xff]
  %v960 = vld [vmem:[%s3 + $0x188] sm:$0xff]
  %v961 = vld [vmem:[%s3 + $0x190] sm:$0xff]
  %v962 = vld [vmem:[%s3 + $0x198] sm:$0xff]
  %v963 = vld [vmem:[%s3 + $0x1a0] sm:$0xff]
  %v964 = vld [vmem:[%s3 + $0x1a8] sm:$0xff]
  %v965 = vld [vmem:[%s3 + $0x1b0] sm:$0xff]
  %v966 = vld [vmem:[%s3 + $0x1b8] sm:$0xff]
  %v967 = vld [vmem:[%s3 + $0x1c0] sm:$0xff]
  %v968 = vld [vmem:[%s3 + $0x1c8] sm:$0xff]
  %v969 = vld [vmem:[%s3 + $0x1d0] sm:$0xff]
  %v970 = vld [vmem:[%s3 + $0x1d8] sm:$0xff]
  %v971 = vld [vmem:[%s3 + $0x1e0] sm:$0xff]
  %v972 = vld [vmem:[%s3 + $0x1e8] sm:$0xff]
  %v973 = vld [vmem:[%s3 + $0x1f0] sm:$0xff]
  %v974 = vld [vmem:[%s3 + $0x1f8] sm:$0xff]
  %v975 = vld [vmem:[%s3 + $0x200] sm:$0xff]
  %v976 = vld [vmem:[%s3 + $0x208] sm:$0xff]
  %v977 = vld [vmem:[%s3 + $0x210] sm:$0xff]
  %v978 = vld [vmem:[%s3 + $0x218] sm:$0xff]
  %v979 = vld [vmem:[%s3 + $0x220] sm:$0xff]
  %v980 = vld [vmem:[%s3 + $0x228] sm:$0xff]
  %v981 = vld [vmem:[%s3 + $0x230] sm:$0xff]
  %v982 = vld [vmem:[%s3 + $0x238] sm:$0xff]
  %v983 = vld [vmem:[%s3 + $0x240] sm:$0xff]
  %v984 = vld [vmem:[%s3 + $0x248] sm:$0xff]
  %v985 = vld [vmem:[%s3 + $0x250] sm:$0xff]
  %v986 = vld [vmem:[%s3 + $0x258] sm:$0xff]
  %v987 = vld [vmem:[%s3 + $0x260] sm:$0xff]
  %v988 = vld [vmem:[%s3 + $0x268] sm:$0xff]
  %v989 = vld [vmem:[%s3 + $0x270] sm:$0xff]
  %v990 = vld [vmem:[%s3 + $0x278] sm:$0xff]
  %v991 = vld [vmem:[%s3 + $0x280] sm:$0xff]
  %v992 = vld [vmem:[%s3 + $0x288] sm:$0xff]
  %v993 = vld [vmem:[%s3 + $0x290] sm:$0xff]
  %v994 = vld [vmem:[%s3 + $0x298] sm:$0xff]
  %v995 = vld [vmem:[%s3 + $0x2a0] sm:$0xff]
  %v996 = vld [vmem:[%s3 + $0x2a8] sm:$0xff]
  %v997 = vld [vmem:[%s3 + $0x2b0] sm:$0xff]
  %v998 = vld [vmem:[%s3 + $0x2b8] sm:$0xff]
  %v999 = vld [vmem:[%s3 + $0x2c0] sm:$0xff]
  %v1000 = vld [vmem:[%s3 + $0x2c8] sm:$0xff]
  %v1001 = vld [vmem:[%s3 + $0x2d0] sm:$0xff]
  %v1002 = vld [vmem:[%s3 + $0x2d8] sm:$0xff]
  %v1003 = vld [vmem:[%s3 + $0x2e0] sm:$0xff]
  %v1004 = vld [vmem:[%s3 + $0x2e8] sm:$0xff]
  %v1005 = vld [vmem:[%s3 + $0x2f0] sm:$0xff]
  %v1006 = vld [vmem:[%s3 + $0x2f8] sm:$0xff]
  %v1007 = vld [vmem:[%s3 + $0x300] sm:$0xff]
  %v1008 = vld [vmem:[%s3 + $0x308] sm:$0xff]
  %v1009 = vld [vmem:[%s3 + $0x310] sm:$0xff]
  %v1010 = vld [vmem:[%s3 + $0x318] sm:$0xff]
  %v1011 = vld [vmem:[%s3 + $0x320] sm:$0xff]
  %v1012 = vld [vmem:[%s3 + $0x328] sm:$0xff]
  %v1013 = vld [vmem:[%s3 + $0x330] sm:$0xff]
  %v1014 = vld [vmem:[%s3 + $0x338] sm:$0xff]
  %v1015 = vld [vmem:[%s3 + $0x340] sm:$0xff]
  %v1016 = vld [vmem:[%s3 + $0x348] sm:$0xff]
  %v1017 = vld [vmem:[%s3 + $0x350] sm:$0xff]
  %v1018 = vld [vmem:[%s3 + $0x358] sm:$0xff]
  %v1019 = vld [vmem:[%s3 + $0x360] sm:$0xff]
  %v1020 = vld [vmem:[%s3 + $0x368] sm:$0xff]
  %v1021 = vld [vmem:[%s3 + $0x370] sm:$0xff]
  %v1022 = vld [vmem:[%s3 + $0x378] sm:$0xff]
  %v1023 = vld [vmem:[%s3 + $0x380] sm:$0xff]
  %v1024 = vld [vmem:[%s3 + $0x388] sm:$0xff]
  %v1025 = vld [vmem:[%s3 + $0x390] sm:$0xff]
  %v1026 = vld [vmem:[%s3 + $0x398] sm:$0xff]
  %v1027 = vld [vmem:[%s3 + $0x3a0] sm:$0xff]
  %v1028 = vld [vmem:[%s3 + $0x3a8] sm:$0xff]
  %v1029 = vld [vmem:[%s3 + $0x3b0] sm:$0xff]
  %v1030 = vld [vmem:[%s3 + $0x3b8] sm:$0xff]
  %v1031 = vld [vmem:[%s3 + $0x3c0] sm:$0xff]
  %v1032 = vld [vmem:[%s3 + $0x3c8] sm:$0xff]
  %v1033 = vld [vmem:[%s3 + $0x3d0] sm:$0xff]
  %v1034 = vld [vmem:[%s3 + $0x3d8] sm:$0xff]
  %v1035 = vld [vmem:[%s3 + $0x3e0] sm:$0xff]
  %v1036 = vld [vmem:[%s3 + $0x3e8] sm:$0xff]
  %v1037 = vld [vmem:[%s3 + $0x3f0] sm:$0xff]
  %v1038 = vld [vmem:[%s3 + $0x3f8] sm:$0xff]
  %v1039 = vmul.f32 %v213, %v911
  %v1040 = vmul.f32 %v217, %v912
  %v1041 = vmul.f32 %v224, %v913
  %v1042 = vmul.f32 %v228, %v914
  %v1043 = vmul.f32 %v235, %v915
  %v1044 = vmul.f32 %v239, %v916
  %v1045 = vmul.f32 %v246, %v917
  %v1046 = vmul.f32 %v250, %v918
  %v1047 = vmul.f32 %v257, %v919
  %v1048 = vmul.f32 %v261, %v920
  %v1049 = vmul.f32 %v268, %v921
  %v1050 = vmul.f32 %v272, %v922
  %v1051 = vmul.f32 %v279, %v923
  %v1052 = vmul.f32 %v283, %v924
  %v1053 = vmul.f32 %v290, %v925
  %v1054 = vmul.f32 %v294, %v926
  %v1055 = vmul.f32 %v301, %v927
  %v1056 = vmul.f32 %v305, %v928
  %v1057 = vmul.f32 %v312, %v929
  %v1058 = vmul.f32 %v316, %v930
  %v1059 = vmul.f32 %v323, %v931
  %v1060 = vmul.f32 %v327, %v932
  %v1061 = vmul.f32 %v334, %v933
  %v1062 = vmul.f32 %v338, %v934
  %v1063 = vmul.f32 %v345, %v935
  %v1064 = vmul.f32 %v349, %v936
  %v1065 = vmul.f32 %v356, %v937
  %v1066 = vmul.f32 %v360, %v938
  %v1067 = vmul.f32 %v367, %v939
  %v1068 = vmul.f32 %v371, %v940
  %v1069 = vmul.f32 %v378, %v941
  %v1070 = vmul.f32 %v382, %v942
  %v1071 = vmul.f32 %v389, %v943
  %v1072 = vmul.f32 %v393, %v944
  %v1073 = vmul.f32 %v400, %v945
  %v1074 = vmul.f32 %v404, %v946
  %v1075 = vmul.f32 %v411, %v947
  %v1076 = vmul.f32 %v415, %v948
  %v1077 = vmul.f32 %v422, %v949
  %v1078 = vmul.f32 %v426, %v950
  %v1079 = vmul.f32 %v433, %v951
  %v1080 = vmul.f32 %v437, %v952
  %v1081 = vmul.f32 %v444, %v953
  %v1082 = vmul.f32 %v448, %v954
  %v1083 = vmul.f32 %v455, %v955
  %v1084 = vmul.f32 %v459, %v956
  %v1085 = vmul.f32 %v466, %v957
  %v1086 = vmul.f32 %v470, %v958
  %v1087 = vmul.f32 %v477, %v959
  %v1088 = vmul.f32 %v481, %v960
  %v1089 = vmul.f32 %v488, %v961
  %v1090 = vmul.f32 %v492, %v962
  %v1091 = vmul.f32 %v499, %v963
  %v1092 = vmul.f32 %v503, %v964
  %v1093 = vmul.f32 %v510, %v965
  %v1094 = vmul.f32 %v514, %v966
  %v1095 = vmul.f32 %v521, %v967
  %v1096 = vmul.f32 %v525, %v968
  %v1097 = vmul.f32 %v532, %v969
  %v1098 = vmul.f32 %v536, %v970
  %v1099 = vmul.f32 %v543, %v971
  %v1100 = vmul.f32 %v547, %v972
  %v1101 = vmul.f32 %v554, %v973
  %v1102 = vmul.f32 %v558, %v974
  %v1103 = vmul.f32 %v565, %v975
  %v1104 = vmul.f32 %v569, %v976
  %v1105 = vmul.f32 %v576, %v977
  %v1106 = vmul.f32 %v580, %v978
  %v1107 = vmul.f32 %v587, %v979
  %v1108 = vmul.f32 %v591, %v980
  %v1109 = vmul.f32 %v598, %v981
  %v1110 = vmul.f32 %v602, %v982
  %v1111 = vmul.f32 %v609, %v983
  %v1112 = vmul.f32 %v613, %v984
  %v1113 = vmul.f32 %v620, %v985
  %v1114 = vmul.f32 %v624, %v986
  %v1115 = vmul.f32 %v631, %v987
  %v1116 = vmul.f32 %v635, %v988
  %v1117 = vmul.f32 %v642, %v989
  %v1118 = vmul.f32 %v646, %v990
  %v1119 = vmul.f32 %v653, %v991
  %v1120 = vmul.f32 %v657, %v992
  %v1121 = vmul.f32 %v664, %v993
  %v1122 = vmul.f32 %v668, %v994
  %v1123 = vmul.f32 %v675, %v995
  %v1124 = vmul.f32 %v679, %v996
  %v1125 = vmul.f32 %v686, %v997
  %v1126 = vmul.f32 %v690, %v998
  %v1127 = vmul.f32 %v697, %v999
  %v1128 = vmul.f32 %v701, %v1000
  %v1129 = vmul.f32 %v708, %v1001
  %v1130 = vmul.f32 %v712, %v1002
  %v1131 = vmul.f32 %v719, %v1003
  %v1132 = vmul.f32 %v723, %v1004
  %v1133 = vmul.f32 %v730, %v1005
  %v1134 = vmul.f32 %v734, %v1006
  %v1135 = vmul.f32 %v741, %v1007
  %v1136 = vmul.f32 %v745, %v1008
  %v1137 = vmul.f32 %v752, %v1009
  %v1138 = vmul.f32 %v756, %v1010
  %v1139 = vmul.f32 %v763, %v1011
  %v1140 = vmul.f32 %v767, %v1012
  %v1141 = vmul.f32 %v774, %v1013
  %v1142 = vmul.f32 %v778, %v1014
  %v1143 = vmul.f32 %v785, %v1015
  %v1144 = vmul.f32 %v789, %v1016
  %v1145 = vmul.f32 %v796, %v1017
  %v1146 = vmul.f32 %v800, %v1018
  %v1147 = vmul.f32 %v807, %v1019
  %v1148 = vmul.f32 %v811, %v1020
  %v1149 = vmul.f32 %v818, %v1021
  %v1150 = vmul.f32 %v822, %v1022
  %v1151 = vmul.f32 %v829, %v1023
  %v1152 = vmul.f32 %v833, %v1024
  %v1153 = vmul.f32 %v840, %v1025
  %v1154 = vmul.f32 %v844, %v1026
  %v1155 = vmul.f32 %v851, %v1027
  %v1156 = vmul.f32 %v855, %v1028
  %v1157 = vmul.f32 %v862, %v1029
  %v1158 = vmul.f32 %v866, %v1030
  %v1159 = vmul.f32 %v873, %v1031
  %v1160 = vmul.f32 %v877, %v1032
  %v1161 = vmul.f32 %v884, %v1033
  %v1162 = vmul.f32 %v888, %v1034
  %v1163 = vmul.f32 %v895, %v1035
  %v1164 = vmul.f32 %v899, %v1036
  %v1165 = vmul.f32 %v906, %v1037
  %v1166 = vmul.f32 %v910, %v1038
  %vm1167 = vcmask 48128
  %v1168 = vsel %vm1167, %v1039, 0.0
  %v1169 = vsel %vm1167, %v1040, 0.0
  %v1170 = vadd.f32 %v1168, %v1169
  %v1171 = vrot.slane %v1170, 4
  %v1172 = vadd.f32 %v1170, %v1171
  %v1173 = vrot.slane %v1172, 2
  %v1174 = vadd.f32 %v1172, %v1173
  %v1175 = vrot.slane %v1174, 1
  %v1176 = vadd.f32 %v1174, %v1175
  %v1177 = vsel %vm1167, %v1041, 0.0
  %v1178 = vsel %vm1167, %v1042, 0.0
  %v1179 = vadd.f32 %v1177, %v1178
  %v1180 = vrot.slane %v1179, 4
  %v1181 = vadd.f32 %v1179, %v1180
  %v1182 = vrot.slane %v1181, 2
  %v1183 = vadd.f32 %v1181, %v1182
  %v1184 = vrot.slane %v1183, 1
  %v1185 = vadd.f32 %v1183, %v1184
  %v1186 = vsel %vm1167, %v1043, 0.0
  %v1187 = vsel %vm1167, %v1044, 0.0
  %v1188 = vadd.f32 %v1186, %v1187
  %v1189 = vrot.slane %v1188, 4
  %v1190 = vadd.f32 %v1188, %v1189
  %v1191 = vrot.slane %v1190, 2
  %v1192 = vadd.f32 %v1190, %v1191
  %v1193 = vrot.slane %v1192, 1
  %v1194 = vadd.f32 %v1192, %v1193
  %v1195 = vsel %vm1167, %v1045, 0.0
  %v1196 = vsel %vm1167, %v1046, 0.0
  %v1197 = vadd.f32 %v1195, %v1196
  %v1198 = vrot.slane %v1197, 4
  %v1199 = vadd.f32 %v1197, %v1198
  %v1200 = vrot.slane %v1199, 2
  %v1201 = vadd.f32 %v1199, %v1200
  %v1202 = vrot.slane %v1201, 1
  %v1203 = vadd.f32 %v1201, %v1202
  %v1204 = vsel %vm1167, %v1047, 0.0
  %v1205 = vsel %vm1167, %v1048, 0.0
  %v1206 = vadd.f32 %v1204, %v1205
  %v1207 = vrot.slane %v1206, 4
  %v1208 = vadd.f32 %v1206, %v1207
  %v1209 = vrot.slane %v1208, 2
  %v1210 = vadd.f32 %v1208, %v1209
  %v1211 = vrot.slane %v1210, 1
  %v1212 = vadd.f32 %v1210, %v1211
  %v1213 = vsel %vm1167, %v1049, 0.0
  %v1214 = vsel %vm1167, %v1050, 0.0
  %v1215 = vadd.f32 %v1213, %v1214
  %v1216 = vrot.slane %v1215, 4
  %v1217 = vadd.f32 %v1215, %v1216
  %v1218 = vrot.slane %v1217, 2
  %v1219 = vadd.f32 %v1217, %v1218
  %v1220 = vrot.slane %v1219, 1
  %v1221 = vadd.f32 %v1219, %v1220
  %v1222 = vsel %vm1167, %v1051, 0.0
  %v1223 = vsel %vm1167, %v1052, 0.0
  %v1224 = vadd.f32 %v1222, %v1223
  %v1225 = vrot.slane %v1224, 4
  %v1226 = vadd.f32 %v1224, %v1225
  %v1227 = vrot.slane %v1226, 2
  %v1228 = vadd.f32 %v1226, %v1227
  %v1229 = vrot.slane %v1228, 1
  %v1230 = vadd.f32 %v1228, %v1229
  %v1231 = vsel %vm1167, %v1053, 0.0
  %v1232 = vsel %vm1167, %v1054, 0.0
  %v1233 = vadd.f32 %v1231, %v1232
  %v1234 = vrot.slane %v1233, 4
  %v1235 = vadd.f32 %v1233, %v1234
  %v1236 = vrot.slane %v1235, 2
  %v1237 = vadd.f32 %v1235, %v1236
  %v1238 = vrot.slane %v1237, 1
  %v1239 = vadd.f32 %v1237, %v1238
  %v1240 = vsel %vm1167, %v1055, 0.0
  %v1241 = vsel %vm1167, %v1056, 0.0
  %v1242 = vadd.f32 %v1240, %v1241
  %v1243 = vrot.slane %v1242, 4
  %v1244 = vadd.f32 %v1242, %v1243
  %v1245 = vrot.slane %v1244, 2
  %v1246 = vadd.f32 %v1244, %v1245
  %v1247 = vrot.slane %v1246, 1
  %v1248 = vadd.f32 %v1246, %v1247
  %v1249 = vsel %vm1167, %v1057, 0.0
  %v1250 = vsel %vm1167, %v1058, 0.0
  %v1251 = vadd.f32 %v1249, %v1250
  %v1252 = vrot.slane %v1251, 4
  %v1253 = vadd.f32 %v1251, %v1252
  %v1254 = vrot.slane %v1253, 2
  %v1255 = vadd.f32 %v1253, %v1254
  %v1256 = vrot.slane %v1255, 1
  %v1257 = vadd.f32 %v1255, %v1256
  %v1258 = vsel %vm1167, %v1059, 0.0
  %v1259 = vsel %vm1167, %v1060, 0.0
  %v1260 = vadd.f32 %v1258, %v1259
  %v1261 = vrot.slane %v1260, 4
  %v1262 = vadd.f32 %v1260, %v1261
  %v1263 = vrot.slane %v1262, 2
  %v1264 = vadd.f32 %v1262, %v1263
  %v1265 = vrot.slane %v1264, 1
  %v1266 = vadd.f32 %v1264, %v1265
  %v1267 = vsel %vm1167, %v1061, 0.0
  %v1268 = vsel %vm1167, %v1062, 0.0
  %v1269 = vadd.f32 %v1267, %v1268
  %v1270 = vrot.slane %v1269, 4
  %v1271 = vadd.f32 %v1269, %v1270
  %v1272 = vrot.slane %v1271, 2
  %v1273 = vadd.f32 %v1271, %v1272
  %v1274 = vrot.slane %v1273, 1
  %v1275 = vadd.f32 %v1273, %v1274
  %v1276 = vsel %vm1167, %v1063, 0.0
  %v1277 = vsel %vm1167, %v1064, 0.0
  %v1278 = vadd.f32 %v1276, %v1277
  %v1279 = vrot.slane %v1278, 4
  %v1280 = vadd.f32 %v1278, %v1279
  %v1281 = vrot.slane %v1280, 2
  %v1282 = vadd.f32 %v1280, %v1281
  %v1283 = vrot.slane %v1282, 1
  %v1284 = vadd.f32 %v1282, %v1283
  %v1285 = vsel %vm1167, %v1065, 0.0
  %v1286 = vsel %vm1167, %v1066, 0.0
  %v1287 = vadd.f32 %v1285, %v1286
  %v1288 = vrot.slane %v1287, 4
  %v1289 = vadd.f32 %v1287, %v1288
  %v1290 = vrot.slane %v1289, 2
  %v1291 = vadd.f32 %v1289, %v1290
  %v1292 = vrot.slane %v1291, 1
  %v1293 = vadd.f32 %v1291, %v1292
  %v1294 = vsel %vm1167, %v1067, 0.0
  %v1295 = vsel %vm1167, %v1068, 0.0
  %v1296 = vadd.f32 %v1294, %v1295
  %v1297 = vrot.slane %v1296, 4
  %v1298 = vadd.f32 %v1296, %v1297
  %v1299 = vrot.slane %v1298, 2
  %v1300 = vadd.f32 %v1298, %v1299
  %v1301 = vrot.slane %v1300, 1
  %v1302 = vadd.f32 %v1300, %v1301
  %v1303 = vsel %vm1167, %v1069, 0.0
  %v1304 = vsel %vm1167, %v1070, 0.0
  %v1305 = vadd.f32 %v1303, %v1304
  %v1306 = vrot.slane %v1305, 4
  %v1307 = vadd.f32 %v1305, %v1306
  %v1308 = vrot.slane %v1307, 2
  %v1309 = vadd.f32 %v1307, %v1308
  %v1310 = vrot.slane %v1309, 1
  %v1311 = vadd.f32 %v1309, %v1310
  %v1312 = vsel %vm1167, %v1071, 0.0
  %v1313 = vsel %vm1167, %v1072, 0.0
  %v1314 = vadd.f32 %v1312, %v1313
  %v1315 = vrot.slane %v1314, 4
  %v1316 = vadd.f32 %v1314, %v1315
  %v1317 = vrot.slane %v1316, 2
  %v1318 = vadd.f32 %v1316, %v1317
  %v1319 = vrot.slane %v1318, 1
  %v1320 = vadd.f32 %v1318, %v1319
  %v1321 = vsel %vm1167, %v1073, 0.0
  %v1322 = vsel %vm1167, %v1074, 0.0
  %v1323 = vadd.f32 %v1321, %v1322
  %v1324 = vrot.slane %v1323, 4
  %v1325 = vadd.f32 %v1323, %v1324
  %v1326 = vrot.slane %v1325, 2
  %v1327 = vadd.f32 %v1325, %v1326
  %v1328 = vrot.slane %v1327, 1
  %v1329 = vadd.f32 %v1327, %v1328
  %v1330 = vsel %vm1167, %v1075, 0.0
  %v1331 = vsel %vm1167, %v1076, 0.0
  %v1332 = vadd.f32 %v1330, %v1331
  %v1333 = vrot.slane %v1332, 4
  %v1334 = vadd.f32 %v1332, %v1333
  %v1335 = vrot.slane %v1334, 2
  %v1336 = vadd.f32 %v1334, %v1335
  %v1337 = vrot.slane %v1336, 1
  %v1338 = vadd.f32 %v1336, %v1337
  %v1339 = vsel %vm1167, %v1077, 0.0
  %v1340 = vsel %vm1167, %v1078, 0.0
  %v1341 = vadd.f32 %v1339, %v1340
  %v1342 = vrot.slane %v1341, 4
  %v1343 = vadd.f32 %v1341, %v1342
  %v1344 = vrot.slane %v1343, 2
  %v1345 = vadd.f32 %v1343, %v1344
  %v1346 = vrot.slane %v1345, 1
  %v1347 = vadd.f32 %v1345, %v1346
  %v1348 = vsel %vm1167, %v1079, 0.0
  %v1349 = vsel %vm1167, %v1080, 0.0
  %v1350 = vadd.f32 %v1348, %v1349
  %v1351 = vrot.slane %v1350, 4
  %v1352 = vadd.f32 %v1350, %v1351
  %v1353 = vrot.slane %v1352, 2
  %v1354 = vadd.f32 %v1352, %v1353
  %v1355 = vrot.slane %v1354, 1
  %v1356 = vadd.f32 %v1354, %v1355
  %v1357 = vsel %vm1167, %v1081, 0.0
  %v1358 = vsel %vm1167, %v1082, 0.0
  %v1359 = vadd.f32 %v1357, %v1358
  %v1360 = vrot.slane %v1359, 4
  %v1361 = vadd.f32 %v1359, %v1360
  %v1362 = vrot.slane %v1361, 2
  %v1363 = vadd.f32 %v1361, %v1362
  %v1364 = vrot.slane %v1363, 1
  %v1365 = vadd.f32 %v1363, %v1364
  %v1366 = vsel %vm1167, %v1083, 0.0
  %v1367 = vsel %vm1167, %v1084, 0.0
  %v1368 = vadd.f32 %v1366, %v1367
  %v1369 = vrot.slane %v1368, 4
  %v1370 = vadd.f32 %v1368, %v1369
  %v1371 = vrot.slane %v1370, 2
  %v1372 = vadd.f32 %v1370, %v1371
  %v1373 = vrot.slane %v1372, 1
  %v1374 = vadd.f32 %v1372, %v1373
  %v1375 = vsel %vm1167, %v1085, 0.0
  %v1376 = vsel %vm1167, %v1086, 0.0
  %v1377 = vadd.f32 %v1375, %v1376
  %v1378 = vrot.slane %v1377, 4
  %v1379 = vadd.f32 %v1377, %v1378
  %v1380 = vrot.slane %v1379, 2
  %v1381 = vadd.f32 %v1379, %v1380
  %v1382 = vrot.slane %v1381, 1
  %v1383 = vadd.f32 %v1381, %v1382
  %v1384 = vsel %vm1167, %v1087, 0.0
  %v1385 = vsel %vm1167, %v1088, 0.0
  %v1386 = vadd.f32 %v1384, %v1385
  %v1387 = vrot.slane %v1386, 4
  %v1388 = vadd.f32 %v1386, %v1387
  %v1389 = vrot.slane %v1388, 2
  %v1390 = vadd.f32 %v1388, %v1389
  %v1391 = vrot.slane %v1390, 1
  %v1392 = vadd.f32 %v1390, %v1391
  %v1393 = vsel %vm1167, %v1089, 0.0
  %v1394 = vsel %vm1167, %v1090, 0.0
  %v1395 = vadd.f32 %v1393, %v1394
  %v1396 = vrot.slane %v1395, 4
  %v1397 = vadd.f32 %v1395, %v1396
  %v1398 = vrot.slane %v1397, 2
  %v1399 = vadd.f32 %v1397, %v1398
  %v1400 = vrot.slane %v1399, 1
  %v1401 = vadd.f32 %v1399, %v1400
  %v1402 = vsel %vm1167, %v1091, 0.0
  %v1403 = vsel %vm1167, %v1092, 0.0
  %v1404 = vadd.f32 %v1402, %v1403
  %v1405 = vrot.slane %v1404, 4
  %v1406 = vadd.f32 %v1404, %v1405
  %v1407 = vrot.slane %v1406, 2
  %v1408 = vadd.f32 %v1406, %v1407
  %v1409 = vrot.slane %v1408, 1
  %v1410 = vadd.f32 %v1408, %v1409
  %v1411 = vsel %vm1167, %v1093, 0.0
  %v1412 = vsel %vm1167, %v1094, 0.0
  %v1413 = vadd.f32 %v1411, %v1412
  %v1414 = vrot.slane %v1413, 4
  %v1415 = vadd.f32 %v1413, %v1414
  %v1416 = vrot.slane %v1415, 2
  %v1417 = vadd.f32 %v1415, %v1416
  %v1418 = vrot.slane %v1417, 1
  %v1419 = vadd.f32 %v1417, %v1418
  %v1420 = vsel %vm1167, %v1095, 0.0
  %v1421 = vsel %vm1167, %v1096, 0.0
  %v1422 = vadd.f32 %v1420, %v1421
  %v1423 = vrot.slane %v1422, 4
  %v1424 = vadd.f32 %v1422, %v1423
  %v1425 = vrot.slane %v1424, 2
  %v1426 = vadd.f32 %v1424, %v1425
  %v1427 = vrot.slane %v1426, 1
  %v1428 = vadd.f32 %v1426, %v1427
  %v1429 = vsel %vm1167, %v1097, 0.0
  %v1430 = vsel %vm1167, %v1098, 0.0
  %v1431 = vadd.f32 %v1429, %v1430
  %v1432 = vrot.slane %v1431, 4
  %v1433 = vadd.f32 %v1431, %v1432
  %v1434 = vrot.slane %v1433, 2
  %v1435 = vadd.f32 %v1433, %v1434
  %v1436 = vrot.slane %v1435, 1
  %v1437 = vadd.f32 %v1435, %v1436
  %v1438 = vsel %vm1167, %v1099, 0.0
  %v1439 = vsel %vm1167, %v1100, 0.0
  %v1440 = vadd.f32 %v1438, %v1439
  %v1441 = vrot.slane %v1440, 4
  %v1442 = vadd.f32 %v1440, %v1441
  %v1443 = vrot.slane %v1442, 2
  %v1444 = vadd.f32 %v1442, %v1443
  %v1445 = vrot.slane %v1444, 1
  %v1446 = vadd.f32 %v1444, %v1445
  %v1447 = vsel %vm1167, %v1101, 0.0
  %v1448 = vsel %vm1167, %v1102, 0.0
  %v1449 = vadd.f32 %v1447, %v1448
  %v1450 = vrot.slane %v1449, 4
  %v1451 = vadd.f32 %v1449, %v1450
  %v1452 = vrot.slane %v1451, 2
  %v1453 = vadd.f32 %v1451, %v1452
  %v1454 = vrot.slane %v1453, 1
  %v1455 = vadd.f32 %v1453, %v1454
  %v1456 = vsel %vm1167, %v1103, 0.0
  %v1457 = vsel %vm1167, %v1104, 0.0
  %v1458 = vadd.f32 %v1456, %v1457
  %v1459 = vrot.slane %v1458, 4
  %v1460 = vadd.f32 %v1458, %v1459
  %v1461 = vrot.slane %v1460, 2
  %v1462 = vadd.f32 %v1460, %v1461
  %v1463 = vrot.slane %v1462, 1
  %v1464 = vadd.f32 %v1462, %v1463
  %v1465 = vsel %vm1167, %v1105, 0.0
  %v1466 = vsel %vm1167, %v1106, 0.0
  %v1467 = vadd.f32 %v1465, %v1466
  %v1468 = vrot.slane %v1467, 4
  %v1469 = vadd.f32 %v1467, %v1468
  %v1470 = vrot.slane %v1469, 2
  %v1471 = vadd.f32 %v1469, %v1470
  %v1472 = vrot.slane %v1471, 1
  %v1473 = vadd.f32 %v1471, %v1472
  %v1474 = vsel %vm1167, %v1107, 0.0
  %v1475 = vsel %vm1167, %v1108, 0.0
  %v1476 = vadd.f32 %v1474, %v1475
  %v1477 = vrot.slane %v1476, 4
  %v1478 = vadd.f32 %v1476, %v1477
  %v1479 = vrot.slane %v1478, 2
  %v1480 = vadd.f32 %v1478, %v1479
  %v1481 = vrot.slane %v1480, 1
  %v1482 = vadd.f32 %v1480, %v1481
  %v1483 = vsel %vm1167, %v1109, 0.0
  %v1484 = vsel %vm1167, %v1110, 0.0
  %v1485 = vadd.f32 %v1483, %v1484
  %v1486 = vrot.slane %v1485, 4
  %v1487 = vadd.f32 %v1485, %v1486
  %v1488 = vrot.slane %v1487, 2
  %v1489 = vadd.f32 %v1487, %v1488
  %v1490 = vrot.slane %v1489, 1
  %v1491 = vadd.f32 %v1489, %v1490
  %v1492 = vsel %vm1167, %v1111, 0.0
  %v1493 = vsel %vm1167, %v1112, 0.0
  %v1494 = vadd.f32 %v1492, %v1493
  %v1495 = vrot.slane %v1494, 4
  %v1496 = vadd.f32 %v1494, %v1495
  %v1497 = vrot.slane %v1496, 2
  %v1498 = vadd.f32 %v1496, %v1497
  %v1499 = vrot.slane %v1498, 1
  %v1500 = vadd.f32 %v1498, %v1499
  %v1501 = vsel %vm1167, %v1113, 0.0
  %v1502 = vsel %vm1167, %v1114, 0.0
  %v1503 = vadd.f32 %v1501, %v1502
  %v1504 = vrot.slane %v1503, 4
  %v1505 = vadd.f32 %v1503, %v1504
  %v1506 = vrot.slane %v1505, 2
  %v1507 = vadd.f32 %v1505, %v1506
  %v1508 = vrot.slane %v1507, 1
  %v1509 = vadd.f32 %v1507, %v1508
  %v1510 = vsel %vm1167, %v1115, 0.0
  %v1511 = vsel %vm1167, %v1116, 0.0
  %v1512 = vadd.f32 %v1510, %v1511
  %v1513 = vrot.slane %v1512, 4
  %v1514 = vadd.f32 %v1512, %v1513
  %v1515 = vrot.slane %v1514, 2
  %v1516 = vadd.f32 %v1514, %v1515
  %v1517 = vrot.slane %v1516, 1
  %v1518 = vadd.f32 %v1516, %v1517
  %v1519 = vsel %vm1167, %v1117, 0.0
  %v1520 = vsel %vm1167, %v1118, 0.0
  %v1521 = vadd.f32 %v1519, %v1520
  %v1522 = vrot.slane %v1521, 4
  %v1523 = vadd.f32 %v1521, %v1522
  %v1524 = vrot.slane %v1523, 2
  %v1525 = vadd.f32 %v1523, %v1524
  %v1526 = vrot.slane %v1525, 1
  %v1527 = vadd.f32 %v1525, %v1526
  %v1528 = vsel %vm1167, %v1119, 0.0
  %v1529 = vsel %vm1167, %v1120, 0.0
  %v1530 = vadd.f32 %v1528, %v1529
  %v1531 = vrot.slane %v1530, 4
  %v1532 = vadd.f32 %v1530, %v1531
  %v1533 = vrot.slane %v1532, 2
  %v1534 = vadd.f32 %v1532, %v1533
  %v1535 = vrot.slane %v1534, 1
  %v1536 = vadd.f32 %v1534, %v1535
  %v1537 = vsel %vm1167, %v1121, 0.0
  %v1538 = vsel %vm1167, %v1122, 0.0
  %v1539 = vadd.f32 %v1537, %v1538
  %v1540 = vrot.slane %v1539, 4
  %v1541 = vadd.f32 %v1539, %v1540
  %v1542 = vrot.slane %v1541, 2
  %v1543 = vadd.f32 %v1541, %v1542
  %v1544 = vrot.slane %v1543, 1
  %v1545 = vadd.f32 %v1543, %v1544
  %v1546 = vsel %vm1167, %v1123, 0.0
  %v1547 = vsel %vm1167, %v1124, 0.0
  %v1548 = vadd.f32 %v1546, %v1547
  %v1549 = vrot.slane %v1548, 4
  %v1550 = vadd.f32 %v1548, %v1549
  %v1551 = vrot.slane %v1550, 2
  %v1552 = vadd.f32 %v1550, %v1551
  %v1553 = vrot.slane %v1552, 1
  %v1554 = vadd.f32 %v1552, %v1553
  %v1555 = vsel %vm1167, %v1125, 0.0
  %v1556 = vsel %vm1167, %v1126, 0.0
  %v1557 = vadd.f32 %v1555, %v1556
  %v1558 = vrot.slane %v1557, 4
  %v1559 = vadd.f32 %v1557, %v1558
  %v1560 = vrot.slane %v1559, 2
  %v1561 = vadd.f32 %v1559, %v1560
  %v1562 = vrot.slane %v1561, 1
  %v1563 = vadd.f32 %v1561, %v1562
  %v1564 = vsel %vm1167, %v1127, 0.0
  %v1565 = vsel %vm1167, %v1128, 0.0
  %v1566 = vadd.f32 %v1564, %v1565
  %v1567 = vrot.slane %v1566, 4
  %v1568 = vadd.f32 %v1566, %v1567
  %v1569 = vrot.slane %v1568, 2
  %v1570 = vadd.f32 %v1568, %v1569
  %v1571 = vrot.slane %v1570, 1
  %v1572 = vadd.f32 %v1570, %v1571
  %v1573 = vsel %vm1167, %v1129, 0.0
  %v1574 = vsel %vm1167, %v1130, 0.0
  %v1575 = vadd.f32 %v1573, %v1574
  %v1576 = vrot.slane %v1575, 4
  %v1577 = vadd.f32 %v1575, %v1576
  %v1578 = vrot.slane %v1577, 2
  %v1579 = vadd.f32 %v1577, %v1578
  %v1580 = vrot.slane %v1579, 1
  %v1581 = vadd.f32 %v1579, %v1580
  %v1582 = vsel %vm1167, %v1131, 0.0
  %v1583 = vsel %vm1167, %v1132, 0.0
  %v1584 = vadd.f32 %v1582, %v1583
  %v1585 = vrot.slane %v1584, 4
  %v1586 = vadd.f32 %v1584, %v1585
  %v1587 = vrot.slane %v1586, 2
  %v1588 = vadd.f32 %v1586, %v1587
  %v1589 = vrot.slane %v1588, 1
  %v1590 = vadd.f32 %v1588, %v1589
  %v1591 = vsel %vm1167, %v1133, 0.0
  %v1592 = vsel %vm1167, %v1134, 0.0
  %v1593 = vadd.f32 %v1591, %v1592
  %v1594 = vrot.slane %v1593, 4
  %v1595 = vadd.f32 %v1593, %v1594
  %v1596 = vrot.slane %v1595, 2
  %v1597 = vadd.f32 %v1595, %v1596
  %v1598 = vrot.slane %v1597, 1
  %v1599 = vadd.f32 %v1597, %v1598
  %v1600 = vsel %vm1167, %v1135, 0.0
  %v1601 = vsel %vm1167, %v1136, 0.0
  %v1602 = vadd.f32 %v1600, %v1601
  %v1603 = vrot.slane %v1602, 4
  %v1604 = vadd.f32 %v1602, %v1603
  %v1605 = vrot.slane %v1604, 2
  %v1606 = vadd.f32 %v1604, %v1605
  %v1607 = vrot.slane %v1606, 1
  %v1608 = vadd.f32 %v1606, %v1607
  %v1609 = vsel %vm1167, %v1137, 0.0
  %v1610 = vsel %vm1167, %v1138, 0.0
  %v1611 = vadd.f32 %v1609, %v1610
  %v1612 = vrot.slane %v1611, 4
  %v1613 = vadd.f32 %v1611, %v1612
  %v1614 = vrot.slane %v1613, 2
  %v1615 = vadd.f32 %v1613, %v1614
  %v1616 = vrot.slane %v1615, 1
  %v1617 = vadd.f32 %v1615, %v1616
  %v1618 = vsel %vm1167, %v1139, 0.0
  %v1619 = vsel %vm1167, %v1140, 0.0
  %v1620 = vadd.f32 %v1618, %v1619
  %v1621 = vrot.slane %v1620, 4
  %v1622 = vadd.f32 %v1620, %v1621
  %v1623 = vrot.slane %v1622, 2
  %v1624 = vadd.f32 %v1622, %v1623
  %v1625 = vrot.slane %v1624, 1
  %v1626 = vadd.f32 %v1624, %v1625
  %v1627 = vsel %vm1167, %v1141, 0.0
  %v1628 = vsel %vm1167, %v1142, 0.0
  %v1629 = vadd.f32 %v1627, %v1628
  %v1630 = vrot.slane %v1629, 4
  %v1631 = vadd.f32 %v1629, %v1630
  %v1632 = vrot.slane %v1631, 2
  %v1633 = vadd.f32 %v1631, %v1632
  %v1634 = vrot.slane %v1633, 1
  %v1635 = vadd.f32 %v1633, %v1634
  %v1636 = vsel %vm1167, %v1143, 0.0
  %v1637 = vsel %vm1167, %v1144, 0.0
  %v1638 = vadd.f32 %v1636, %v1637
  %v1639 = vrot.slane %v1638, 4
  %v1640 = vadd.f32 %v1638, %v1639
  %v1641 = vrot.slane %v1640, 2
  %v1642 = vadd.f32 %v1640, %v1641
  %v1643 = vrot.slane %v1642, 1
  %v1644 = vadd.f32 %v1642, %v1643
  %v1645 = vsel %vm1167, %v1145, 0.0
  %v1646 = vsel %vm1167, %v1146, 0.0
  %v1647 = vadd.f32 %v1645, %v1646
  %v1648 = vrot.slane %v1647, 4
  %v1649 = vadd.f32 %v1647, %v1648
  %v1650 = vrot.slane %v1649, 2
  %v1651 = vadd.f32 %v1649, %v1650
  %v1652 = vrot.slane %v1651, 1
  %v1653 = vadd.f32 %v1651, %v1652
  %v1654 = vsel %vm1167, %v1147, 0.0
  %v1655 = vsel %vm1167, %v1148, 0.0
  %v1656 = vadd.f32 %v1654, %v1655
  %v1657 = vrot.slane %v1656, 4
  %v1658 = vadd.f32 %v1656, %v1657
  %v1659 = vrot.slane %v1658, 2
  %v1660 = vadd.f32 %v1658, %v1659
  %v1661 = vrot.slane %v1660, 1
  %v1662 = vadd.f32 %v1660, %v1661
  %v1663 = vsel %vm1167, %v1149, 0.0
  %v1664 = vsel %vm1167, %v1150, 0.0
  %v1665 = vadd.f32 %v1663, %v1664
  %v1666 = vrot.slane %v1665, 4
  %v1667 = vadd.f32 %v1665, %v1666
  %v1668 = vrot.slane %v1667, 2
  %v1669 = vadd.f32 %v1667, %v1668
  %v1670 = vrot.slane %v1669, 1
  %v1671 = vadd.f32 %v1669, %v1670
  %v1672 = vsel %vm1167, %v1151, 0.0
  %v1673 = vsel %vm1167, %v1152, 0.0
  %v1674 = vadd.f32 %v1672, %v1673
  %v1675 = vrot.slane %v1674, 4
  %v1676 = vadd.f32 %v1674, %v1675
  %v1677 = vrot.slane %v1676, 2
  %v1678 = vadd.f32 %v1676, %v1677
  %v1679 = vrot.slane %v1678, 1
  %v1680 = vadd.f32 %v1678, %v1679
  %v1681 = vsel %vm1167, %v1153, 0.0
  %v1682 = vsel %vm1167, %v1154, 0.0
  %v1683 = vadd.f32 %v1681, %v1682
  %v1684 = vrot.slane %v1683, 4
  %v1685 = vadd.f32 %v1683, %v1684
  %v1686 = vrot.slane %v1685, 2
  %v1687 = vadd.f32 %v1685, %v1686
  %v1688 = vrot.slane %v1687, 1
  %v1689 = vadd.f32 %v1687, %v1688
  %v1690 = vsel %vm1167, %v1155, 0.0
  %v1691 = vsel %vm1167, %v1156, 0.0
  %v1692 = vadd.f32 %v1690, %v1691
  %v1693 = vrot.slane %v1692, 4
  %v1694 = vadd.f32 %v1692, %v1693
  %v1695 = vrot.slane %v1694, 2
  %v1696 = vadd.f32 %v1694, %v1695
  %v1697 = vrot.slane %v1696, 1
  %v1698 = vadd.f32 %v1696, %v1697
  %v1699 = vsel %vm1167, %v1157, 0.0
  %v1700 = vsel %vm1167, %v1158, 0.0
  %v1701 = vadd.f32 %v1699, %v1700
  %v1702 = vrot.slane %v1701, 4
  %v1703 = vadd.f32 %v1701, %v1702
  %v1704 = vrot.slane %v1703, 2
  %v1705 = vadd.f32 %v1703, %v1704
  %v1706 = vrot.slane %v1705, 1
  %v1707 = vadd.f32 %v1705, %v1706
  %v1708 = vsel %vm1167, %v1159, 0.0
  %v1709 = vsel %vm1167, %v1160, 0.0
  %v1710 = vadd.f32 %v1708, %v1709
  %v1711 = vrot.slane %v1710, 4
  %v1712 = vadd.f32 %v1710, %v1711
  %v1713 = vrot.slane %v1712, 2
  %v1714 = vadd.f32 %v1712, %v1713
  %v1715 = vrot.slane %v1714, 1
  %v1716 = vadd.f32 %v1714, %v1715
  %v1717 = vsel %vm1167, %v1161, 0.0
  %v1718 = vsel %vm1167, %v1162, 0.0
  %v1719 = vadd.f32 %v1717, %v1718
  %v1720 = vrot.slane %v1719, 4
  %v1721 = vadd.f32 %v1719, %v1720
  %v1722 = vrot.slane %v1721, 2
  %v1723 = vadd.f32 %v1721, %v1722
  %v1724 = vrot.slane %v1723, 1
  %v1725 = vadd.f32 %v1723, %v1724
  %v1726 = vsel %vm1167, %v1163, 0.0
  %v1727 = vsel %vm1167, %v1164, 0.0
  %v1728 = vadd.f32 %v1726, %v1727
  %v1729 = vrot.slane %v1728, 4
  %v1730 = vadd.f32 %v1728, %v1729
  %v1731 = vrot.slane %v1730, 2
  %v1732 = vadd.f32 %v1730, %v1731
  %v1733 = vrot.slane %v1732, 1
  %v1734 = vadd.f32 %v1732, %v1733
  %v1735 = vsel %vm1167, %v1165, 0.0
  %v1736 = vsel %vm1167, %v1166, 0.0
  %v1737 = vadd.f32 %v1735, %v1736
  %v1738 = vrot.slane %v1737, 4
  %v1739 = vadd.f32 %v1737, %v1738
  %v1740 = vrot.slane %v1739, 2
  %v1741 = vadd.f32 %v1739, %v1740
  %v1742 = vrot.slane %v1741, 1
  %v1743 = vadd.f32 %v1741, %v1742
  %v1744 = vpack.c.bf16 %v1176, %v1176
  %v1745 = vpack.c.bf16 %v1185, %v1185
  %v1746 = vpack.c.bf16 %v1194, %v1194
  %v1747 = vpack.c.bf16 %v1203, %v1203
  %v1748 = vpack.c.bf16 %v1212, %v1212
  %v1749 = vpack.c.bf16 %v1221, %v1221
  %v1750 = vpack.c.bf16 %v1230, %v1230
  %v1751 = vpack.c.bf16 %v1239, %v1239
  %v1752 = vpack.c.bf16 %v1248, %v1248
  %v1753 = vpack.c.bf16 %v1257, %v1257
  %v1754 = vpack.c.bf16 %v1266, %v1266
  %v1755 = vpack.c.bf16 %v1275, %v1275
  %v1756 = vpack.c.bf16 %v1284, %v1284
  %v1757 = vpack.c.bf16 %v1293, %v1293
  %v1758 = vpack.c.bf16 %v1302, %v1302
  %v1759 = vpack.c.bf16 %v1311, %v1311
  %v1760 = vpack.c.bf16 %v1320, %v1320
  %v1761 = vpack.c.bf16 %v1329, %v1329
  %v1762 = vpack.c.bf16 %v1338, %v1338
  %v1763 = vpack.c.bf16 %v1347, %v1347
  %v1764 = vpack.c.bf16 %v1356, %v1356
  %v1765 = vpack.c.bf16 %v1365, %v1365
  %v1766 = vpack.c.bf16 %v1374, %v1374
  %v1767 = vpack.c.bf16 %v1383, %v1383
  %v1768 = vpack.c.bf16 %v1392, %v1392
  %v1769 = vpack.c.bf16 %v1401, %v1401
  %v1770 = vpack.c.bf16 %v1410, %v1410
  %v1771 = vpack.c.bf16 %v1419, %v1419
  %v1772 = vpack.c.bf16 %v1428, %v1428
  %v1773 = vpack.c.bf16 %v1437, %v1437
  %v1774 = vpack.c.bf16 %v1446, %v1446
  %v1775 = vpack.c.bf16 %v1455, %v1455
  %v1776 = vpack.c.bf16 %v1464, %v1464
  %v1777 = vpack.c.bf16 %v1473, %v1473
  %v1778 = vpack.c.bf16 %v1482, %v1482
  %v1779 = vpack.c.bf16 %v1491, %v1491
  %v1780 = vpack.c.bf16 %v1500, %v1500
  %v1781 = vpack.c.bf16 %v1509, %v1509
  %v1782 = vpack.c.bf16 %v1518, %v1518
  %v1783 = vpack.c.bf16 %v1527, %v1527
  %v1784 = vpack.c.bf16 %v1536, %v1536
  %v1785 = vpack.c.bf16 %v1545, %v1545
  %v1786 = vpack.c.bf16 %v1554, %v1554
  %v1787 = vpack.c.bf16 %v1563, %v1563
  %v1788 = vpack.c.bf16 %v1572, %v1572
  %v1789 = vpack.c.bf16 %v1581, %v1581
  %v1790 = vpack.c.bf16 %v1590, %v1590
  %v1791 = vpack.c.bf16 %v1599, %v1599
  %v1792 = vpack.c.bf16 %v1608, %v1608
  %v1793 = vpack.c.bf16 %v1617, %v1617
  %v1794 = vpack.c.bf16 %v1626, %v1626
  %v1795 = vpack.c.bf16 %v1635, %v1635
  %v1796 = vpack.c.bf16 %v1644, %v1644
  %v1797 = vpack.c.bf16 %v1653, %v1653
  %v1798 = vpack.c.bf16 %v1662, %v1662
  %v1799 = vpack.c.bf16 %v1671, %v1671
  %v1800 = vpack.c.bf16 %v1680, %v1680
  %v1801 = vpack.c.bf16 %v1689, %v1689
  %v1802 = vpack.c.bf16 %v1698, %v1698
  %v1803 = vpack.c.bf16 %v1707, %v1707
  %v1804 = vpack.c.bf16 %v1716, %v1716
  %v1805 = vpack.c.bf16 %v1725, %v1725
  %v1806 = vpack.c.bf16 %v1734, %v1734
  %v1807 = vpack.c.bf16 %v1743, %v1743
  %v1808 = vld [vmem:[%s6] sm:$0x7]
  %v1873 = vunpack.c.l.b16 %v1744
  %v1874 = vunpack.c.l.b16 %v1745
  %v1875 = vunpack.c.l.b16 %v1746
  %v1876 = vunpack.c.l.b16 %v1747
  %v1877 = vunpack.c.l.b16 %v1748
  %v1878 = vunpack.c.l.b16 %v1749
  %v1879 = vunpack.c.l.b16 %v1750
  %v1880 = vunpack.c.l.b16 %v1751
  %v1881 = vunpack.c.l.b16 %v1752
  %v1882 = vunpack.c.l.b16 %v1753
  %v1883 = vunpack.c.l.b16 %v1754
  %v1884 = vunpack.c.l.b16 %v1755
  %v1885 = vunpack.c.l.b16 %v1756
  %v1886 = vunpack.c.l.b16 %v1757
  %v1887 = vunpack.c.l.b16 %v1758
  %v1888 = vunpack.c.l.b16 %v1759
  %v1889 = vunpack.c.l.b16 %v1760
  %v1890 = vunpack.c.l.b16 %v1761
  %v1891 = vunpack.c.l.b16 %v1762
  %v1892 = vunpack.c.l.b16 %v1763
  %v1893 = vunpack.c.l.b16 %v1764
  %v1894 = vunpack.c.l.b16 %v1765
  %v1895 = vunpack.c.l.b16 %v1766
  %v1896 = vunpack.c.l.b16 %v1767
  %v1897 = vunpack.c.l.b16 %v1768
  %v1898 = vunpack.c.l.b16 %v1769
  %v1899 = vunpack.c.l.b16 %v1770
  %v1900 = vunpack.c.l.b16 %v1771
  %v1901 = vunpack.c.l.b16 %v1772
  %v1902 = vunpack.c.l.b16 %v1773
  %v1903 = vunpack.c.l.b16 %v1774
  %v1904 = vunpack.c.l.b16 %v1775
  %v1905 = vunpack.c.l.b16 %v1776
  %v1906 = vunpack.c.l.b16 %v1777
  %v1907 = vunpack.c.l.b16 %v1778
  %v1908 = vunpack.c.l.b16 %v1779
  %v1909 = vunpack.c.l.b16 %v1780
  %v1910 = vunpack.c.l.b16 %v1781
  %v1911 = vunpack.c.l.b16 %v1782
  %v1912 = vunpack.c.l.b16 %v1783
  %v1913 = vunpack.c.l.b16 %v1784
  %v1914 = vunpack.c.l.b16 %v1785
  %v1915 = vunpack.c.l.b16 %v1786
  %v1916 = vunpack.c.l.b16 %v1787
  %v1917 = vunpack.c.l.b16 %v1788
  %v1918 = vunpack.c.l.b16 %v1789
  %v1919 = vunpack.c.l.b16 %v1790
  %v1920 = vunpack.c.l.b16 %v1791
  %v1921 = vunpack.c.l.b16 %v1792
  %v1922 = vunpack.c.l.b16 %v1793
  %v1923 = vunpack.c.l.b16 %v1794
  %v1924 = vunpack.c.l.b16 %v1795
  %v1925 = vunpack.c.l.b16 %v1796
  %v1926 = vunpack.c.l.b16 %v1797
  %v1927 = vunpack.c.l.b16 %v1798
  %v1928 = vunpack.c.l.b16 %v1799
  %v1929 = vunpack.c.l.b16 %v1800
  %v1930 = vunpack.c.l.b16 %v1801
  %v1931 = vunpack.c.l.b16 %v1802
  %v1932 = vunpack.c.l.b16 %v1803
  %v1933 = vunpack.c.l.b16 %v1804
  %v1934 = vunpack.c.l.b16 %v1805
  %v1935 = vunpack.c.l.b16 %v1806
  %v1936 = vunpack.c.l.b16 %v1807
  %vm1937 = vcmask 1041409
  %v1938 = vsel %vm1937, %v1874, %v1873
  %vm1939 = vcmask 1042434
  %v1940 = vsel %vm1939, %v1875, %v1938
  %vm1941 = vcmask 1043459
  %v1942 = vsel %vm1941, %v1876, %v1940
  %vm1943 = vcmask 1044484
  %v1944 = vsel %vm1943, %v1877, %v1942
  %vm1945 = vcmask 1045509
  %v1946 = vsel %vm1945, %v1878, %v1944
  %vm1947 = vcmask 1046534
  %v1948 = vsel %vm1947, %v1879, %v1946
  %vm1949 = vcmask 1047559
  %v1950 = vsel %vm1949, %v1880, %v1948
  %v1951 = vsel %vm1937, %v1882, %v1881
  %v1952 = vsel %vm1939, %v1883, %v1951
  %v1953 = vsel %vm1941, %v1884, %v1952
  %v1954 = vsel %vm1943, %v1885, %v1953
  %v1955 = vsel %vm1945, %v1886, %v1954
  %v1956 = vsel %vm1947, %v1887, %v1955
  %v1957 = vsel %vm1949, %v1888, %v1956
  %v1958 = vsel %vm1937, %v1890, %v1889
  %v1959 = vsel %vm1939, %v1891, %v1958
  %v1960 = vsel %vm1941, %v1892, %v1959
  %v1961 = vsel %vm1943, %v1893, %v1960
  %v1962 = vsel %vm1945, %v1894, %v1961
  %v1963 = vsel %vm1947, %v1895, %v1962
  %v1964 = vsel %vm1949, %v1896, %v1963
  %v1965 = vsel %vm1937, %v1898, %v1897
  %v1966 = vsel %vm1939, %v1899, %v1965
  %v1967 = vsel %vm1941, %v1900, %v1966
  %v1968 = vsel %vm1943, %v1901, %v1967
  %v1969 = vsel %vm1945, %v1902, %v1968
  %v1970 = vsel %vm1947, %v1903, %v1969
  %v1971 = vsel %vm1949, %v1904, %v1970
  %v1972 = vsel %vm1937, %v1906, %v1905
  %v1973 = vsel %vm1939, %v1907, %v1972
  %v1974 = vsel %vm1941, %v1908, %v1973
  %v1975 = vsel %vm1943, %v1909, %v1974
  %v1976 = vsel %vm1945, %v1910, %v1975
  %v1977 = vsel %vm1947, %v1911, %v1976
  %v1978 = vsel %vm1949, %v1912, %v1977
  %v1979 = vsel %vm1937, %v1914, %v1913
  %v1980 = vsel %vm1939, %v1915, %v1979
  %v1981 = vsel %vm1941, %v1916, %v1980
  %v1982 = vsel %vm1943, %v1917, %v1981
  %v1983 = vsel %vm1945, %v1918, %v1982
  %v1984 = vsel %vm1947, %v1919, %v1983
  %v1985 = vsel %vm1949, %v1920, %v1984
  %v1986 = vsel %vm1937, %v1922, %v1921
  %v1987 = vsel %vm1939, %v1923, %v1986
  %v1988 = vsel %vm1941, %v1924, %v1987
  %v1989 = vsel %vm1943, %v1925, %v1988
  %v1990 = vsel %vm1945, %v1926, %v1989
  %v1991 = vsel %vm1947, %v1927, %v1990
  %v1992 = vsel %vm1949, %v1928, %v1991
  %v1993 = vsel %vm1937, %v1930, %v1929
  %v1994 = vsel %vm1939, %v1931, %v1993
  %v1995 = vsel %vm1941, %v1932, %v1994
  %v1996 = vsel %vm1943, %v1933, %v1995
  %v1997 = vsel %vm1945, %v1934, %v1996
  %v1998 = vsel %vm1947, %v1935, %v1997
  %v1999 = vsel %vm1949, %v1936, %v1998
  %v2000 = vpack.c.b16 %v1957, %v1950
  %v2001 = vpack.c.b16 %v1971, %v1964
  %v2002 = vpack.c.b16 %v1985, %v1978
  %v2003 = vpack.c.b16 %v1999, %v1992
  %v2005 = vsel %vm1167, %v2000, 0
  %v2008 = vsel %vm1167, %v2001, 0
  %v2011 = vsel %vm1167, %v2002, 0
  %v2014 = vsel %vm1167, %v2003, 0
  %vm2016 = vcmask 1042432
  %v2018 = vsel %vm2016, %v1808, 0
  %2020 = vmatprep.subr.bf16.mxu0 0
  %2021 = vmatpush1.bf16.msra.mxu0 0
  %2022 = vmatprep.subr.bf16.mxu0 0
  %2023 = vmatpush1.bf16.msra.mxu0 0
  %2024 = vmatprep.subr.bf16.mxu0 0
  %2025 = vmatpush1.bf16.msra.mxu0 0
  %2026 = vmatprep.subr.bf16.mxu0 0
  %2027 = vmatpush1.bf16.msra.mxu0 0
  %2028 = vmatprep.subr.bf16.mxu0 0
  %2029 = vmatpush1.bf16.msra.mxu0 0
  %2030 = vmatprep.subr.bf16.mxu0 0
  %2031 = vmatpush1.bf16.msra.mxu0 0
  %2032 = vmatprep.subr.bf16.mxu0 0
  %2033 = vmatpush1.bf16.msra.mxu0 0
  %2034 = vmatprep.subr.bf16.mxu0 0
  %2035 = vmatpush1.bf16.msra.mxu0 %v2018
  %2036 = vmatprep.subr.bf16.mxu0 0
  %2037 = vmatpush2.bf16.msra.mxu0 0
  %2038 = vmatprep.subr.bf16.mxu0 0
  %2039 = vmatpush2.bf16.msra.mxu0 0
  %2040 = vmatprep.subr.bf16.mxu0 0
  %2041 = vmatpush2.bf16.msra.mxu0 0
  %2042 = vmatprep.subr.bf16.mxu0 0
  %2043 = vmatpush2.bf16.msra.mxu0 0
  %2044 = vmatprep.subr.bf16.mxu0 0
  %2045 = vmatpush2.bf16.msra.mxu0 0
  %2046 = vmatprep.subr.bf16.mxu0 0
  %2047 = vmatpush2.bf16.msra.mxu0 0
  %2048 = vmatprep.subr.bf16.mxu0 0
  %2049 = vmatpush2.bf16.msra.mxu0 0
  %2050 = vmatprep.subr.bf16.mxu0 0
  %2051 = vmatpush2.bf16.msra.mxu0 0
  %2052 = vmatprep.mubr.bf16.mxu0 0
  %2053 = vmatmul.mubr.bf16.gmra.mxu0 %v2005
  %v2054 = vpop.f32.mrf.mxu0
  %v2055 = vadd.f32 0.0, %v2054
  %v2056 = vpop.f32.mrf.mxu0
  %v2057 = vpop.f32.mrf.mxu0
  %v2058 = vadd.f32 0.0, %v2057
  %v2059 = vpop.f32.mrf.mxu0
  %2060 = vmatprep.mubr.bf16.mxu0 0
  %2061 = vmatmul.mubr.bf16.gmra.mxu0 %v2008
  %v2062 = vpop.f32.mrf.mxu0
  %v2063 = vadd.f32 0.0, %v2062
  %v2064 = vpop.f32.mrf.mxu0
  %v2065 = vpop.f32.mrf.mxu0
  %v2066 = vadd.f32 0.0, %v2065
  %v2067 = vpop.f32.mrf.mxu0
  %2068 = vmatprep.mubr.bf16.mxu0 0
  %2069 = vmatmul.mubr.bf16.gmra.mxu0 %v2011
  %v2070 = vpop.f32.mrf.mxu0
  %v2071 = vadd.f32 0.0, %v2070
  %v2072 = vpop.f32.mrf.mxu0
  %v2073 = vpop.f32.mrf.mxu0
  %v2074 = vadd.f32 0.0, %v2073
  %v2075 = vpop.f32.mrf.mxu0
  %2076 = vmatprep.mubr.bf16.mxu0 0
  %2077 = vmatmul.mubr.bf16.gmra.mxu0 %v2014
  %v2078 = vpop.f32.mrf.mxu0
  %v2079 = vadd.f32 0.0, %v2078
  %v2080 = vpop.f32.mrf.mxu0
  %v2081 = vpop.f32.mrf.mxu0
  %v2082 = vadd.f32 0.0, %v2081
  %v2083 = vpop.f32.mrf.mxu0
  %2084 = vdwg.mxu0
  %v2085 = vpack.c.bf16 %v113, %v110
  %v2086 = vpack.c.bf16 %v121, %v118
  %v2087 = vpack.c.bf16 %v129, %v126
  %v2088 = vpack.c.bf16 %v137, %v134
  %v2089 = vld [vmem:[%s7] sm:$0xf]
  %v2090 = vld [vmem:[%s7 + $0x4] sm:$0xf]
  %v2091 = vld [vmem:[%s7 + $0x8] sm:$0xf]
  %v2092 = vld [vmem:[%s7 + $0xc] sm:$0xf]
  %v2093 = vld [vmem:[%s7 + $0x10] sm:$0xf]
  %v2094 = vld [vmem:[%s7 + $0x14] sm:$0xf]
  %v2095 = vld [vmem:[%s7 + $0x18] sm:$0xf]
  %v2096 = vld [vmem:[%s7 + $0x1c] sm:$0xf]
  %v2097 = vld [vmem:[%s7 + $0x20] sm:$0xf]
  %v2098 = vld [vmem:[%s7 + $0x24] sm:$0xf]
  %v2099 = vld [vmem:[%s7 + $0x28] sm:$0xf]
  %v2100 = vld [vmem:[%s7 + $0x2c] sm:$0xf]
  %v2101 = vld [vmem:[%s7 + $0x30] sm:$0xf]
  %v2102 = vld [vmem:[%s7 + $0x34] sm:$0xf]
  %v2103 = vld [vmem:[%s7 + $0x38] sm:$0xf]
  %v2104 = vld [vmem:[%s7 + $0x3c] sm:$0xf]
  %v2121 = vunpack.c.l.b16 %v2089
  %v2122 = vunpack.c.l.b16 %v2090
  %v2123 = vunpack.c.l.b16 %v2091
  %v2124 = vunpack.c.l.b16 %v2092
  %v2125 = vunpack.c.l.b16 %v2093
  %v2126 = vunpack.c.l.b16 %v2094
  %v2127 = vunpack.c.l.b16 %v2095
  %v2128 = vunpack.c.l.b16 %v2096
  %v2129 = vunpack.c.l.b16 %v2097
  %v2130 = vunpack.c.l.b16 %v2098
  %v2131 = vunpack.c.l.b16 %v2099
  %v2132 = vunpack.c.l.b16 %v2100
  %v2133 = vunpack.c.l.b16 %v2101
  %v2134 = vunpack.c.l.b16 %v2102
  %v2135 = vunpack.c.l.b16 %v2103
  %v2136 = vunpack.c.l.b16 %v2104
  %v2137 = vpack.c.b16 %v2122, %v2121
  %v2138 = vpack.c.b16 %v2124, %v2123
  %v2139 = vpack.c.b16 %v2126, %v2125
  %v2140 = vpack.c.b16 %v2128, %v2127
  %v2141 = vpack.c.b16 %v2130, %v2129
  %v2142 = vpack.c.b16 %v2132, %v2131
  %v2143 = vpack.c.b16 %v2134, %v2133
  %v2144 = vpack.c.b16 %v2136, %v2135
  %2153 = vmatprep.subr.bf16.mxu0 0
  %2154 = vmatpush1.bf16.msra.mxu0 %v2144
  %2155 = vmatprep.subr.bf16.mxu0 0
  %2156 = vmatpush1.bf16.msra.mxu0 %v2143
  %2157 = vmatprep.subr.bf16.mxu0 0
  %2158 = vmatpush1.bf16.msra.mxu0 %v2142
  %2159 = vmatprep.subr.bf16.mxu0 0
  %2160 = vmatpush1.bf16.msra.mxu0 %v2141
  %2161 = vmatprep.subr.bf16.mxu0 0
  %2162 = vmatpush1.bf16.msra.mxu0 %v2140
  %2163 = vmatprep.subr.bf16.mxu0 0
  %2164 = vmatpush1.bf16.msra.mxu0 %v2139
  %2165 = vmatprep.subr.bf16.mxu0 0
  %2166 = vmatpush1.bf16.msra.mxu0 %v2138
  %2167 = vmatprep.subr.bf16.mxu0 0
  %2168 = vmatpush1.bf16.msra.mxu0 %v2137
  %2169 = vmatprep.subr.bf16.mxu0 0
  %2170 = vmatpush2.bf16.msra.mxu0 0
  %2171 = vmatprep.subr.bf16.mxu0 0
  %2172 = vmatpush2.bf16.msra.mxu0 0
  %2173 = vmatprep.subr.bf16.mxu0 0
  %2174 = vmatpush2.bf16.msra.mxu0 0
  %2175 = vmatprep.subr.bf16.mxu0 0
  %2176 = vmatpush2.bf16.msra.mxu0 0
  %2177 = vmatprep.subr.bf16.mxu0 0
  %2178 = vmatpush2.bf16.msra.mxu0 0
  %2179 = vmatprep.subr.bf16.mxu0 0
  %2180 = vmatpush2.bf16.msra.mxu0 0
  %2181 = vmatprep.subr.bf16.mxu0 0
  %2182 = vmatpush2.bf16.msra.mxu0 0
  %2183 = vmatprep.subr.bf16.mxu0 0
  %2184 = vmatpush2.bf16.msra.mxu0 0
  %2185 = vmatprep.mubr.bf16.mxu0 0
  %2186 = vmatmul.mubr.bf16.gmra.mxu0 %v2085
  %v2187 = vpop.f32.mrf.mxu0
  %v2188 = vadd.f32 0.0, %v2187
  %v2189 = vpop.f32.mrf.mxu0
  %v2190 = vpop.f32.mrf.mxu0
  %v2191 = vadd.f32 0.0, %v2190
  %v2192 = vpop.f32.mrf.mxu0
  %2193 = vmatprep.mubr.bf16.mxu0 0
  %2194 = vmatmul.mubr.bf16.gmra.mxu0 %v2086
  %v2195 = vpop.f32.mrf.mxu0
  %v2196 = vadd.f32 0.0, %v2195
  %v2197 = vpop.f32.mrf.mxu0
  %v2198 = vpop.f32.mrf.mxu0
  %v2199 = vadd.f32 0.0, %v2198
  %v2200 = vpop.f32.mrf.mxu0
  %2201 = vmatprep.mubr.bf16.mxu0 0
  %2202 = vmatmul.mubr.bf16.gmra.mxu0 %v2087
  %v2203 = vpop.f32.mrf.mxu0
  %v2204 = vadd.f32 0.0, %v2203
  %v2205 = vpop.f32.mrf.mxu0
  %v2206 = vpop.f32.mrf.mxu0
  %v2207 = vadd.f32 0.0, %v2206
  %v2208 = vpop.f32.mrf.mxu0
  %2209 = vmatprep.mubr.bf16.mxu0 0
  %2210 = vmatmul.mubr.bf16.gmra.mxu0 %v2088
  %v2211 = vpop.f32.mrf.mxu0
  %v2212 = vadd.f32 0.0, %v2211
  %v2213 = vpop.f32.mrf.mxu0
  %v2214 = vpop.f32.mrf.mxu0
  %v2215 = vadd.f32 0.0, %v2214
  %v2216 = vpop.f32.mrf.mxu0
  %2217 = vdwg.mxu0
  %vm2218 = vcmp.gt.f32.partialorder %v2188, 0.0
  %vm2219 = vcmp.gt.f32.partialorder %v2191, 0.0
  %vm2220 = vcmp.gt.f32.partialorder %v2196, 0.0
  %vm2221 = vcmp.gt.f32.partialorder %v2199, 0.0
  %vm2222 = vcmp.gt.f32.partialorder %v2204, 0.0
  %vm2223 = vcmp.gt.f32.partialorder %v2207, 0.0
  %vm2224 = vcmp.gt.f32.partialorder %v2212, 0.0
  %vm2225 = vcmp.gt.f32.partialorder %v2215, 0.0
  %v2226 = vmul.f32 %v2188, 0.01
  %v2227 = vmul.f32 %v2191, 0.01
  %v2228 = vmul.f32 %v2196, 0.01
  %v2229 = vmul.f32 %v2199, 0.01
  %v2230 = vmul.f32 %v2204, 0.01
  %v2231 = vmul.f32 %v2207, 0.01
  %v2232 = vmul.f32 %v2212, 0.01
  %v2233 = vmul.f32 %v2215, 0.01
  %v2234 = vsel %vm2218, %v2188, %v2226
  %v2235 = vsel %vm2219, %v2191, %v2227
  %v2236 = vsel %vm2220, %v2196, %v2228
  %v2237 = vsel %vm2221, %v2199, %v2229
  %v2238 = vsel %vm2222, %v2204, %v2230
  %v2239 = vsel %vm2223, %v2207, %v2231
  %v2240 = vsel %vm2224, %v2212, %v2232
  %v2241 = vsel %vm2225, %v2215, %v2233
  %v2242 = vpack.c.bf16 %v2235, %v2234
  %v2243 = vpack.c.bf16 %v2237, %v2236
  %v2244 = vpack.c.bf16 %v2239, %v2238
  %v2245 = vpack.c.bf16 %v2241, %v2240
  %vm2246 = vcmask 130048
  %v2248 = vsel %vm2246, %v41, 0
  %2250 = vmatprep.subr.bf16.mxu0 0
  %2251 = vmatpush1.bf16.msra.mxu0 0
  %2252 = vmatprep.subr.bf16.mxu0 0
  %2253 = vmatpush1.bf16.msra.mxu0 0
  %2254 = vmatprep.subr.bf16.mxu0 0
  %2255 = vmatpush1.bf16.msra.mxu0 0
  %2256 = vmatprep.subr.bf16.mxu0 0
  %2257 = vmatpush1.bf16.msra.mxu0 0
  %2258 = vmatprep.subr.bf16.mxu0 0
  %2259 = vmatpush1.bf16.msra.mxu0 0
  %2260 = vmatprep.subr.bf16.mxu0 0
  %2261 = vmatpush1.bf16.msra.mxu0 0
  %2262 = vmatprep.subr.bf16.mxu0 0
  %2263 = vmatpush1.bf16.msra.mxu0 0
  %2264 = vmatprep.subr.bf16.mxu0 0
  %2265 = vmatpush1.bf16.msra.mxu0 %v2242
  %2266 = vmatprep.subr.bf16.mxu0 0
  %2267 = vmatpush2.bf16.msra.mxu0 0
  %2268 = vmatprep.subr.bf16.mxu0 0
  %2269 = vmatpush2.bf16.msra.mxu0 0
  %2270 = vmatprep.subr.bf16.mxu0 0
  %2271 = vmatpush2.bf16.msra.mxu0 0
  %2272 = vmatprep.subr.bf16.mxu0 0
  %2273 = vmatpush2.bf16.msra.mxu0 0
  %2274 = vmatprep.subr.bf16.mxu0 0
  %2275 = vmatpush2.bf16.msra.mxu0 0
  %2276 = vmatprep.subr.bf16.mxu0 0
  %2277 = vmatpush2.bf16.msra.mxu0 0
  %2278 = vmatprep.subr.bf16.mxu0 0
  %2279 = vmatpush2.bf16.msra.mxu0 0
  %2280 = vmatprep.subr.bf16.mxu0 0
  %2281 = vmatpush2.bf16.msra.mxu0 0
  %2282 = vmatprep.mubr.bf16.mxu0 0
  %2283 = vmatmul.mubr.bf16.gmra.mxu0 %v2248
  %v2284 = vpop.f32.mrf.mxu0
  %v2285 = vadd.f32 0.0, %v2284
  %v2286 = vpop.f32.mrf.mxu0
  %v2287 = vpop.f32.mrf.mxu0
  %v2288 = vadd.f32 0.0, %v2287
  %v2289 = vpop.f32.mrf.mxu0
  %2290 = vdwg.mxu0
  %v2292 = vsel %vm2246, %v42, 0
  %2294 = vmatprep.subr.bf16.mxu0 0
  %2295 = vmatpush1.bf16.msra.mxu0 0
  %2296 = vmatprep.subr.bf16.mxu0 0
  %2297 = vmatpush1.bf16.msra.mxu0 0
  %2298 = vmatprep.subr.bf16.mxu0 0
  %2299 = vmatpush1.bf16.msra.mxu0 0
  %2300 = vmatprep.subr.bf16.mxu0 0
  %2301 = vmatpush1.bf16.msra.mxu0 0
  %2302 = vmatprep.subr.bf16.mxu0 0
  %2303 = vmatpush1.bf16.msra.mxu0 0
  %2304 = vmatprep.subr.bf16.mxu0 0
  %2305 = vmatpush1.bf16.msra.mxu0 0
  %2306 = vmatprep.subr.bf16.mxu0 0
  %2307 = vmatpush1.bf16.msra.mxu0 0
  %2308 = vmatprep.subr.bf16.mxu0 0
  %2309 = vmatpush1.bf16.msra.mxu0 %v2243
  %2310 = vmatprep.subr.bf16.mxu0 0
  %2311 = vmatpush2.bf16.msra.mxu0 0
  %2312 = vmatprep.subr.bf16.mxu0 0
  %2313 = vmatpush2.bf16.msra.mxu0 0
  %2314 = vmatprep.subr.bf16.mxu0 0
  %2315 = vmatpush2.bf16.msra.mxu0 0
  %2316 = vmatprep.subr.bf16.mxu0 0
  %2317 = vmatpush2.bf16.msra.mxu0 0
  %2318 = vmatprep.subr.bf16.mxu0 0
  %2319 = vmatpush2.bf16.msra.mxu0 0
  %2320 = vmatprep.subr.bf16.mxu0 0
  %2321 = vmatpush2.bf16.msra.mxu0 0
  %2322 = vmatprep.subr.bf16.mxu0 0
  %2323 = vmatpush2.bf16.msra.mxu0 0
  %2324 = vmatprep.subr.bf16.mxu0 0
  %2325 = vmatpush2.bf16.msra.mxu0 0
  %2326 = vmatprep.mubr.bf16.mxu0 0
  %2327 = vmatmul.mubr.bf16.gmra.mxu0 %v2292
  %v2328 = vpop.f32.mrf.mxu0
  %v2329 = vadd.f32 0.0, %v2328
  %v2330 = vpop.f32.mrf.mxu0
  %v2331 = vpop.f32.mrf.mxu0
  %v2332 = vadd.f32 0.0, %v2331
  %v2333 = vpop.f32.mrf.mxu0
  %2334 = vdwg.mxu0
  %v2336 = vsel %vm2246, %v43, 0
  %2338 = vmatprep.subr.bf16.mxu0 0
  %2339 = vmatpush1.bf16.msra.mxu0 0
  %2340 = vmatprep.subr.bf16.mxu0 0
  %2341 = vmatpush1.bf16.msra.mxu0 0
  %2342 = vmatprep.subr.bf16.mxu0 0
  %2343 = vmatpush1.bf16.msra.mxu0 0
  %2344 = vmatprep.subr.bf16.mxu0 0
  %2345 = vmatpush1.bf16.msra.mxu0 0
  %2346 = vmatprep.subr.bf16.mxu0 0
  %2347 = vmatpush1.bf16.msra.mxu0 0
  %2348 = vmatprep.subr.bf16.mxu0 0
  %2349 = vmatpush1.bf16.msra.mxu0 0
  %2350 = vmatprep.subr.bf16.mxu0 0
  %2351 = vmatpush1.bf16.msra.mxu0 0
  %2352 = vmatprep.subr.bf16.mxu0 0
  %2353 = vmatpush1.bf16.msra.mxu0 %v2244
  %2354 = vmatprep.subr.bf16.mxu0 0
  %2355 = vmatpush2.bf16.msra.mxu0 0
  %2356 = vmatprep.subr.bf16.mxu0 0
  %2357 = vmatpush2.bf16.msra.mxu0 0
  %2358 = vmatprep.subr.bf16.mxu0 0
  %2359 = vmatpush2.bf16.msra.mxu0 0
  %2360 = vmatprep.subr.bf16.mxu0 0
  %2361 = vmatpush2.bf16.msra.mxu0 0
  %2362 = vmatprep.subr.bf16.mxu0 0
  %2363 = vmatpush2.bf16.msra.mxu0 0
  %2364 = vmatprep.subr.bf16.mxu0 0
  %2365 = vmatpush2.bf16.msra.mxu0 0
  %2366 = vmatprep.subr.bf16.mxu0 0
  %2367 = vmatpush2.bf16.msra.mxu0 0
  %2368 = vmatprep.subr.bf16.mxu0 0
  %2369 = vmatpush2.bf16.msra.mxu0 0
  %2370 = vmatprep.mubr.bf16.mxu0 0
  %2371 = vmatmul.mubr.bf16.gmra.mxu0 %v2336
  %v2372 = vpop.f32.mrf.mxu0
  %v2373 = vadd.f32 0.0, %v2372
  %v2374 = vpop.f32.mrf.mxu0
  %v2375 = vpop.f32.mrf.mxu0
  %v2376 = vadd.f32 0.0, %v2375
  %v2377 = vpop.f32.mrf.mxu0
  %2378 = vdwg.mxu0
  %v2380 = vsel %vm2246, %v44, 0
  %2382 = vmatprep.subr.bf16.mxu0 0
  %2383 = vmatpush1.bf16.msra.mxu0 0
  %2384 = vmatprep.subr.bf16.mxu0 0
  %2385 = vmatpush1.bf16.msra.mxu0 0
  %2386 = vmatprep.subr.bf16.mxu0 0
  %2387 = vmatpush1.bf16.msra.mxu0 0
  %2388 = vmatprep.subr.bf16.mxu0 0
  %2389 = vmatpush1.bf16.msra.mxu0 0
  %2390 = vmatprep.subr.bf16.mxu0 0
  %2391 = vmatpush1.bf16.msra.mxu0 0
  %2392 = vmatprep.subr.bf16.mxu0 0
  %2393 = vmatpush1.bf16.msra.mxu0 0
  %2394 = vmatprep.subr.bf16.mxu0 0
  %2395 = vmatpush1.bf16.msra.mxu0 0
  %2396 = vmatprep.subr.bf16.mxu0 0
  %2397 = vmatpush1.bf16.msra.mxu0 %v2245
  %2398 = vmatprep.subr.bf16.mxu0 0
  %2399 = vmatpush2.bf16.msra.mxu0 0
  %2400 = vmatprep.subr.bf16.mxu0 0
  %2401 = vmatpush2.bf16.msra.mxu0 0
  %2402 = vmatprep.subr.bf16.mxu0 0
  %2403 = vmatpush2.bf16.msra.mxu0 0
  %2404 = vmatprep.subr.bf16.mxu0 0
  %2405 = vmatpush2.bf16.msra.mxu0 0
  %2406 = vmatprep.subr.bf16.mxu0 0
  %2407 = vmatpush2.bf16.msra.mxu0 0
  %2408 = vmatprep.subr.bf16.mxu0 0
  %2409 = vmatpush2.bf16.msra.mxu0 0
  %2410 = vmatprep.subr.bf16.mxu0 0
  %2411 = vmatpush2.bf16.msra.mxu0 0
  %2412 = vmatprep.subr.bf16.mxu0 0
  %2413 = vmatpush2.bf16.msra.mxu0 0
  %2414 = vmatprep.mubr.bf16.mxu0 0
  %2415 = vmatmul.mubr.bf16.gmra.mxu0 %v2380
  %v2416 = vpop.f32.mrf.mxu0
  %v2417 = vadd.f32 0.0, %v2416
  %v2418 = vpop.f32.mrf.mxu0
  %v2419 = vpop.f32.mrf.mxu0
  %v2420 = vadd.f32 0.0, %v2419
  %v2421 = vpop.f32.mrf.mxu0
  %2422 = vdwg.mxu0
  %v2423 = vld [vmem:[%s8] sm:$0xf]
  %v2424 = vld [vmem:[%s8 + $0x4] sm:$0xf]
  %v2425 = vld [vmem:[%s8 + $0x8] sm:$0xf]
  %v2426 = vld [vmem:[%s8 + $0xc] sm:$0xf]
  %v2427 = vld [vmem:[%s8 + $0x10] sm:$0xf]
  %v2428 = vld [vmem:[%s8 + $0x14] sm:$0xf]
  %v2429 = vld [vmem:[%s8 + $0x18] sm:$0xf]
  %v2430 = vld [vmem:[%s8 + $0x1c] sm:$0xf]
  %v2431 = vld [vmem:[%s8 + $0x20] sm:$0xf]
  %v2432 = vld [vmem:[%s8 + $0x24] sm:$0xf]
  %v2433 = vld [vmem:[%s8 + $0x28] sm:$0xf]
  %v2434 = vld [vmem:[%s8 + $0x2c] sm:$0xf]
  %v2435 = vld [vmem:[%s8 + $0x30] sm:$0xf]
  %v2436 = vld [vmem:[%s8 + $0x34] sm:$0xf]
  %v2437 = vld [vmem:[%s8 + $0x38] sm:$0xf]
  %v2438 = vld [vmem:[%s8 + $0x3c] sm:$0xf]
  %v2439 = vld [vmem:[%s8 + $0x40] sm:$0xf]
  %v2440 = vld [vmem:[%s8 + $0x44] sm:$0xf]
  %v2441 = vld [vmem:[%s8 + $0x48] sm:$0xf]
  %v2442 = vld [vmem:[%s8 + $0x4c] sm:$0xf]
  %v2443 = vld [vmem:[%s8 + $0x50] sm:$0xf]
  %v2444 = vld [vmem:[%s8 + $0x54] sm:$0xf]
  %v2445 = vld [vmem:[%s8 + $0x58] sm:$0xf]
  %v2446 = vld [vmem:[%s8 + $0x5c] sm:$0xf]
  %v2447 = vld [vmem:[%s8 + $0x60] sm:$0xf]
  %v2448 = vld [vmem:[%s8 + $0x64] sm:$0xf]
  %v2449 = vld [vmem:[%s8 + $0x68] sm:$0xf]
  %v2450 = vld [vmem:[%s8 + $0x6c] sm:$0xf]
  %v2451 = vld [vmem:[%s8 + $0x70] sm:$0xf]
  %v2452 = vld [vmem:[%s8 + $0x74] sm:$0xf]
  %v2453 = vld [vmem:[%s8 + $0x78] sm:$0xf]
  %v2454 = vld [vmem:[%s8 + $0x7c] sm:$0xf]
  %v2487 = vunpack.c.l.b16 %v2423
  %v2488 = vunpack.c.l.b16 %v2424
  %v2489 = vunpack.c.l.b16 %v2425
  %v2490 = vunpack.c.l.b16 %v2426
  %v2491 = vunpack.c.l.b16 %v2427
  %v2492 = vunpack.c.l.b16 %v2428
  %v2493 = vunpack.c.l.b16 %v2429
  %v2494 = vunpack.c.l.b16 %v2430
  %v2495 = vunpack.c.l.b16 %v2431
  %v2496 = vunpack.c.l.b16 %v2432
  %v2497 = vunpack.c.l.b16 %v2433
  %v2498 = vunpack.c.l.b16 %v2434
  %v2499 = vunpack.c.l.b16 %v2435
  %v2500 = vunpack.c.l.b16 %v2436
  %v2501 = vunpack.c.l.b16 %v2437
  %v2502 = vunpack.c.l.b16 %v2438
  %v2503 = vunpack.c.l.b16 %v2439
  %v2504 = vunpack.c.l.b16 %v2440
  %v2505 = vunpack.c.l.b16 %v2441
  %v2506 = vunpack.c.l.b16 %v2442
  %v2507 = vunpack.c.l.b16 %v2443
  %v2508 = vunpack.c.l.b16 %v2444
  %v2509 = vunpack.c.l.b16 %v2445
  %v2510 = vunpack.c.l.b16 %v2446
  %v2511 = vunpack.c.l.b16 %v2447
  %v2512 = vunpack.c.l.b16 %v2448
  %v2513 = vunpack.c.l.b16 %v2449
  %v2514 = vunpack.c.l.b16 %v2450
  %v2515 = vunpack.c.l.b16 %v2451
  %v2516 = vunpack.c.l.b16 %v2452
  %v2517 = vunpack.c.l.b16 %v2453
  %v2518 = vunpack.c.l.b16 %v2454
  %v2519 = vpack.c.b16 %v2488, %v2487
  %v2520 = vpack.c.b16 %v2490, %v2489
  %v2521 = vpack.c.b16 %v2492, %v2491
  %v2522 = vpack.c.b16 %v2494, %v2493
  %v2523 = vpack.c.b16 %v2496, %v2495
  %v2524 = vpack.c.b16 %v2498, %v2497
  %v2525 = vpack.c.b16 %v2500, %v2499
  %v2526 = vpack.c.b16 %v2502, %v2501
  %v2527 = vpack.c.b16 %v2504, %v2503
  %v2528 = vpack.c.b16 %v2506, %v2505
  %v2529 = vpack.c.b16 %v2508, %v2507
  %v2530 = vpack.c.b16 %v2510, %v2509
  %v2531 = vpack.c.b16 %v2512, %v2511
  %v2532 = vpack.c.b16 %v2514, %v2513
  %v2533 = vpack.c.b16 %v2516, %v2515
  %v2534 = vpack.c.b16 %v2518, %v2517
  %2551 = vmatprep.subr.bf16.mxu0 0
  %2552 = vmatpush1.bf16.msra.mxu0 %v2526
  %2553 = vmatprep.subr.bf16.mxu0 0
  %2554 = vmatpush1.bf16.msra.mxu0 %v2525
  %2555 = vmatprep.subr.bf16.mxu0 0
  %2556 = vmatpush1.bf16.msra.mxu0 %v2524
  %2557 = vmatprep.subr.bf16.mxu0 0
  %2558 = vmatpush1.bf16.msra.mxu0 %v2523
  %2559 = vmatprep.subr.bf16.mxu0 0
  %2560 = vmatpush1.bf16.msra.mxu0 %v2522
  %2561 = vmatprep.subr.bf16.mxu0 0
  %2562 = vmatpush1.bf16.msra.mxu0 %v2521
  %2563 = vmatprep.subr.bf16.mxu0 0
  %2564 = vmatpush1.bf16.msra.mxu0 %v2520
  %2565 = vmatprep.subr.bf16.mxu0 0
  %2566 = vmatpush1.bf16.msra.mxu0 %v2519
  %2567 = vmatprep.subr.bf16.mxu0 0
  %2568 = vmatpush2.bf16.msra.mxu0 %v2534
  %2569 = vmatprep.subr.bf16.mxu0 0
  %2570 = vmatpush2.bf16.msra.mxu0 %v2533
  %2571 = vmatprep.subr.bf16.mxu0 0
  %2572 = vmatpush2.bf16.msra.mxu0 %v2532
  %2573 = vmatprep.subr.bf16.mxu0 0
  %2574 = vmatpush2.bf16.msra.mxu0 %v2531
  %2575 = vmatprep.subr.bf16.mxu0 0
  %2576 = vmatpush2.bf16.msra.mxu0 %v2530
  %2577 = vmatprep.subr.bf16.mxu0 0
  %2578 = vmatpush2.bf16.msra.mxu0 %v2529
  %2579 = vmatprep.subr.bf16.mxu0 0
  %2580 = vmatpush2.bf16.msra.mxu0 %v2528
  %2581 = vmatprep.subr.bf16.mxu0 0
  %2582 = vmatpush2.bf16.msra.mxu0 %v2527
  %2583 = vmatprep.mubr.bf16.mxu0 %v203
  %2584 = vmatmul.mubr.bf16.gmra.mxu0 %v2085
  %v2585 = vpop.f32.mrf.mxu0
  %v2586 = vadd.f32 %v2285, %v2585
  %v2587 = vpop.f32.mrf.mxu0
  %v2588 = vpop.f32.mrf.mxu0
  %v2589 = vadd.f32 %v2288, %v2588
  %v2590 = vpop.f32.mrf.mxu0
  %2591 = vmatprep.mubr.bf16.mxu0 %v204
  %2592 = vmatmul.mubr.bf16.gmra.mxu0 %v2086
  %v2593 = vpop.f32.mrf.mxu0
  %v2594 = vadd.f32 %v2329, %v2593
  %v2595 = vpop.f32.mrf.mxu0
  %v2596 = vpop.f32.mrf.mxu0
  %v2597 = vadd.f32 %v2332, %v2596
  %v2598 = vpop.f32.mrf.mxu0
  %2599 = vmatprep.mubr.bf16.mxu0 %v205
  %2600 = vmatmul.mubr.bf16.gmra.mxu0 %v2087
  %v2601 = vpop.f32.mrf.mxu0
  %v2602 = vadd.f32 %v2373, %v2601
  %v2603 = vpop.f32.mrf.mxu0
  %v2604 = vpop.f32.mrf.mxu0
  %v2605 = vadd.f32 %v2376, %v2604
  %v2606 = vpop.f32.mrf.mxu0
  %2607 = vmatprep.mubr.bf16.mxu0 %v206
  %2608 = vmatmul.mubr.bf16.gmra.mxu0 %v2088
  %v2609 = vpop.f32.mrf.mxu0
  %v2610 = vadd.f32 %v2417, %v2609
  %v2611 = vpop.f32.mrf.mxu0
  %v2612 = vpop.f32.mrf.mxu0
  %v2613 = vadd.f32 %v2420, %v2612
  %v2614 = vpop.f32.mrf.mxu0
  %2615 = vdwg.mxu0
  %v2616 = vadd.f32 %v2586, %v2055
  %v2617 = vadd.f32 %v2589, %v2058
  %v2618 = vadd.f32 %v2594, %v2063
  %v2619 = vadd.f32 %v2597, %v2066
  %v2620 = vadd.f32 %v2602, %v2071
  %v2621 = vadd.f32 %v2605, %v2074
  %v2622 = vadd.f32 %v2610, %v2079
  %v2623 = vadd.f32 %v2613, %v2082
  %vm2624 = vcmp.gt.f32.partialorder %v2616, 0.0
  %vm2625 = vcmp.gt.f32.partialorder %v2617, 0.0
  %vm2626 = vcmp.gt.f32.partialorder %v2618, 0.0
  %vm2627 = vcmp.gt.f32.partialorder %v2619, 0.0
  %vm2628 = vcmp.gt.f32.partialorder %v2620, 0.0
  %vm2629 = vcmp.gt.f32.partialorder %v2621, 0.0
  %vm2630 = vcmp.gt.f32.partialorder %v2622, 0.0
  %vm2631 = vcmp.gt.f32.partialorder %v2623, 0.0
  %v2632 = vmul.f32 %v2616, 0.01
  %v2633 = vmul.f32 %v2617, 0.01
  %v2634 = vmul.f32 %v2618, 0.01
  %v2635 = vmul.f32 %v2619, 0.01
  %v2636 = vmul.f32 %v2620, 0.01
  %v2637 = vmul.f32 %v2621, 0.01
  %v2638 = vmul.f32 %v2622, 0.01
  %v2639 = vmul.f32 %v2623, 0.01
  %v2640 = vsel %vm2624, %v2616, %v2632
  %v2641 = vsel %vm2625, %v2617, %v2633
  %v2642 = vsel %vm2626, %v2618, %v2634
  %v2643 = vsel %vm2627, %v2619, %v2635
  %v2644 = vsel %vm2628, %v2620, %v2636
  %v2645 = vsel %vm2629, %v2621, %v2637
  %v2646 = vsel %vm2630, %v2622, %v2638
  %v2647 = vsel %vm2631, %v2623, %v2639
  %v2648 = vpack.c.bf16 %v2641, %v2640
  %v2649 = vpack.c.bf16 %v2643, %v2642
  %v2650 = vpack.c.bf16 %v2645, %v2644
  %v2651 = vpack.c.bf16 %v2647, %v2646
  %s2652 = scalar_lea.vmem %s7, 64
  %v2653 = vld [vmem:[%s2652] sm:$0xf]
  %v2654 = vld [vmem:[%s2652 + $0x4] sm:$0xf]
  %v2655 = vld [vmem:[%s2652 + $0x8] sm:$0xf]
  %v2656 = vld [vmem:[%s2652 + $0xc] sm:$0xf]
  %v2657 = vld [vmem:[%s2652 + $0x10] sm:$0xf]
  %v2658 = vld [vmem:[%s2652 + $0x14] sm:$0xf]
  %v2659 = vld [vmem:[%s2652 + $0x18] sm:$0xf]
  %v2660 = vld [vmem:[%s2652 + $0x1c] sm:$0xf]
  %v2661 = vld [vmem:[%s2652 + $0x20] sm:$0xf]
  %v2662 = vld [vmem:[%s2652 + $0x24] sm:$0xf]
  %v2663 = vld [vmem:[%s2652 + $0x28] sm:$0xf]
  %v2664 = vld [vmem:[%s2652 + $0x2c] sm:$0xf]
  %v2665 = vld [vmem:[%s2652 + $0x30] sm:$0xf]
  %v2666 = vld [vmem:[%s2652 + $0x34] sm:$0xf]
  %v2667 = vld [vmem:[%s2652 + $0x38] sm:$0xf]
  %v2668 = vld [vmem:[%s2652 + $0x3c] sm:$0xf]
  %v2685 = vunpack.c.l.b16 %v2653
  %v2686 = vunpack.c.l.b16 %v2654
  %v2687 = vunpack.c.l.b16 %v2655
  %v2688 = vunpack.c.l.b16 %v2656
  %v2689 = vunpack.c.l.b16 %v2657
  %v2690 = vunpack.c.l.b16 %v2658
  %v2691 = vunpack.c.l.b16 %v2659
  %v2692 = vunpack.c.l.b16 %v2660
  %v2693 = vunpack.c.l.b16 %v2661
  %v2694 = vunpack.c.l.b16 %v2662
  %v2695 = vunpack.c.l.b16 %v2663
  %v2696 = vunpack.c.l.b16 %v2664
  %v2697 = vunpack.c.l.b16 %v2665
  %v2698 = vunpack.c.l.b16 %v2666
  %v2699 = vunpack.c.l.b16 %v2667
  %v2700 = vunpack.c.l.b16 %v2668
  %v2701 = vpack.c.b16 %v2686, %v2685
  %v2702 = vpack.c.b16 %v2688, %v2687
  %v2703 = vpack.c.b16 %v2690, %v2689
  %v2704 = vpack.c.b16 %v2692, %v2691
  %v2705 = vpack.c.b16 %v2694, %v2693
  %v2706 = vpack.c.b16 %v2696, %v2695
  %v2707 = vpack.c.b16 %v2698, %v2697
  %v2708 = vpack.c.b16 %v2700, %v2699
  %2717 = vmatprep.subr.bf16.mxu0 0
  %2718 = vmatpush1.bf16.msra.mxu0 %v2708
  %2719 = vmatprep.subr.bf16.mxu0 0
  %2720 = vmatpush1.bf16.msra.mxu0 %v2707
  %2721 = vmatprep.subr.bf16.mxu0 0
  %2722 = vmatpush1.bf16.msra.mxu0 %v2706
  %2723 = vmatprep.subr.bf16.mxu0 0
  %2724 = vmatpush1.bf16.msra.mxu0 %v2705
  %2725 = vmatprep.subr.bf16.mxu0 0
  %2726 = vmatpush1.bf16.msra.mxu0 %v2704
  %2727 = vmatprep.subr.bf16.mxu0 0
  %2728 = vmatpush1.bf16.msra.mxu0 %v2703
  %2729 = vmatprep.subr.bf16.mxu0 0
  %2730 = vmatpush1.bf16.msra.mxu0 %v2702
  %2731 = vmatprep.subr.bf16.mxu0 0
  %2732 = vmatpush1.bf16.msra.mxu0 %v2701
  %2733 = vmatprep.subr.bf16.mxu0 0
  %2734 = vmatpush2.bf16.msra.mxu0 0
  %2735 = vmatprep.subr.bf16.mxu0 0
  %2736 = vmatpush2.bf16.msra.mxu0 0
  %2737 = vmatprep.subr.bf16.mxu0 0
  %2738 = vmatpush2.bf16.msra.mxu0 0
  %2739 = vmatprep.subr.bf16.mxu0 0
  %2740 = vmatpush2.bf16.msra.mxu0 0
  %2741 = vmatprep.subr.bf16.mxu0 0
  %2742 = vmatpush2.bf16.msra.mxu0 0
  %2743 = vmatprep.subr.bf16.mxu0 0
  %2744 = vmatpush2.bf16.msra.mxu0 0
  %2745 = vmatprep.subr.bf16.mxu0 0
  %2746 = vmatpush2.bf16.msra.mxu0 0
  %2747 = vmatprep.subr.bf16.mxu0 0
  %2748 = vmatpush2.bf16.msra.mxu0 0
  %2749 = vmatprep.mubr.bf16.mxu0 0
  %2750 = vmatmul.mubr.bf16.gmra.mxu0 %v2648
  %v2751 = vpop.f32.mrf.mxu0
  %v2752 = vadd.f32 0.0, %v2751
  %v2753 = vpop.f32.mrf.mxu0
  %v2754 = vpop.f32.mrf.mxu0
  %v2755 = vadd.f32 0.0, %v2754
  %v2756 = vpop.f32.mrf.mxu0
  %2757 = vmatprep.mubr.bf16.mxu0 0
  %2758 = vmatmul.mubr.bf16.gmra.mxu0 %v2649
  %v2759 = vpop.f32.mrf.mxu0
  %v2760 = vadd.f32 0.0, %v2759
  %v2761 = vpop.f32.mrf.mxu0
  %v2762 = vpop.f32.mrf.mxu0
  %v2763 = vadd.f32 0.0, %v2762
  %v2764 = vpop.f32.mrf.mxu0
  %2765 = vmatprep.mubr.bf16.mxu0 0
  %2766 = vmatmul.mubr.bf16.gmra.mxu0 %v2650
  %v2767 = vpop.f32.mrf.mxu0
  %v2768 = vadd.f32 0.0, %v2767
  %v2769 = vpop.f32.mrf.mxu0
  %v2770 = vpop.f32.mrf.mxu0
  %v2771 = vadd.f32 0.0, %v2770
  %v2772 = vpop.f32.mrf.mxu0
  %2773 = vmatprep.mubr.bf16.mxu0 0
  %2774 = vmatmul.mubr.bf16.gmra.mxu0 %v2651
  %v2775 = vpop.f32.mrf.mxu0
  %v2776 = vadd.f32 0.0, %v2775
  %v2777 = vpop.f32.mrf.mxu0
  %v2778 = vpop.f32.mrf.mxu0
  %v2779 = vadd.f32 0.0, %v2778
  %v2780 = vpop.f32.mrf.mxu0
  %2781 = vdwg.mxu0
  %vm2782 = vcmp.gt.f32.partialorder %v2752, 0.0
  %vm2783 = vcmp.gt.f32.partialorder %v2755, 0.0
  %vm2784 = vcmp.gt.f32.partialorder %v2760, 0.0
  %vm2785 = vcmp.gt.f32.partialorder %v2763, 0.0
  %vm2786 = vcmp.gt.f32.partialorder %v2768, 0.0
  %vm2787 = vcmp.gt.f32.partialorder %v2771, 0.0
  %vm2788 = vcmp.gt.f32.partialorder %v2776, 0.0
  %vm2789 = vcmp.gt.f32.partialorder %v2779, 0.0
  %v2790 = vmul.f32 %v2752, 0.01
  %v2791 = vmul.f32 %v2755, 0.01
  %v2792 = vmul.f32 %v2760, 0.01
  %v2793 = vmul.f32 %v2763, 0.01
  %v2794 = vmul.f32 %v2768, 0.01
  %v2795 = vmul.f32 %v2771, 0.01
  %v2796 = vmul.f32 %v2776, 0.01
  %v2797 = vmul.f32 %v2779, 0.01
  %v2798 = vsel %vm2782, %v2752, %v2790
  %v2799 = vsel %vm2783, %v2755, %v2791
  %v2800 = vsel %vm2784, %v2760, %v2792
  %v2801 = vsel %vm2785, %v2763, %v2793
  %v2802 = vsel %vm2786, %v2768, %v2794
  %v2803 = vsel %vm2787, %v2771, %v2795
  %v2804 = vsel %vm2788, %v2776, %v2796
  %v2805 = vsel %vm2789, %v2779, %v2797
  %v2806 = vpack.c.bf16 %v2799, %v2798
  %v2807 = vpack.c.bf16 %v2801, %v2800
  %v2808 = vpack.c.bf16 %v2803, %v2802
  %v2809 = vpack.c.bf16 %v2805, %v2804
  %2810 = vmatprep.subr.bf16.mxu0 0
  %2811 = vmatpush1.bf16.msra.mxu0 0
  %2812 = vmatprep.subr.bf16.mxu0 0
  %2813 = vmatpush1.bf16.msra.mxu0 0
  %2814 = vmatprep.subr.bf16.mxu0 0
  %2815 = vmatpush1.bf16.msra.mxu0 0
  %2816 = vmatprep.subr.bf16.mxu0 0
  %2817 = vmatpush1.bf16.msra.mxu0 0
  %2818 = vmatprep.subr.bf16.mxu0 0
  %2819 = vmatpush1.bf16.msra.mxu0 0
  %2820 = vmatprep.subr.bf16.mxu0 0
  %2821 = vmatpush1.bf16.msra.mxu0 0
  %2822 = vmatprep.subr.bf16.mxu0 0
  %2823 = vmatpush1.bf16.msra.mxu0 0
  %2824 = vmatprep.subr.bf16.mxu0 0
  %2825 = vmatpush1.bf16.msra.mxu0 %v2806
  %2826 = vmatprep.subr.bf16.mxu0 0
  %2827 = vmatpush2.bf16.msra.mxu0 0
  %2828 = vmatprep.subr.bf16.mxu0 0
  %2829 = vmatpush2.bf16.msra.mxu0 0
  %2830 = vmatprep.subr.bf16.mxu0 0
  %2831 = vmatpush2.bf16.msra.mxu0 0
  %2832 = vmatprep.subr.bf16.mxu0 0
  %2833 = vmatpush2.bf16.msra.mxu0 0
  %2834 = vmatprep.subr.bf16.mxu0 0
  %2835 = vmatpush2.bf16.msra.mxu0 0
  %2836 = vmatprep.subr.bf16.mxu0 0
  %2837 = vmatpush2.bf16.msra.mxu0 0
  %2838 = vmatprep.subr.bf16.mxu0 0
  %2839 = vmatpush2.bf16.msra.mxu0 0
  %2840 = vmatprep.subr.bf16.mxu0 0
  %2841 = vmatpush2.bf16.msra.mxu0 0
  %2842 = vmatprep.mubr.bf16.mxu0 0
  %2843 = vmatmul.mubr.bf16.gmra.mxu0 %v2248
  %v2844 = vpop.f32.mrf.mxu0
  %v2845 = vadd.f32 0.0, %v2844
  %v2846 = vpop.f32.mrf.mxu0
  %v2847 = vpop.f32.mrf.mxu0
  %v2848 = vadd.f32 0.0, %v2847
  %v2849 = vpop.f32.mrf.mxu0
  %2850 = vdwg.mxu0
  %2851 = vmatprep.subr.bf16.mxu0 0
  %2852 = vmatpush1.bf16.msra.mxu0 0
  %2853 = vmatprep.subr.bf16.mxu0 0
  %2854 = vmatpush1.bf16.msra.mxu0 0
  %2855 = vmatprep.subr.bf16.mxu0 0
  %2856 = vmatpush1.bf16.msra.mxu0 0
  %2857 = vmatprep.subr.bf16.mxu0 0
  %2858 = vmatpush1.bf16.msra.mxu0 0
  %2859 = vmatprep.subr.bf16.mxu0 0
  %2860 = vmatpush1.bf16.msra.mxu0 0
  %2861 = vmatprep.subr.bf16.mxu0 0
  %2862 = vmatpush1.bf16.msra.mxu0 0
  %2863 = vmatprep.subr.bf16.mxu0 0
  %2864 = vmatpush1.bf16.msra.mxu0 0
  %2865 = vmatprep.subr.bf16.mxu0 0
  %2866 = vmatpush1.bf16.msra.mxu0 %v2807
  %2867 = vmatprep.subr.bf16.mxu0 0
  %2868 = vmatpush2.bf16.msra.mxu0 0
  %2869 = vmatprep.subr.bf16.mxu0 0
  %2870 = vmatpush2.bf16.msra.mxu0 0
  %2871 = vmatprep.subr.bf16.mxu0 0
  %2872 = vmatpush2.bf16.msra.mxu0 0
  %2873 = vmatprep.subr.bf16.mxu0 0
  %2874 = vmatpush2.bf16.msra.mxu0 0
  %2875 = vmatprep.subr.bf16.mxu0 0
  %2876 = vmatpush2.bf16.msra.mxu0 0
  %2877 = vmatprep.subr.bf16.mxu0 0
  %2878 = vmatpush2.bf16.msra.mxu0 0
  %2879 = vmatprep.subr.bf16.mxu0 0
  %2880 = vmatpush2.bf16.msra.mxu0 0
  %2881 = vmatprep.subr.bf16.mxu0 0
  %2882 = vmatpush2.bf16.msra.mxu0 0
  %2883 = vmatprep.mubr.bf16.mxu0 0
  %2884 = vmatmul.mubr.bf16.gmra.mxu0 %v2292
  %v2885 = vpop.f32.mrf.mxu0
  %v2886 = vadd.f32 0.0, %v2885
  %v2887 = vpop.f32.mrf.mxu0
  %v2888 = vpop.f32.mrf.mxu0
  %v2889 = vadd.f32 0.0, %v2888
  %v2890 = vpop.f32.mrf.mxu0
  %2891 = vdwg.mxu0
  %2892 = vmatprep.subr.bf16.mxu0 0
  %2893 = vmatpush1.bf16.msra.mxu0 0
  %2894 = vmatprep.subr.bf16.mxu0 0
  %2895 = vmatpush1.bf16.msra.mxu0 0
  %2896 = vmatprep.subr.bf16.mxu0 0
  %2897 = vmatpush1.bf16.msra.mxu0 0
  %2898 = vmatprep.subr.bf16.mxu0 0
  %2899 = vmatpush1.bf16.msra.mxu0 0
  %2900 = vmatprep.subr.bf16.mxu0 0
  %2901 = vmatpush1.bf16.msra.mxu0 0
  %2902 = vmatprep.subr.bf16.mxu0 0
  %2903 = vmatpush1.bf16.msra.mxu0 0
  %2904 = vmatprep.subr.bf16.mxu0 0
  %2905 = vmatpush1.bf16.msra.mxu0 0
  %2906 = vmatprep.subr.bf16.mxu0 0
  %2907 = vmatpush1.bf16.msra.mxu0 %v2808
  %2908 = vmatprep.subr.bf16.mxu0 0
  %2909 = vmatpush2.bf16.msra.mxu0 0
  %2910 = vmatprep.subr.bf16.mxu0 0
  %2911 = vmatpush2.bf16.msra.mxu0 0
  %2912 = vmatprep.subr.bf16.mxu0 0
  %2913 = vmatpush2.bf16.msra.mxu0 0
  %2914 = vmatprep.subr.bf16.mxu0 0
  %2915 = vmatpush2.bf16.msra.mxu0 0
  %2916 = vmatprep.subr.bf16.mxu0 0
  %2917 = vmatpush2.bf16.msra.mxu0 0
  %2918 = vmatprep.subr.bf16.mxu0 0
  %2919 = vmatpush2.bf16.msra.mxu0 0
  %2920 = vmatprep.subr.bf16.mxu0 0
  %2921 = vmatpush2.bf16.msra.mxu0 0
  %2922 = vmatprep.subr.bf16.mxu0 0
  %2923 = vmatpush2.bf16.msra.mxu0 0
  %2924 = vmatprep.mubr.bf16.mxu0 0
  %2925 = vmatmul.mubr.bf16.gmra.mxu0 %v2336
  %v2926 = vpop.f32.mrf.mxu0
  %v2927 = vadd.f32 0.0, %v2926
  %v2928 = vpop.f32.mrf.mxu0
  %v2929 = vpop.f32.mrf.mxu0
  %v2930 = vadd.f32 0.0, %v2929
  %v2931 = vpop.f32.mrf.mxu0
  %2932 = vdwg.mxu0
  %2933 = vmatprep.subr.bf16.mxu0 0
  %2934 = vmatpush1.bf16.msra.mxu0 0
  %2935 = vmatprep.subr.bf16.mxu0 0
  %2936 = vmatpush1.bf16.msra.mxu0 0
  %2937 = vmatprep.subr.bf16.mxu0 0
  %2938 = vmatpush1.bf16.msra.mxu0 0
  %2939 = vmatprep.subr.bf16.mxu0 0
  %2940 = vmatpush1.bf16.msra.mxu0 0
  %2941 = vmatprep.subr.bf16.mxu0 0
  %2942 = vmatpush1.bf16.msra.mxu0 0
  %2943 = vmatprep.subr.bf16.mxu0 0
  %2944 = vmatpush1.bf16.msra.mxu0 0
  %2945 = vmatprep.subr.bf16.mxu0 0
  %2946 = vmatpush1.bf16.msra.mxu0 0
  %2947 = vmatprep.subr.bf16.mxu0 0
  %2948 = vmatpush1.bf16.msra.mxu0 %v2809
  %2949 = vmatprep.subr.bf16.mxu0 0
  %2950 = vmatpush2.bf16.msra.mxu0 0
  %2951 = vmatprep.subr.bf16.mxu0 0
  %2952 = vmatpush2.bf16.msra.mxu0 0
  %2953 = vmatprep.subr.bf16.mxu0 0
  %2954 = vmatpush2.bf16.msra.mxu0 0
  %2955 = vmatprep.subr.bf16.mxu0 0
  %2956 = vmatpush2.bf16.msra.mxu0 0
  %2957 = vmatprep.subr.bf16.mxu0 0
  %2958 = vmatpush2.bf16.msra.mxu0 0
  %2959 = vmatprep.subr.bf16.mxu0 0
  %2960 = vmatpush2.bf16.msra.mxu0 0
  %2961 = vmatprep.subr.bf16.mxu0 0
  %2962 = vmatpush2.bf16.msra.mxu0 0
  %2963 = vmatprep.subr.bf16.mxu0 0
  %2964 = vmatpush2.bf16.msra.mxu0 0
  %2965 = vmatprep.mubr.bf16.mxu0 0
  %2966 = vmatmul.mubr.bf16.gmra.mxu0 %v2380
  %v2967 = vpop.f32.mrf.mxu0
  %v2968 = vadd.f32 0.0, %v2967
  %v2969 = vpop.f32.mrf.mxu0
  %v2970 = vpop.f32.mrf.mxu0
  %v2971 = vadd.f32 0.0, %v2970
  %v2972 = vpop.f32.mrf.mxu0
  %2973 = vdwg.mxu0
  %s2974 = scalar_lea.vmem %s8, 128
  %v2975 = vld [vmem:[%s2974] sm:$0xf]
  %v2976 = vld [vmem:[%s2974 + $0x4] sm:$0xf]
  %v2977 = vld [vmem:[%s2974 + $0x8] sm:$0xf]
  %v2978 = vld [vmem:[%s2974 + $0xc] sm:$0xf]
  %v2979 = vld [vmem:[%s2974 + $0x10] sm:$0xf]
  %v2980 = vld [vmem:[%s2974 + $0x14] sm:$0xf]
  %v2981 = vld [vmem:[%s2974 + $0x18] sm:$0xf]
  %v2982 = vld [vmem:[%s2974 + $0x1c] sm:$0xf]
  %v2983 = vld [vmem:[%s2974 + $0x20] sm:$0xf]
  %v2984 = vld [vmem:[%s2974 + $0x24] sm:$0xf]
  %v2985 = vld [vmem:[%s2974 + $0x28] sm:$0xf]
  %v2986 = vld [vmem:[%s2974 + $0x2c] sm:$0xf]
  %v2987 = vld [vmem:[%s2974 + $0x30] sm:$0xf]
  %v2988 = vld [vmem:[%s2974 + $0x34] sm:$0xf]
  %v2989 = vld [vmem:[%s2974 + $0x38] sm:$0xf]
  %v2990 = vld [vmem:[%s2974 + $0x3c] sm:$0xf]
  %v2991 = vld [vmem:[%s2974 + $0x40] sm:$0xf]
  %v2992 = vld [vmem:[%s2974 + $0x44] sm:$0xf]
  %v2993 = vld [vmem:[%s2974 + $0x48] sm:$0xf]
  %v2994 = vld [vmem:[%s2974 + $0x4c] sm:$0xf]
  %v2995 = vld [vmem:[%s2974 + $0x50] sm:$0xf]
  %v2996 = vld [vmem:[%s2974 + $0x54] sm:$0xf]
  %v2997 = vld [vmem:[%s2974 + $0x58] sm:$0xf]
  %v2998 = vld [vmem:[%s2974 + $0x5c] sm:$0xf]
  %v2999 = vld [vmem:[%s2974 + $0x60] sm:$0xf]
  %v3000 = vld [vmem:[%s2974 + $0x64] sm:$0xf]
  %v3001 = vld [vmem:[%s2974 + $0x68] sm:$0xf]
  %v3002 = vld [vmem:[%s2974 + $0x6c] sm:$0xf]
  %v3003 = vld [vmem:[%s2974 + $0x70] sm:$0xf]
  %v3004 = vld [vmem:[%s2974 + $0x74] sm:$0xf]
  %v3005 = vld [vmem:[%s2974 + $0x78] sm:$0xf]
  %v3006 = vld [vmem:[%s2974 + $0x7c] sm:$0xf]
  %v3039 = vunpack.c.l.b16 %v2975
  %v3040 = vunpack.c.l.b16 %v2976
  %v3041 = vunpack.c.l.b16 %v2977
  %v3042 = vunpack.c.l.b16 %v2978
  %v3043 = vunpack.c.l.b16 %v2979
  %v3044 = vunpack.c.l.b16 %v2980
  %v3045 = vunpack.c.l.b16 %v2981
  %v3046 = vunpack.c.l.b16 %v2982
  %v3047 = vunpack.c.l.b16 %v2983
  %v3048 = vunpack.c.l.b16 %v2984
  %v3049 = vunpack.c.l.b16 %v2985
  %v3050 = vunpack.c.l.b16 %v2986
  %v3051 = vunpack.c.l.b16 %v2987
  %v3052 = vunpack.c.l.b16 %v2988
  %v3053 = vunpack.c.l.b16 %v2989
  %v3054 = vunpack.c.l.b16 %v2990
  %v3055 = vunpack.c.l.b16 %v2991
  %v3056 = vunpack.c.l.b16 %v2992
  %v3057 = vunpack.c.l.b16 %v2993
  %v3058 = vunpack.c.l.b16 %v2994
  %v3059 = vunpack.c.l.b16 %v2995
  %v3060 = vunpack.c.l.b16 %v2996
  %v3061 = vunpack.c.l.b16 %v2997
  %v3062 = vunpack.c.l.b16 %v2998
  %v3063 = vunpack.c.l.b16 %v2999
  %v3064 = vunpack.c.l.b16 %v3000
  %v3065 = vunpack.c.l.b16 %v3001
  %v3066 = vunpack.c.l.b16 %v3002
  %v3067 = vunpack.c.l.b16 %v3003
  %v3068 = vunpack.c.l.b16 %v3004
  %v3069 = vunpack.c.l.b16 %v3005
  %v3070 = vunpack.c.l.b16 %v3006
  %v3071 = vpack.c.b16 %v3040, %v3039
  %v3072 = vpack.c.b16 %v3042, %v3041
  %v3073 = vpack.c.b16 %v3044, %v3043
  %v3074 = vpack.c.b16 %v3046, %v3045
  %v3075 = vpack.c.b16 %v3048, %v3047
  %v3076 = vpack.c.b16 %v3050, %v3049
  %v3077 = vpack.c.b16 %v3052, %v3051
  %v3078 = vpack.c.b16 %v3054, %v3053
  %v3079 = vpack.c.b16 %v3056, %v3055
  %v3080 = vpack.c.b16 %v3058, %v3057
  %v3081 = vpack.c.b16 %v3060, %v3059
  %v3082 = vpack.c.b16 %v3062, %v3061
  %v3083 = vpack.c.b16 %v3064, %v3063
  %v3084 = vpack.c.b16 %v3066, %v3065
  %v3085 = vpack.c.b16 %v3068, %v3067
  %v3086 = vpack.c.b16 %v3070, %v3069
  %3103 = vmatprep.subr.bf16.mxu0 0
  %3104 = vmatpush1.bf16.msra.mxu0 %v3078
  %3105 = vmatprep.subr.bf16.mxu0 0
  %3106 = vmatpush1.bf16.msra.mxu0 %v3077
  %3107 = vmatprep.subr.bf16.mxu0 0
  %3108 = vmatpush1.bf16.msra.mxu0 %v3076
  %3109 = vmatprep.subr.bf16.mxu0 0
  %3110 = vmatpush1.bf16.msra.mxu0 %v3075
  %3111 = vmatprep.subr.bf16.mxu0 0
  %3112 = vmatpush1.bf16.msra.mxu0 %v3074
  %3113 = vmatprep.subr.bf16.mxu0 0
  %3114 = vmatpush1.bf16.msra.mxu0 %v3073
  %3115 = vmatprep.subr.bf16.mxu0 0
  %3116 = vmatpush1.bf16.msra.mxu0 %v3072
  %3117 = vmatprep.subr.bf16.mxu0 0
  %3118 = vmatpush1.bf16.msra.mxu0 %v3071
  %3119 = vmatprep.subr.bf16.mxu0 0
  %3120 = vmatpush2.bf16.msra.mxu0 %v3086
  %3121 = vmatprep.subr.bf16.mxu0 0
  %3122 = vmatpush2.bf16.msra.mxu0 %v3085
  %3123 = vmatprep.subr.bf16.mxu0 0
  %3124 = vmatpush2.bf16.msra.mxu0 %v3084
  %3125 = vmatprep.subr.bf16.mxu0 0
  %3126 = vmatpush2.bf16.msra.mxu0 %v3083
  %3127 = vmatprep.subr.bf16.mxu0 0
  %3128 = vmatpush2.bf16.msra.mxu0 %v3082
  %3129 = vmatprep.subr.bf16.mxu0 0
  %3130 = vmatpush2.bf16.msra.mxu0 %v3081
  %3131 = vmatprep.subr.bf16.mxu0 0
  %3132 = vmatpush2.bf16.msra.mxu0 %v3080
  %3133 = vmatprep.subr.bf16.mxu0 0
  %3134 = vmatpush2.bf16.msra.mxu0 %v3079
  %3135 = vmatprep.mubr.bf16.mxu0 %v203
  %3136 = vmatmul.mubr.bf16.gmra.mxu0 %v2648
  %v3137 = vpop.f32.mrf.mxu0
  %v3138 = vadd.f32 %v2845, %v3137
  %v3139 = vpop.f32.mrf.mxu0
  %v3140 = vpop.f32.mrf.mxu0
  %v3141 = vadd.f32 %v2848, %v3140
  %v3142 = vpop.f32.mrf.mxu0
  %3143 = vmatprep.mubr.bf16.mxu0 %v204
  %3144 = vmatmul.mubr.bf16.gmra.mxu0 %v2649
  %v3145 = vpop.f32.mrf.mxu0
  %v3146 = vadd.f32 %v2886, %v3145
  %v3147 = vpop.f32.mrf.mxu0
  %v3148 = vpop.f32.mrf.mxu0
  %v3149 = vadd.f32 %v2889, %v3148
  %v3150 = vpop.f32.mrf.mxu0
  %3151 = vmatprep.mubr.bf16.mxu0 %v205
  %3152 = vmatmul.mubr.bf16.gmra.mxu0 %v2650
  %v3153 = vpop.f32.mrf.mxu0
  %v3154 = vadd.f32 %v2927, %v3153
  %v3155 = vpop.f32.mrf.mxu0
  %v3156 = vpop.f32.mrf.mxu0
  %v3157 = vadd.f32 %v2930, %v3156
  %v3158 = vpop.f32.mrf.mxu0
  %3159 = vmatprep.mubr.bf16.mxu0 %v206
  %3160 = vmatmul.mubr.bf16.gmra.mxu0 %v2651
  %v3161 = vpop.f32.mrf.mxu0
  %v3162 = vadd.f32 %v2968, %v3161
  %v3163 = vpop.f32.mrf.mxu0
  %v3164 = vpop.f32.mrf.mxu0
  %v3165 = vadd.f32 %v2971, %v3164
  %v3166 = vpop.f32.mrf.mxu0
  %3167 = vdwg.mxu0
  %v3168 = vadd.f32 %v3138, %v2055
  %v3169 = vadd.f32 %v3141, %v2058
  %v3170 = vadd.f32 %v3146, %v2063
  %v3171 = vadd.f32 %v3149, %v2066
  %v3172 = vadd.f32 %v3154, %v2071
  %v3173 = vadd.f32 %v3157, %v2074
  %v3174 = vadd.f32 %v3162, %v2079
  %v3175 = vadd.f32 %v3165, %v2082
  %vm3176 = vcmp.gt.f32.partialorder %v3168, 0.0
  %vm3177 = vcmp.gt.f32.partialorder %v3169, 0.0
  %vm3178 = vcmp.gt.f32.partialorder %v3170, 0.0
  %vm3179 = vcmp.gt.f32.partialorder %v3171, 0.0
  %vm3180 = vcmp.gt.f32.partialorder %v3172, 0.0
  %vm3181 = vcmp.gt.f32.partialorder %v3173, 0.0
  %vm3182 = vcmp.gt.f32.partialorder %v3174, 0.0
  %vm3183 = vcmp.gt.f32.partialorder %v3175, 0.0
  %v3184 = vmul.f32 %v3168, 0.01
  %v3185 = vmul.f32 %v3169, 0.01
  %v3186 = vmul.f32 %v3170, 0.01
  %v3187 = vmul.f32 %v3171, 0.01
  %v3188 = vmul.f32 %v3172, 0.01
  %v3189 = vmul.f32 %v3173, 0.01
  %v3190 = vmul.f32 %v3174, 0.01
  %v3191 = vmul.f32 %v3175, 0.01
  %v3192 = vsel %vm3176, %v3168, %v3184
  %v3193 = vsel %vm3177, %v3169, %v3185
  %v3194 = vsel %vm3178, %v3170, %v3186
  %v3195 = vsel %vm3179, %v3171, %v3187
  %v3196 = vsel %vm3180, %v3172, %v3188
  %v3197 = vsel %vm3181, %v3173, %v3189
  %v3198 = vsel %vm3182, %v3174, %v3190
  %v3199 = vsel %vm3183, %v3175, %v3191
  %v3200 = vpack.c.bf16 %v3193, %v3192
  %v3201 = vpack.c.bf16 %v3195, %v3194
  %v3202 = vpack.c.bf16 %v3197, %v3196
  %v3203 = vpack.c.bf16 %v3199, %v3198
  %s3204 = scalar_lea.vmem %s7, 128
  %v3205 = vld [vmem:[%s3204] sm:$0xf]
  %v3206 = vld [vmem:[%s3204 + $0x4] sm:$0xf]
  %v3207 = vld [vmem:[%s3204 + $0x8] sm:$0xf]
  %v3208 = vld [vmem:[%s3204 + $0xc] sm:$0xf]
  %v3209 = vld [vmem:[%s3204 + $0x10] sm:$0xf]
  %v3210 = vld [vmem:[%s3204 + $0x14] sm:$0xf]
  %v3211 = vld [vmem:[%s3204 + $0x18] sm:$0xf]
  %v3212 = vld [vmem:[%s3204 + $0x1c] sm:$0xf]
  %v3213 = vld [vmem:[%s3204 + $0x20] sm:$0xf]
  %v3214 = vld [vmem:[%s3204 + $0x24] sm:$0xf]
  %v3215 = vld [vmem:[%s3204 + $0x28] sm:$0xf]
  %v3216 = vld [vmem:[%s3204 + $0x2c] sm:$0xf]
  %v3217 = vld [vmem:[%s3204 + $0x30] sm:$0xf]
  %v3218 = vld [vmem:[%s3204 + $0x34] sm:$0xf]
  %v3219 = vld [vmem:[%s3204 + $0x38] sm:$0xf]
  %v3220 = vld [vmem:[%s3204 + $0x3c] sm:$0xf]
  %v3237 = vunpack.c.l.b16 %v3205
  %v3238 = vunpack.c.l.b16 %v3206
  %v3239 = vunpack.c.l.b16 %v3207
  %v3240 = vunpack.c.l.b16 %v3208
  %v3241 = vunpack.c.l.b16 %v3209
  %v3242 = vunpack.c.l.b16 %v3210
  %v3243 = vunpack.c.l.b16 %v3211
  %v3244 = vunpack.c.l.b16 %v3212
  %v3245 = vunpack.c.l.b16 %v3213
  %v3246 = vunpack.c.l.b16 %v3214
  %v3247 = vunpack.c.l.b16 %v3215
  %v3248 = vunpack.c.l.b16 %v3216
  %v3249 = vunpack.c.l.b16 %v3217
  %v3250 = vunpack.c.l.b16 %v3218
  %v3251 = vunpack.c.l.b16 %v3219
  %v3252 = vunpack.c.l.b16 %v3220
  %v3253 = vpack.c.b16 %v3238, %v3237
  %v3254 = vpack.c.b16 %v3240, %v3239
  %v3255 = vpack.c.b16 %v3242, %v3241
  %v3256 = vpack.c.b16 %v3244, %v3243
  %v3257 = vpack.c.b16 %v3246, %v3245
  %v3258 = vpack.c.b16 %v3248, %v3247
  %v3259 = vpack.c.b16 %v3250, %v3249
  %v3260 = vpack.c.b16 %v3252, %v3251
  %3269 = vmatprep.subr.bf16.mxu0 0
  %3270 = vmatpush1.bf16.msra.mxu0 %v3260
  %3271 = vmatprep.subr.bf16.mxu0 0
  %3272 = vmatpush1.bf16.msra.mxu0 %v3259
  %3273 = vmatprep.subr.bf16.mxu0 0
  %3274 = vmatpush1.bf16.msra.mxu0 %v3258
  %3275 = vmatprep.subr.bf16.mxu0 0
  %3276 = vmatpush1.bf16.msra.mxu0 %v3257
  %3277 = vmatprep.subr.bf16.mxu0 0
  %3278 = vmatpush1.bf16.msra.mxu0 %v3256
  %3279 = vmatprep.subr.bf16.mxu0 0
  %3280 = vmatpush1.bf16.msra.mxu0 %v3255
  %3281 = vmatprep.subr.bf16.mxu0 0
  %3282 = vmatpush1.bf16.msra.mxu0 %v3254
  %3283 = vmatprep.subr.bf16.mxu0 0
  %3284 = vmatpush1.bf16.msra.mxu0 %v3253
  %3285 = vmatprep.subr.bf16.mxu0 0
  %3286 = vmatpush2.bf16.msra.mxu0 0
  %3287 = vmatprep.subr.bf16.mxu0 0
  %3288 = vmatpush2.bf16.msra.mxu0 0
  %3289 = vmatprep.subr.bf16.mxu0 0
  %3290 = vmatpush2.bf16.msra.mxu0 0
  %3291 = vmatprep.subr.bf16.mxu0 0
  %3292 = vmatpush2.bf16.msra.mxu0 0
  %3293 = vmatprep.subr.bf16.mxu0 0
  %3294 = vmatpush2.bf16.msra.mxu0 0
  %3295 = vmatprep.subr.bf16.mxu0 0
  %3296 = vmatpush2.bf16.msra.mxu0 0
  %3297 = vmatprep.subr.bf16.mxu0 0
  %3298 = vmatpush2.bf16.msra.mxu0 0
  %3299 = vmatprep.subr.bf16.mxu0 0
  %3300 = vmatpush2.bf16.msra.mxu0 0
  %3301 = vmatprep.mubr.bf16.mxu0 0
  %3302 = vmatmul.mubr.bf16.gmra.mxu0 %v3200
  %v3303 = vpop.f32.mrf.mxu0
  %v3304 = vadd.f32 0.0, %v3303
  %v3305 = vpop.f32.mrf.mxu0
  %v3306 = vpop.f32.mrf.mxu0
  %v3307 = vadd.f32 0.0, %v3306
  %v3308 = vpop.f32.mrf.mxu0
  %3309 = vmatprep.mubr.bf16.mxu0 0
  %3310 = vmatmul.mubr.bf16.gmra.mxu0 %v3201
  %v3311 = vpop.f32.mrf.mxu0
  %v3312 = vadd.f32 0.0, %v3311
  %v3313 = vpop.f32.mrf.mxu0
  %v3314 = vpop.f32.mrf.mxu0
  %v3315 = vadd.f32 0.0, %v3314
  %v3316 = vpop.f32.mrf.mxu0
  %3317 = vmatprep.mubr.bf16.mxu0 0
  %3318 = vmatmul.mubr.bf16.gmra.mxu0 %v3202
  %v3319 = vpop.f32.mrf.mxu0
  %v3320 = vadd.f32 0.0, %v3319
  %v3321 = vpop.f32.mrf.mxu0
  %v3322 = vpop.f32.mrf.mxu0
  %v3323 = vadd.f32 0.0, %v3322
  %v3324 = vpop.f32.mrf.mxu0
  %3325 = vmatprep.mubr.bf16.mxu0 0
  %3326 = vmatmul.mubr.bf16.gmra.mxu0 %v3203
  %v3327 = vpop.f32.mrf.mxu0
  %v3328 = vadd.f32 0.0, %v3327
  %v3329 = vpop.f32.mrf.mxu0
  %v3330 = vpop.f32.mrf.mxu0
  %v3331 = vadd.f32 0.0, %v3330
  %v3332 = vpop.f32.mrf.mxu0
  %3333 = vdwg.mxu0
  %vm3334 = vcmp.gt.f32.partialorder %v3304, 0.0
  %vm3335 = vcmp.gt.f32.partialorder %v3307, 0.0
  %vm3336 = vcmp.gt.f32.partialorder %v3312, 0.0
  %vm3337 = vcmp.gt.f32.partialorder %v3315, 0.0
  %vm3338 = vcmp.gt.f32.partialorder %v3320, 0.0
  %vm3339 = vcmp.gt.f32.partialorder %v3323, 0.0
  %vm3340 = vcmp.gt.f32.partialorder %v3328, 0.0
  %vm3341 = vcmp.gt.f32.partialorder %v3331, 0.0
  %v3342 = vmul.f32 %v3304, 0.01
  %v3343 = vmul.f32 %v3307, 0.01
  %v3344 = vmul.f32 %v3312, 0.01
  %v3345 = vmul.f32 %v3315, 0.01
  %v3346 = vmul.f32 %v3320, 0.01
  %v3347 = vmul.f32 %v3323, 0.01
  %v3348 = vmul.f32 %v3328, 0.01
  %v3349 = vmul.f32 %v3331, 0.01
  %v3350 = vsel %vm3334, %v3304, %v3342
  %v3351 = vsel %vm3335, %v3307, %v3343
  %v3352 = vsel %vm3336, %v3312, %v3344
  %v3353 = vsel %vm3337, %v3315, %v3345
  %v3354 = vsel %vm3338, %v3320, %v3346
  %v3355 = vsel %vm3339, %v3323, %v3347
  %v3356 = vsel %vm3340, %v3328, %v3348
  %v3357 = vsel %vm3341, %v3331, %v3349
  %v3358 = vpack.c.bf16 %v3351, %v3350
  %v3359 = vpack.c.bf16 %v3353, %v3352
  %v3360 = vpack.c.bf16 %v3355, %v3354
  %v3361 = vpack.c.bf16 %v3357, %v3356
  %3362 = vmatprep.subr.bf16.mxu0 0
  %3363 = vmatpush1.bf16.msra.mxu0 0
  %3364 = vmatprep.subr.bf16.mxu0 0
  %3365 = vmatpush1.bf16.msra.mxu0 0
  %3366 = vmatprep.subr.bf16.mxu0 0
  %3367 = vmatpush1.bf16.msra.mxu0 0
  %3368 = vmatprep.subr.bf16.mxu0 0
  %3369 = vmatpush1.bf16.msra.mxu0 0
  %3370 = vmatprep.subr.bf16.mxu0 0
  %3371 = vmatpush1.bf16.msra.mxu0 0
  %3372 = vmatprep.subr.bf16.mxu0 0
  %3373 = vmatpush1.bf16.msra.mxu0 0
  %3374 = vmatprep.subr.bf16.mxu0 0
  %3375 = vmatpush1.bf16.msra.mxu0 0
  %3376 = vmatprep.subr.bf16.mxu0 0
  %3377 = vmatpush1.bf16.msra.mxu0 %v3358
  %3378 = vmatprep.subr.bf16.mxu0 0
  %3379 = vmatpush2.bf16.msra.mxu0 0
  %3380 = vmatprep.subr.bf16.mxu0 0
  %3381 = vmatpush2.bf16.msra.mxu0 0
  %3382 = vmatprep.subr.bf16.mxu0 0
  %3383 = vmatpush2.bf16.msra.mxu0 0
  %3384 = vmatprep.subr.bf16.mxu0 0
  %3385 = vmatpush2.bf16.msra.mxu0 0
  %3386 = vmatprep.subr.bf16.mxu0 0
  %3387 = vmatpush2.bf16.msra.mxu0 0
  %3388 = vmatprep.subr.bf16.mxu0 0
  %3389 = vmatpush2.bf16.msra.mxu0 0
  %3390 = vmatprep.subr.bf16.mxu0 0
  %3391 = vmatpush2.bf16.msra.mxu0 0
  %3392 = vmatprep.subr.bf16.mxu0 0
  %3393 = vmatpush2.bf16.msra.mxu0 0
  %3394 = vmatprep.mubr.bf16.mxu0 0
  %3395 = vmatmul.mubr.bf16.gmra.mxu0 %v2248
  %v3396 = vpop.f32.mrf.mxu0
  %v3397 = vadd.f32 0.0, %v3396
  %v3398 = vpop.f32.mrf.mxu0
  %v3399 = vpop.f32.mrf.mxu0
  %v3400 = vadd.f32 0.0, %v3399
  %v3401 = vpop.f32.mrf.mxu0
  %3402 = vdwg.mxu0
  %3403 = vmatprep.subr.bf16.mxu0 0
  %3404 = vmatpush1.bf16.msra.mxu0 0
  %3405 = vmatprep.subr.bf16.mxu0 0
  %3406 = vmatpush1.bf16.msra.mxu0 0
  %3407 = vmatprep.subr.bf16.mxu0 0
  %3408 = vmatpush1.bf16.msra.mxu0 0
  %3409 = vmatprep.subr.bf16.mxu0 0
  %3410 = vmatpush1.bf16.msra.mxu0 0
  %3411 = vmatprep.subr.bf16.mxu0 0
  %3412 = vmatpush1.bf16.msra.mxu0 0
  %3413 = vmatprep.subr.bf16.mxu0 0
  %3414 = vmatpush1.bf16.msra.mxu0 0
  %3415 = vmatprep.subr.bf16.mxu0 0
  %3416 = vmatpush1.bf16.msra.mxu0 0
  %3417 = vmatprep.subr.bf16.mxu0 0
  %3418 = vmatpush1.bf16.msra.mxu0 %v3359
  %3419 = vmatprep.subr.bf16.mxu0 0
  %3420 = vmatpush2.bf16.msra.mxu0 0
  %3421 = vmatprep.subr.bf16.mxu0 0
  %3422 = vmatpush2.bf16.msra.mxu0 0
  %3423 = vmatprep.subr.bf16.mxu0 0
  %3424 = vmatpush2.bf16.msra.mxu0 0
  %3425 = vmatprep.subr.bf16.mxu0 0
  %3426 = vmatpush2.bf16.msra.mxu0 0
  %3427 = vmatprep.subr.bf16.mxu0 0
  %3428 = vmatpush2.bf16.msra.mxu0 0
  %3429 = vmatprep.subr.bf16.mxu0 0
  %3430 = vmatpush2.bf16.msra.mxu0 0
  %3431 = vmatprep.subr.bf16.mxu0 0
  %3432 = vmatpush2.bf16.msra.mxu0 0
  %3433 = vmatprep.subr.bf16.mxu0 0
  %3434 = vmatpush2.bf16.msra.mxu0 0
  %3435 = vmatprep.mubr.bf16.mxu0 0
  %3436 = vmatmul.mubr.bf16.gmra.mxu0 %v2292
  %v3437 = vpop.f32.mrf.mxu0
  %v3438 = vadd.f32 0.0, %v3437
  %v3439 = vpop.f32.mrf.mxu0
  %v3440 = vpop.f32.mrf.mxu0
  %v3441 = vadd.f32 0.0, %v3440
  %v3442 = vpop.f32.mrf.mxu0
  %3443 = vdwg.mxu0
  %3444 = vmatprep.subr.bf16.mxu0 0
  %3445 = vmatpush1.bf16.msra.mxu0 0
  %3446 = vmatprep.subr.bf16.mxu0 0
  %3447 = vmatpush1.bf16.msra.mxu0 0
  %3448 = vmatprep.subr.bf16.mxu0 0
  %3449 = vmatpush1.bf16.msra.mxu0 0
  %3450 = vmatprep.subr.bf16.mxu0 0
  %3451 = vmatpush1.bf16.msra.mxu0 0
  %3452 = vmatprep.subr.bf16.mxu0 0
  %3453 = vmatpush1.bf16.msra.mxu0 0
  %3454 = vmatprep.subr.bf16.mxu0 0
  %3455 = vmatpush1.bf16.msra.mxu0 0
  %3456 = vmatprep.subr.bf16.mxu0 0
  %3457 = vmatpush1.bf16.msra.mxu0 0
  %3458 = vmatprep.subr.bf16.mxu0 0
  %3459 = vmatpush1.bf16.msra.mxu0 %v3360
  %3460 = vmatprep.subr.bf16.mxu0 0
  %3461 = vmatpush2.bf16.msra.mxu0 0
  %3462 = vmatprep.subr.bf16.mxu0 0
  %3463 = vmatpush2.bf16.msra.mxu0 0
  %3464 = vmatprep.subr.bf16.mxu0 0
  %3465 = vmatpush2.bf16.msra.mxu0 0
  %3466 = vmatprep.subr.bf16.mxu0 0
  %3467 = vmatpush2.bf16.msra.mxu0 0
  %3468 = vmatprep.subr.bf16.mxu0 0
  %3469 = vmatpush2.bf16.msra.mxu0 0
  %3470 = vmatprep.subr.bf16.mxu0 0
  %3471 = vmatpush2.bf16.msra.mxu0 0
  %3472 = vmatprep.subr.bf16.mxu0 0
  %3473 = vmatpush2.bf16.msra.mxu0 0
  %3474 = vmatprep.subr.bf16.mxu0 0
  %3475 = vmatpush2.bf16.msra.mxu0 0
  %3476 = vmatprep.mubr.bf16.mxu0 0
  %3477 = vmatmul.mubr.bf16.gmra.mxu0 %v2336
  %v3478 = vpop.f32.mrf.mxu0
  %v3479 = vadd.f32 0.0, %v3478
  %v3480 = vpop.f32.mrf.mxu0
  %v3481 = vpop.f32.mrf.mxu0
  %v3482 = vadd.f32 0.0, %v3481
  %v3483 = vpop.f32.mrf.mxu0
  %3484 = vdwg.mxu0
  %3485 = vmatprep.subr.bf16.mxu0 0
  %3486 = vmatpush1.bf16.msra.mxu0 0
  %3487 = vmatprep.subr.bf16.mxu0 0
  %3488 = vmatpush1.bf16.msra.mxu0 0
  %3489 = vmatprep.subr.bf16.mxu0 0
  %3490 = vmatpush1.bf16.msra.mxu0 0
  %3491 = vmatprep.subr.bf16.mxu0 0
  %3492 = vmatpush1.bf16.msra.mxu0 0
  %3493 = vmatprep.subr.bf16.mxu0 0
  %3494 = vmatpush1.bf16.msra.mxu0 0
  %3495 = vmatprep.subr.bf16.mxu0 0
  %3496 = vmatpush1.bf16.msra.mxu0 0
  %3497 = vmatprep.subr.bf16.mxu0 0
  %3498 = vmatpush1.bf16.msra.mxu0 0
  %3499 = vmatprep.subr.bf16.mxu0 0
  %3500 = vmatpush1.bf16.msra.mxu0 %v3361
  %3501 = vmatprep.subr.bf16.mxu0 0
  %3502 = vmatpush2.bf16.msra.mxu0 0
  %3503 = vmatprep.subr.bf16.mxu0 0
  %3504 = vmatpush2.bf16.msra.mxu0 0
  %3505 = vmatprep.subr.bf16.mxu0 0
  %3506 = vmatpush2.bf16.msra.mxu0 0
  %3507 = vmatprep.subr.bf16.mxu0 0
  %3508 = vmatpush2.bf16.msra.mxu0 0
  %3509 = vmatprep.subr.bf16.mxu0 0
  %3510 = vmatpush2.bf16.msra.mxu0 0
  %3511 = vmatprep.subr.bf16.mxu0 0
  %3512 = vmatpush2.bf16.msra.mxu0 0
  %3513 = vmatprep.subr.bf16.mxu0 0
  %3514 = vmatpush2.bf16.msra.mxu0 0
  %3515 = vmatprep.subr.bf16.mxu0 0
  %3516 = vmatpush2.bf16.msra.mxu0 0
  %3517 = vmatprep.mubr.bf16.mxu0 0
  %3518 = vmatmul.mubr.bf16.gmra.mxu0 %v2380
  %v3519 = vpop.f32.mrf.mxu0
  %v3520 = vadd.f32 0.0, %v3519
  %v3521 = vpop.f32.mrf.mxu0
  %v3522 = vpop.f32.mrf.mxu0
  %v3523 = vadd.f32 0.0, %v3522
  %v3524 = vpop.f32.mrf.mxu0
  %3525 = vdwg.mxu0
  %s3526 = scalar_lea.vmem %s8, 256
  %v3527 = vld [vmem:[%s3526] sm:$0xf]
  %v3528 = vld [vmem:[%s3526 + $0x4] sm:$0xf]
  %v3529 = vld [vmem:[%s3526 + $0x8] sm:$0xf]
  %v3530 = vld [vmem:[%s3526 + $0xc] sm:$0xf]
  %v3531 = vld [vmem:[%s3526 + $0x10] sm:$0xf]
  %v3532 = vld [vmem:[%s3526 + $0x14] sm:$0xf]
  %v3533 = vld [vmem:[%s3526 + $0x18] sm:$0xf]
  %v3534 = vld [vmem:[%s3526 + $0x1c] sm:$0xf]
  %v3535 = vld [vmem:[%s3526 + $0x20] sm:$0xf]
  %v3536 = vld [vmem:[%s3526 + $0x24] sm:$0xf]
  %v3537 = vld [vmem:[%s3526 + $0x28] sm:$0xf]
  %v3538 = vld [vmem:[%s3526 + $0x2c] sm:$0xf]
  %v3539 = vld [vmem:[%s3526 + $0x30] sm:$0xf]
  %v3540 = vld [vmem:[%s3526 + $0x34] sm:$0xf]
  %v3541 = vld [vmem:[%s3526 + $0x38] sm:$0xf]
  %v3542 = vld [vmem:[%s3526 + $0x3c] sm:$0xf]
  %v3543 = vld [vmem:[%s3526 + $0x40] sm:$0xf]
  %v3544 = vld [vmem:[%s3526 + $0x44] sm:$0xf]
  %v3545 = vld [vmem:[%s3526 + $0x48] sm:$0xf]
  %v3546 = vld [vmem:[%s3526 + $0x4c] sm:$0xf]
  %v3547 = vld [vmem:[%s3526 + $0x50] sm:$0xf]
  %v3548 = vld [vmem:[%s3526 + $0x54] sm:$0xf]
  %v3549 = vld [vmem:[%s3526 + $0x58] sm:$0xf]
  %v3550 = vld [vmem:[%s3526 + $0x5c] sm:$0xf]
  %v3551 = vld [vmem:[%s3526 + $0x60] sm:$0xf]
  %v3552 = vld [vmem:[%s3526 + $0x64] sm:$0xf]
  %v3553 = vld [vmem:[%s3526 + $0x68] sm:$0xf]
  %v3554 = vld [vmem:[%s3526 + $0x6c] sm:$0xf]
  %v3555 = vld [vmem:[%s3526 + $0x70] sm:$0xf]
  %v3556 = vld [vmem:[%s3526 + $0x74] sm:$0xf]
  %v3557 = vld [vmem:[%s3526 + $0x78] sm:$0xf]
  %v3558 = vld [vmem:[%s3526 + $0x7c] sm:$0xf]
  %v3591 = vunpack.c.l.b16 %v3527
  %v3592 = vunpack.c.l.b16 %v3528
  %v3593 = vunpack.c.l.b16 %v3529
  %v3594 = vunpack.c.l.b16 %v3530
  %v3595 = vunpack.c.l.b16 %v3531
  %v3596 = vunpack.c.l.b16 %v3532
  %v3597 = vunpack.c.l.b16 %v3533
  %v3598 = vunpack.c.l.b16 %v3534
  %v3599 = vunpack.c.l.b16 %v3535
  %v3600 = vunpack.c.l.b16 %v3536
  %v3601 = vunpack.c.l.b16 %v3537
  %v3602 = vunpack.c.l.b16 %v3538
  %v3603 = vunpack.c.l.b16 %v3539
  %v3604 = vunpack.c.l.b16 %v3540
  %v3605 = vunpack.c.l.b16 %v3541
  %v3606 = vunpack.c.l.b16 %v3542
  %v3607 = vunpack.c.l.b16 %v3543
  %v3608 = vunpack.c.l.b16 %v3544
  %v3609 = vunpack.c.l.b16 %v3545
  %v3610 = vunpack.c.l.b16 %v3546
  %v3611 = vunpack.c.l.b16 %v3547
  %v3612 = vunpack.c.l.b16 %v3548
  %v3613 = vunpack.c.l.b16 %v3549
  %v3614 = vunpack.c.l.b16 %v3550
  %v3615 = vunpack.c.l.b16 %v3551
  %v3616 = vunpack.c.l.b16 %v3552
  %v3617 = vunpack.c.l.b16 %v3553
  %v3618 = vunpack.c.l.b16 %v3554
  %v3619 = vunpack.c.l.b16 %v3555
  %v3620 = vunpack.c.l.b16 %v3556
  %v3621 = vunpack.c.l.b16 %v3557
  %v3622 = vunpack.c.l.b16 %v3558
  %v3623 = vpack.c.b16 %v3592, %v3591
  %v3624 = vpack.c.b16 %v3594, %v3593
  %v3625 = vpack.c.b16 %v3596, %v3595
  %v3626 = vpack.c.b16 %v3598, %v3597
  %v3627 = vpack.c.b16 %v3600, %v3599
  %v3628 = vpack.c.b16 %v3602, %v3601
  %v3629 = vpack.c.b16 %v3604, %v3603
  %v3630 = vpack.c.b16 %v3606, %v3605
  %v3631 = vpack.c.b16 %v3608, %v3607
  %v3632 = vpack.c.b16 %v3610, %v3609
  %v3633 = vpack.c.b16 %v3612, %v3611
  %v3634 = vpack.c.b16 %v3614, %v3613
  %v3635 = vpack.c.b16 %v3616, %v3615
  %v3636 = vpack.c.b16 %v3618, %v3617
  %v3637 = vpack.c.b16 %v3620, %v3619
  %v3638 = vpack.c.b16 %v3622, %v3621
  %3655 = vmatprep.subr.bf16.mxu0 0
  %3656 = vmatpush1.bf16.msra.mxu0 %v3630
  %3657 = vmatprep.subr.bf16.mxu0 0
  %3658 = vmatpush1.bf16.msra.mxu0 %v3629
  %3659 = vmatprep.subr.bf16.mxu0 0
  %3660 = vmatpush1.bf16.msra.mxu0 %v3628
  %3661 = vmatprep.subr.bf16.mxu0 0
  %3662 = vmatpush1.bf16.msra.mxu0 %v3627
  %3663 = vmatprep.subr.bf16.mxu0 0
  %3664 = vmatpush1.bf16.msra.mxu0 %v3626
  %3665 = vmatprep.subr.bf16.mxu0 0
  %3666 = vmatpush1.bf16.msra.mxu0 %v3625
  %3667 = vmatprep.subr.bf16.mxu0 0
  %3668 = vmatpush1.bf16.msra.mxu0 %v3624
  %3669 = vmatprep.subr.bf16.mxu0 0
  %3670 = vmatpush1.bf16.msra.mxu0 %v3623
  %3671 = vmatprep.subr.bf16.mxu0 0
  %3672 = vmatpush2.bf16.msra.mxu0 %v3638
  %3673 = vmatprep.subr.bf16.mxu0 0
  %3674 = vmatpush2.bf16.msra.mxu0 %v3637
  %3675 = vmatprep.subr.bf16.mxu0 0
  %3676 = vmatpush2.bf16.msra.mxu0 %v3636
  %3677 = vmatprep.subr.bf16.mxu0 0
  %3678 = vmatpush2.bf16.msra.mxu0 %v3635
  %3679 = vmatprep.subr.bf16.mxu0 0
  %3680 = vmatpush2.bf16.msra.mxu0 %v3634
  %3681 = vmatprep.subr.bf16.mxu0 0
  %3682 = vmatpush2.bf16.msra.mxu0 %v3633
  %3683 = vmatprep.subr.bf16.mxu0 0
  %3684 = vmatpush2.bf16.msra.mxu0 %v3632
  %3685 = vmatprep.subr.bf16.mxu0 0
  %3686 = vmatpush2.bf16.msra.mxu0 %v3631
  %3687 = vmatprep.mubr.bf16.mxu0 %v203
  %3688 = vmatmul.mubr.bf16.gmra.mxu0 %v3200
  %v3689 = vpop.f32.mrf.mxu0
  %v3690 = vadd.f32 %v3397, %v3689
  %v3691 = vpop.f32.mrf.mxu0
  %v3692 = vpop.f32.mrf.mxu0
  %v3693 = vadd.f32 %v3400, %v3692
  %v3694 = vpop.f32.mrf.mxu0
  %3695 = vmatprep.mubr.bf16.mxu0 %v204
  %3696 = vmatmul.mubr.bf16.gmra.mxu0 %v3201
  %v3697 = vpop.f32.mrf.mxu0
  %v3698 = vadd.f32 %v3438, %v3697
  %v3699 = vpop.f32.mrf.mxu0
  %v3700 = vpop.f32.mrf.mxu0
  %v3701 = vadd.f32 %v3441, %v3700
  %v3702 = vpop.f32.mrf.mxu0
  %3703 = vmatprep.mubr.bf16.mxu0 %v205
  %3704 = vmatmul.mubr.bf16.gmra.mxu0 %v3202
  %v3705 = vpop.f32.mrf.mxu0
  %v3706 = vadd.f32 %v3479, %v3705
  %v3707 = vpop.f32.mrf.mxu0
  %v3708 = vpop.f32.mrf.mxu0
  %v3709 = vadd.f32 %v3482, %v3708
  %v3710 = vpop.f32.mrf.mxu0
  %3711 = vmatprep.mubr.bf16.mxu0 %v206
  %3712 = vmatmul.mubr.bf16.gmra.mxu0 %v3203
  %v3713 = vpop.f32.mrf.mxu0
  %v3714 = vadd.f32 %v3520, %v3713
  %v3715 = vpop.f32.mrf.mxu0
  %v3716 = vpop.f32.mrf.mxu0
  %v3717 = vadd.f32 %v3523, %v3716
  %v3718 = vpop.f32.mrf.mxu0
  %3719 = vdwg.mxu0
  %v3720 = vadd.f32 %v3690, %v2055
  %v3721 = vadd.f32 %v3693, %v2058
  %v3722 = vadd.f32 %v3698, %v2063
  %v3723 = vadd.f32 %v3701, %v2066
  %v3724 = vadd.f32 %v3706, %v2071
  %v3725 = vadd.f32 %v3709, %v2074
  %v3726 = vadd.f32 %v3714, %v2079
  %v3727 = vadd.f32 %v3717, %v2082
  %vm3728 = vcmp.gt.f32.partialorder %v3720, 0.0
  %vm3729 = vcmp.gt.f32.partialorder %v3721, 0.0
  %vm3730 = vcmp.gt.f32.partialorder %v3722, 0.0
  %vm3731 = vcmp.gt.f32.partialorder %v3723, 0.0
  %vm3732 = vcmp.gt.f32.partialorder %v3724, 0.0
  %vm3733 = vcmp.gt.f32.partialorder %v3725, 0.0
  %vm3734 = vcmp.gt.f32.partialorder %v3726, 0.0
  %vm3735 = vcmp.gt.f32.partialorder %v3727, 0.0
  %v3736 = vmul.f32 %v3720, 0.01
  %v3737 = vmul.f32 %v3721, 0.01
  %v3738 = vmul.f32 %v3722, 0.01
  %v3739 = vmul.f32 %v3723, 0.01
  %v3740 = vmul.f32 %v3724, 0.01
  %v3741 = vmul.f32 %v3725, 0.01
  %v3742 = vmul.f32 %v3726, 0.01
  %v3743 = vmul.f32 %v3727, 0.01
  %v3744 = vsel %vm3728, %v3720, %v3736
  %v3745 = vsel %vm3729, %v3721, %v3737
  %v3746 = vsel %vm3730, %v3722, %v3738
  %v3747 = vsel %vm3731, %v3723, %v3739
  %v3748 = vsel %vm3732, %v3724, %v3740
  %v3749 = vsel %vm3733, %v3725, %v3741
  %v3750 = vsel %vm3734, %v3726, %v3742
  %v3751 = vsel %vm3735, %v3727, %v3743
  %v3752 = vpack.c.bf16 %v3745, %v3744
  %v3753 = vpack.c.bf16 %v3747, %v3746
  %v3754 = vpack.c.bf16 %v3749, %v3748
  %v3755 = vpack.c.bf16 %v3751, %v3750
  %s3756 = scalar_lea.vmem %s7, 192
  %v3757 = vld [vmem:[%s3756] sm:$0xf]
  %v3758 = vld [vmem:[%s3756 + $0x4] sm:$0xf]
  %v3759 = vld [vmem:[%s3756 + $0x8] sm:$0xf]
  %v3760 = vld [vmem:[%s3756 + $0xc] sm:$0xf]
  %v3761 = vld [vmem:[%s3756 + $0x10] sm:$0xf]
  %v3762 = vld [vmem:[%s3756 + $0x14] sm:$0xf]
  %v3763 = vld [vmem:[%s3756 + $0x18] sm:$0xf]
  %v3764 = vld [vmem:[%s3756 + $0x1c] sm:$0xf]
  %v3765 = vld [vmem:[%s3756 + $0x20] sm:$0xf]
  %v3766 = vld [vmem:[%s3756 + $0x24] sm:$0xf]
  %v3767 = vld [vmem:[%s3756 + $0x28] sm:$0xf]
  %v3768 = vld [vmem:[%s3756 + $0x2c] sm:$0xf]
  %v3769 = vld [vmem:[%s3756 + $0x30] sm:$0xf]
  %v3770 = vld [vmem:[%s3756 + $0x34] sm:$0xf]
  %v3771 = vld [vmem:[%s3756 + $0x38] sm:$0xf]
  %v3772 = vld [vmem:[%s3756 + $0x3c] sm:$0xf]
  %v3789 = vunpack.c.l.b16 %v3757
  %v3790 = vunpack.c.l.b16 %v3758
  %v3791 = vunpack.c.l.b16 %v3759
  %v3792 = vunpack.c.l.b16 %v3760
  %v3793 = vunpack.c.l.b16 %v3761
  %v3794 = vunpack.c.l.b16 %v3762
  %v3795 = vunpack.c.l.b16 %v3763
  %v3796 = vunpack.c.l.b16 %v3764
  %v3797 = vunpack.c.l.b16 %v3765
  %v3798 = vunpack.c.l.b16 %v3766
  %v3799 = vunpack.c.l.b16 %v3767
  %v3800 = vunpack.c.l.b16 %v3768
  %v3801 = vunpack.c.l.b16 %v3769
  %v3802 = vunpack.c.l.b16 %v3770
  %v3803 = vunpack.c.l.b16 %v3771
  %v3804 = vunpack.c.l.b16 %v3772
  %v3805 = vpack.c.b16 %v3790, %v3789
  %v3806 = vpack.c.b16 %v3792, %v3791
  %v3807 = vpack.c.b16 %v3794, %v3793
  %v3808 = vpack.c.b16 %v3796, %v3795
  %v3809 = vpack.c.b16 %v3798, %v3797
  %v3810 = vpack.c.b16 %v3800, %v3799
  %v3811 = vpack.c.b16 %v3802, %v3801
  %v3812 = vpack.c.b16 %v3804, %v3803
  %3821 = vmatprep.subr.bf16.mxu0 0
  %3822 = vmatpush1.bf16.msra.mxu0 %v3812
  %3823 = vmatprep.subr.bf16.mxu0 0
  %3824 = vmatpush1.bf16.msra.mxu0 %v3811
  %3825 = vmatprep.subr.bf16.mxu0 0
  %3826 = vmatpush1.bf16.msra.mxu0 %v3810
  %3827 = vmatprep.subr.bf16.mxu0 0
  %3828 = vmatpush1.bf16.msra.mxu0 %v3809
  %3829 = vmatprep.subr.bf16.mxu0 0
  %3830 = vmatpush1.bf16.msra.mxu0 %v3808
  %3831 = vmatprep.subr.bf16.mxu0 0
  %3832 = vmatpush1.bf16.msra.mxu0 %v3807
  %3833 = vmatprep.subr.bf16.mxu0 0
  %3834 = vmatpush1.bf16.msra.mxu0 %v3806
  %3835 = vmatprep.subr.bf16.mxu0 0
  %3836 = vmatpush1.bf16.msra.mxu0 %v3805
  %3837 = vmatprep.subr.bf16.mxu0 0
  %3838 = vmatpush2.bf16.msra.mxu0 0
  %3839 = vmatprep.subr.bf16.mxu0 0
  %3840 = vmatpush2.bf16.msra.mxu0 0
  %3841 = vmatprep.subr.bf16.mxu0 0
  %3842 = vmatpush2.bf16.msra.mxu0 0
  %3843 = vmatprep.subr.bf16.mxu0 0
  %3844 = vmatpush2.bf16.msra.mxu0 0
  %3845 = vmatprep.subr.bf16.mxu0 0
  %3846 = vmatpush2.bf16.msra.mxu0 0
  %3847 = vmatprep.subr.bf16.mxu0 0
  %3848 = vmatpush2.bf16.msra.mxu0 0
  %3849 = vmatprep.subr.bf16.mxu0 0
  %3850 = vmatpush2.bf16.msra.mxu0 0
  %3851 = vmatprep.subr.bf16.mxu0 0
  %3852 = vmatpush2.bf16.msra.mxu0 0
  %3853 = vmatprep.mubr.bf16.mxu0 0
  %3854 = vmatmul.mubr.bf16.gmra.mxu0 %v3752
  %v3855 = vpop.f32.mrf.mxu0
  %v3856 = vadd.f32 0.0, %v3855
  %v3857 = vpop.f32.mrf.mxu0
  %v3858 = vpop.f32.mrf.mxu0
  %v3859 = vadd.f32 0.0, %v3858
  %v3860 = vpop.f32.mrf.mxu0
  %3861 = vmatprep.mubr.bf16.mxu0 0
  %3862 = vmatmul.mubr.bf16.gmra.mxu0 %v3753
  %v3863 = vpop.f32.mrf.mxu0
  %v3864 = vadd.f32 0.0, %v3863
  %v3865 = vpop.f32.mrf.mxu0
  %v3866 = vpop.f32.mrf.mxu0
  %v3867 = vadd.f32 0.0, %v3866
  %v3868 = vpop.f32.mrf.mxu0
  %3869 = vmatprep.mubr.bf16.mxu0 0
  %3870 = vmatmul.mubr.bf16.gmra.mxu0 %v3754
  %v3871 = vpop.f32.mrf.mxu0
  %v3872 = vadd.f32 0.0, %v3871
  %v3873 = vpop.f32.mrf.mxu0
  %v3874 = vpop.f32.mrf.mxu0
  %v3875 = vadd.f32 0.0, %v3874
  %v3876 = vpop.f32.mrf.mxu0
  %3877 = vmatprep.mubr.bf16.mxu0 0
  %3878 = vmatmul.mubr.bf16.gmra.mxu0 %v3755
  %v3879 = vpop.f32.mrf.mxu0
  %v3880 = vadd.f32 0.0, %v3879
  %v3881 = vpop.f32.mrf.mxu0
  %v3882 = vpop.f32.mrf.mxu0
  %v3883 = vadd.f32 0.0, %v3882
  %v3884 = vpop.f32.mrf.mxu0
  %3885 = vdwg.mxu0
  %vm3886 = vcmp.gt.f32.partialorder %v3856, 0.0
  %vm3887 = vcmp.gt.f32.partialorder %v3859, 0.0
  %vm3888 = vcmp.gt.f32.partialorder %v3864, 0.0
  %vm3889 = vcmp.gt.f32.partialorder %v3867, 0.0
  %vm3890 = vcmp.gt.f32.partialorder %v3872, 0.0
  %vm3891 = vcmp.gt.f32.partialorder %v3875, 0.0
  %vm3892 = vcmp.gt.f32.partialorder %v3880, 0.0
  %vm3893 = vcmp.gt.f32.partialorder %v3883, 0.0
  %v3894 = vmul.f32 %v3856, 0.01
  %v3895 = vmul.f32 %v3859, 0.01
  %v3896 = vmul.f32 %v3864, 0.01
  %v3897 = vmul.f32 %v3867, 0.01
  %v3898 = vmul.f32 %v3872, 0.01
  %v3899 = vmul.f32 %v3875, 0.01
  %v3900 = vmul.f32 %v3880, 0.01
  %v3901 = vmul.f32 %v3883, 0.01
  %v3902 = vsel %vm3886, %v3856, %v3894
  %v3903 = vsel %vm3887, %v3859, %v3895
  %v3904 = vsel %vm3888, %v3864, %v3896
  %v3905 = vsel %vm3889, %v3867, %v3897
  %v3906 = vsel %vm3890, %v3872, %v3898
  %v3907 = vsel %vm3891, %v3875, %v3899
  %v3908 = vsel %vm3892, %v3880, %v3900
  %v3909 = vsel %vm3893, %v3883, %v3901
  %v3910 = vpack.c.bf16 %v3903, %v3902
  %v3911 = vpack.c.bf16 %v3905, %v3904
  %v3912 = vpack.c.bf16 %v3907, %v3906
  %v3913 = vpack.c.bf16 %v3909, %v3908
  %3914 = vmatprep.subr.bf16.mxu0 0
  %3915 = vmatpush1.bf16.msra.mxu0 0
  %3916 = vmatprep.subr.bf16.mxu0 0
  %3917 = vmatpush1.bf16.msra.mxu0 0
  %3918 = vmatprep.subr.bf16.mxu0 0
  %3919 = vmatpush1.bf16.msra.mxu0 0
  %3920 = vmatprep.subr.bf16.mxu0 0
  %3921 = vmatpush1.bf16.msra.mxu0 0
  %3922 = vmatprep.subr.bf16.mxu0 0
  %3923 = vmatpush1.bf16.msra.mxu0 0
  %3924 = vmatprep.subr.bf16.mxu0 0
  %3925 = vmatpush1.bf16.msra.mxu0 0
  %3926 = vmatprep.subr.bf16.mxu0 0
  %3927 = vmatpush1.bf16.msra.mxu0 0
  %3928 = vmatprep.subr.bf16.mxu0 0
  %3929 = vmatpush1.bf16.msra.mxu0 %v3910
  %3930 = vmatprep.subr.bf16.mxu0 0
  %3931 = vmatpush2.bf16.msra.mxu0 0
  %3932 = vmatprep.subr.bf16.mxu0 0
  %3933 = vmatpush2.bf16.msra.mxu0 0
  %3934 = vmatprep.subr.bf16.mxu0 0
  %3935 = vmatpush2.bf16.msra.mxu0 0
  %3936 = vmatprep.subr.bf16.mxu0 0
  %3937 = vmatpush2.bf16.msra.mxu0 0
  %3938 = vmatprep.subr.bf16.mxu0 0
  %3939 = vmatpush2.bf16.msra.mxu0 0
  %3940 = vmatprep.subr.bf16.mxu0 0
  %3941 = vmatpush2.bf16.msra.mxu0 0
  %3942 = vmatprep.subr.bf16.mxu0 0
  %3943 = vmatpush2.bf16.msra.mxu0 0
  %3944 = vmatprep.subr.bf16.mxu0 0
  %3945 = vmatpush2.bf16.msra.mxu0 0
  %3946 = vmatprep.mubr.bf16.mxu0 0
  %3947 = vmatmul.mubr.bf16.gmra.mxu0 %v2248
  %v3948 = vpop.f32.mrf.mxu0
  %v3949 = vadd.f32 0.0, %v3948
  %v3950 = vpop.f32.mrf.mxu0
  %v3951 = vpop.f32.mrf.mxu0
  %v3952 = vadd.f32 0.0, %v3951
  %v3953 = vpop.f32.mrf.mxu0
  %3954 = vdwg.mxu0
  %3955 = vmatprep.subr.bf16.mxu0 0
  %3956 = vmatpush1.bf16.msra.mxu0 0
  %3957 = vmatprep.subr.bf16.mxu0 0
  %3958 = vmatpush1.bf16.msra.mxu0 0
  %3959 = vmatprep.subr.bf16.mxu0 0
  %3960 = vmatpush1.bf16.msra.mxu0 0
  %3961 = vmatprep.subr.bf16.mxu0 0
  %3962 = vmatpush1.bf16.msra.mxu0 0
  %3963 = vmatprep.subr.bf16.mxu0 0
  %3964 = vmatpush1.bf16.msra.mxu0 0
  %3965 = vmatprep.subr.bf16.mxu0 0
  %3966 = vmatpush1.bf16.msra.mxu0 0
  %3967 = vmatprep.subr.bf16.mxu0 0
  %3968 = vmatpush1.bf16.msra.mxu0 0
  %3969 = vmatprep.subr.bf16.mxu0 0
  %3970 = vmatpush1.bf16.msra.mxu0 %v3911
  %3971 = vmatprep.subr.bf16.mxu0 0
  %3972 = vmatpush2.bf16.msra.mxu0 0
  %3973 = vmatprep.subr.bf16.mxu0 0
  %3974 = vmatpush2.bf16.msra.mxu0 0
  %3975 = vmatprep.subr.bf16.mxu0 0
  %3976 = vmatpush2.bf16.msra.mxu0 0
  %3977 = vmatprep.subr.bf16.mxu0 0
  %3978 = vmatpush2.bf16.msra.mxu0 0
  %3979 = vmatprep.subr.bf16.mxu0 0
  %3980 = vmatpush2.bf16.msra.mxu0 0
  %3981 = vmatprep.subr.bf16.mxu0 0
  %3982 = vmatpush2.bf16.msra.mxu0 0
  %3983 = vmatprep.subr.bf16.mxu0 0
  %3984 = vmatpush2.bf16.msra.mxu0 0
  %3985 = vmatprep.subr.bf16.mxu0 0
  %3986 = vmatpush2.bf16.msra.mxu0 0
  %3987 = vmatprep.mubr.bf16.mxu0 0
  %3988 = vmatmul.mubr.bf16.gmra.mxu0 %v2292
  %v3989 = vpop.f32.mrf.mxu0
  %v3990 = vadd.f32 0.0, %v3989
  %v3991 = vpop.f32.mrf.mxu0
  %v3992 = vpop.f32.mrf.mxu0
  %v3993 = vadd.f32 0.0, %v3992
  %v3994 = vpop.f32.mrf.mxu0
  %3995 = vdwg.mxu0
  %3996 = vmatprep.subr.bf16.mxu0 0
  %3997 = vmatpush1.bf16.msra.mxu0 0
  %3998 = vmatprep.subr.bf16.mxu0 0
  %3999 = vmatpush1.bf16.msra.mxu0 0
  %4000 = vmatprep.subr.bf16.mxu0 0
  %4001 = vmatpush1.bf16.msra.mxu0 0
  %4002 = vmatprep.subr.bf16.mxu0 0
  %4003 = vmatpush1.bf16.msra.mxu0 0
  %4004 = vmatprep.subr.bf16.mxu0 0
  %4005 = vmatpush1.bf16.msra.mxu0 0
  %4006 = vmatprep.subr.bf16.mxu0 0
  %4007 = vmatpush1.bf16.msra.mxu0 0
  %4008 = vmatprep.subr.bf16.mxu0 0
  %4009 = vmatpush1.bf16.msra.mxu0 0
  %4010 = vmatprep.subr.bf16.mxu0 0
  %4011 = vmatpush1.bf16.msra.mxu0 %v3912
  %4012 = vmatprep.subr.bf16.mxu0 0
  %4013 = vmatpush2.bf16.msra.mxu0 0
  %4014 = vmatprep.subr.bf16.mxu0 0
  %4015 = vmatpush2.bf16.msra.mxu0 0
  %4016 = vmatprep.subr.bf16.mxu0 0
  %4017 = vmatpush2.bf16.msra.mxu0 0
  %4018 = vmatprep.subr.bf16.mxu0 0
  %4019 = vmatpush2.bf16.msra.mxu0 0
  %4020 = vmatprep.subr.bf16.mxu0 0
  %4021 = vmatpush2.bf16.msra.mxu0 0
  %4022 = vmatprep.subr.bf16.mxu0 0
  %4023 = vmatpush2.bf16.msra.mxu0 0
  %4024 = vmatprep.subr.bf16.mxu0 0
  %4025 = vmatpush2.bf16.msra.mxu0 0
  %4026 = vmatprep.subr.bf16.mxu0 0
  %4027 = vmatpush2.bf16.msra.mxu0 0
  %4028 = vmatprep.mubr.bf16.mxu0 0
  %4029 = vmatmul.mubr.bf16.gmra.mxu0 %v2336
  %v4030 = vpop.f32.mrf.mxu0
  %v4031 = vadd.f32 0.0, %v4030
  %v4032 = vpop.f32.mrf.mxu0
  %v4033 = vpop.f32.mrf.mxu0
  %v4034 = vadd.f32 0.0, %v4033
  %v4035 = vpop.f32.mrf.mxu0
  %4036 = vdwg.mxu0
  %4037 = vmatprep.subr.bf16.mxu0 0
  %4038 = vmatpush1.bf16.msra.mxu0 0
  %4039 = vmatprep.subr.bf16.mxu0 0
  %4040 = vmatpush1.bf16.msra.mxu0 0
  %4041 = vmatprep.subr.bf16.mxu0 0
  %4042 = vmatpush1.bf16.msra.mxu0 0
  %4043 = vmatprep.subr.bf16.mxu0 0
  %4044 = vmatpush1.bf16.msra.mxu0 0
  %4045 = vmatprep.subr.bf16.mxu0 0
  %4046 = vmatpush1.bf16.msra.mxu0 0
  %4047 = vmatprep.subr.bf16.mxu0 0
  %4048 = vmatpush1.bf16.msra.mxu0 0
  %4049 = vmatprep.subr.bf16.mxu0 0
  %4050 = vmatpush1.bf16.msra.mxu0 0
  %4051 = vmatprep.subr.bf16.mxu0 0
  %4052 = vmatpush1.bf16.msra.mxu0 %v3913
  %4053 = vmatprep.subr.bf16.mxu0 0
  %4054 = vmatpush2.bf16.msra.mxu0 0
  %4055 = vmatprep.subr.bf16.mxu0 0
  %4056 = vmatpush2.bf16.msra.mxu0 0
  %4057 = vmatprep.subr.bf16.mxu0 0
  %4058 = vmatpush2.bf16.msra.mxu0 0
  %4059 = vmatprep.subr.bf16.mxu0 0
  %4060 = vmatpush2.bf16.msra.mxu0 0
  %4061 = vmatprep.subr.bf16.mxu0 0
  %4062 = vmatpush2.bf16.msra.mxu0 0
  %4063 = vmatprep.subr.bf16.mxu0 0
  %4064 = vmatpush2.bf16.msra.mxu0 0
  %4065 = vmatprep.subr.bf16.mxu0 0
  %4066 = vmatpush2.bf16.msra.mxu0 0
  %4067 = vmatprep.subr.bf16.mxu0 0
  %4068 = vmatpush2.bf16.msra.mxu0 0
  %4069 = vmatprep.mubr.bf16.mxu0 0
  %4070 = vmatmul.mubr.bf16.gmra.mxu0 %v2380
  %v4071 = vpop.f32.mrf.mxu0
  %v4072 = vadd.f32 0.0, %v4071
  %v4073 = vpop.f32.mrf.mxu0
  %v4074 = vpop.f32.mrf.mxu0
  %v4075 = vadd.f32 0.0, %v4074
  %v4076 = vpop.f32.mrf.mxu0
  %4077 = vdwg.mxu0
  %s4078 = scalar_lea.vmem %s8, 384
  %v4079 = vld [vmem:[%s4078] sm:$0xf]
  %v4080 = vld [vmem:[%s4078 + $0x4] sm:$0xf]
  %v4081 = vld [vmem:[%s4078 + $0x8] sm:$0xf]
  %v4082 = vld [vmem:[%s4078 + $0xc] sm:$0xf]
  %v4083 = vld [vmem:[%s4078 + $0x10] sm:$0xf]
  %v4084 = vld [vmem:[%s4078 + $0x14] sm:$0xf]
  %v4085 = vld [vmem:[%s4078 + $0x18] sm:$0xf]
  %v4086 = vld [vmem:[%s4078 + $0x1c] sm:$0xf]
  %v4087 = vld [vmem:[%s4078 + $0x20] sm:$0xf]
  %v4088 = vld [vmem:[%s4078 + $0x24] sm:$0xf]
  %v4089 = vld [vmem:[%s4078 + $0x28] sm:$0xf]
  %v4090 = vld [vmem:[%s4078 + $0x2c] sm:$0xf]
  %v4091 = vld [vmem:[%s4078 + $0x30] sm:$0xf]
  %v4092 = vld [vmem:[%s4078 + $0x34] sm:$0xf]
  %v4093 = vld [vmem:[%s4078 + $0x38] sm:$0xf]
  %v4094 = vld [vmem:[%s4078 + $0x3c] sm:$0xf]
  %v4095 = vld [vmem:[%s4078 + $0x40] sm:$0xf]
  %v4096 = vld [vmem:[%s4078 + $0x44] sm:$0xf]
  %v4097 = vld [vmem:[%s4078 + $0x48] sm:$0xf]
  %v4098 = vld [vmem:[%s4078 + $0x4c] sm:$0xf]
  %v4099 = vld [vmem:[%s4078 + $0x50] sm:$0xf]
  %v4100 = vld [vmem:[%s4078 + $0x54] sm:$0xf]
  %v4101 = vld [vmem:[%s4078 + $0x58] sm:$0xf]
  %v4102 = vld [vmem:[%s4078 + $0x5c] sm:$0xf]
  %v4103 = vld [vmem:[%s4078 + $0x60] sm:$0xf]
  %v4104 = vld [vmem:[%s4078 + $0x64] sm:$0xf]
  %v4105 = vld [vmem:[%s4078 + $0x68] sm:$0xf]
  %v4106 = vld [vmem:[%s4078 + $0x6c] sm:$0xf]
  %v4107 = vld [vmem:[%s4078 + $0x70] sm:$0xf]
  %v4108 = vld [vmem:[%s4078 + $0x74] sm:$0xf]
  %v4109 = vld [vmem:[%s4078 + $0x78] sm:$0xf]
  %v4110 = vld [vmem:[%s4078 + $0x7c] sm:$0xf]
  %v4143 = vunpack.c.l.b16 %v4079
  %v4144 = vunpack.c.l.b16 %v4080
  %v4145 = vunpack.c.l.b16 %v4081
  %v4146 = vunpack.c.l.b16 %v4082
  %v4147 = vunpack.c.l.b16 %v4083
  %v4148 = vunpack.c.l.b16 %v4084
  %v4149 = vunpack.c.l.b16 %v4085
  %v4150 = vunpack.c.l.b16 %v4086
  %v4151 = vunpack.c.l.b16 %v4087
  %v4152 = vunpack.c.l.b16 %v4088
  %v4153 = vunpack.c.l.b16 %v4089
  %v4154 = vunpack.c.l.b16 %v4090
  %v4155 = vunpack.c.l.b16 %v4091
  %v4156 = vunpack.c.l.b16 %v4092
  %v4157 = vunpack.c.l.b16 %v4093
  %v4158 = vunpack.c.l.b16 %v4094
  %v4159 = vunpack.c.l.b16 %v4095
  %v4160 = vunpack.c.l.b16 %v4096
  %v4161 = vunpack.c.l.b16 %v4097
  %v4162 = vunpack.c.l.b16 %v4098
  %v4163 = vunpack.c.l.b16 %v4099
  %v4164 = vunpack.c.l.b16 %v4100
  %v4165 = vunpack.c.l.b16 %v4101
  %v4166 = vunpack.c.l.b16 %v4102
  %v4167 = vunpack.c.l.b16 %v4103
  %v4168 = vunpack.c.l.b16 %v4104
  %v4169 = vunpack.c.l.b16 %v4105
  %v4170 = vunpack.c.l.b16 %v4106
  %v4171 = vunpack.c.l.b16 %v4107
  %v4172 = vunpack.c.l.b16 %v4108
  %v4173 = vunpack.c.l.b16 %v4109
  %v4174 = vunpack.c.l.b16 %v4110
  %v4175 = vpack.c.b16 %v4144, %v4143
  %v4176 = vpack.c.b16 %v4146, %v4145
  %v4177 = vpack.c.b16 %v4148, %v4147
  %v4178 = vpack.c.b16 %v4150, %v4149
  %v4179 = vpack.c.b16 %v4152, %v4151
  %v4180 = vpack.c.b16 %v4154, %v4153
  %v4181 = vpack.c.b16 %v4156, %v4155
  %v4182 = vpack.c.b16 %v4158, %v4157
  %v4183 = vpack.c.b16 %v4160, %v4159
  %v4184 = vpack.c.b16 %v4162, %v4161
  %v4185 = vpack.c.b16 %v4164, %v4163
  %v4186 = vpack.c.b16 %v4166, %v4165
  %v4187 = vpack.c.b16 %v4168, %v4167
  %v4188 = vpack.c.b16 %v4170, %v4169
  %v4189 = vpack.c.b16 %v4172, %v4171
  %v4190 = vpack.c.b16 %v4174, %v4173
  %4207 = vmatprep.subr.bf16.mxu0 0
  %4208 = vmatpush1.bf16.msra.mxu0 %v4182
  %4209 = vmatprep.subr.bf16.mxu0 0
  %4210 = vmatpush1.bf16.msra.mxu0 %v4181
  %4211 = vmatprep.subr.bf16.mxu0 0
  %4212 = vmatpush1.bf16.msra.mxu0 %v4180
  %4213 = vmatprep.subr.bf16.mxu0 0
  %4214 = vmatpush1.bf16.msra.mxu0 %v4179
  %4215 = vmatprep.subr.bf16.mxu0 0
  %4216 = vmatpush1.bf16.msra.mxu0 %v4178
  %4217 = vmatprep.subr.bf16.mxu0 0
  %4218 = vmatpush1.bf16.msra.mxu0 %v4177
  %4219 = vmatprep.subr.bf16.mxu0 0
  %4220 = vmatpush1.bf16.msra.mxu0 %v4176
  %4221 = vmatprep.subr.bf16.mxu0 0
  %4222 = vmatpush1.bf16.msra.mxu0 %v4175
  %4223 = vmatprep.subr.bf16.mxu0 0
  %4224 = vmatpush2.bf16.msra.mxu0 %v4190
  %4225 = vmatprep.subr.bf16.mxu0 0
  %4226 = vmatpush2.bf16.msra.mxu0 %v4189
  %4227 = vmatprep.subr.bf16.mxu0 0
  %4228 = vmatpush2.bf16.msra.mxu0 %v4188
  %4229 = vmatprep.subr.bf16.mxu0 0
  %4230 = vmatpush2.bf16.msra.mxu0 %v4187
  %4231 = vmatprep.subr.bf16.mxu0 0
  %4232 = vmatpush2.bf16.msra.mxu0 %v4186
  %4233 = vmatprep.subr.bf16.mxu0 0
  %4234 = vmatpush2.bf16.msra.mxu0 %v4185
  %4235 = vmatprep.subr.bf16.mxu0 0
  %4236 = vmatpush2.bf16.msra.mxu0 %v4184
  %4237 = vmatprep.subr.bf16.mxu0 0
  %4238 = vmatpush2.bf16.msra.mxu0 %v4183
  %4239 = vmatprep.mubr.bf16.mxu0 %v203
  %4240 = vmatmul.mubr.bf16.gmra.mxu0 %v3752
  %v4241 = vpop.f32.mrf.mxu0
  %v4242 = vadd.f32 %v3949, %v4241
  %v4243 = vpop.f32.mrf.mxu0
  %v4244 = vpop.f32.mrf.mxu0
  %v4245 = vadd.f32 %v3952, %v4244
  %v4246 = vpop.f32.mrf.mxu0
  %4247 = vmatprep.mubr.bf16.mxu0 %v204
  %4248 = vmatmul.mubr.bf16.gmra.mxu0 %v3753
  %v4249 = vpop.f32.mrf.mxu0
  %v4250 = vadd.f32 %v3990, %v4249
  %v4251 = vpop.f32.mrf.mxu0
  %v4252 = vpop.f32.mrf.mxu0
  %v4253 = vadd.f32 %v3993, %v4252
  %v4254 = vpop.f32.mrf.mxu0
  %4255 = vmatprep.mubr.bf16.mxu0 %v205
  %4256 = vmatmul.mubr.bf16.gmra.mxu0 %v3754
  %v4257 = vpop.f32.mrf.mxu0
  %v4258 = vadd.f32 %v4031, %v4257
  %v4259 = vpop.f32.mrf.mxu0
  %v4260 = vpop.f32.mrf.mxu0
  %v4261 = vadd.f32 %v4034, %v4260
  %v4262 = vpop.f32.mrf.mxu0
  %4263 = vmatprep.mubr.bf16.mxu0 %v206
  %4264 = vmatmul.mubr.bf16.gmra.mxu0 %v3755
  %v4265 = vpop.f32.mrf.mxu0
  %v4266 = vadd.f32 %v4072, %v4265
  %v4267 = vpop.f32.mrf.mxu0
  %v4268 = vpop.f32.mrf.mxu0
  %v4269 = vadd.f32 %v4075, %v4268
  %v4270 = vpop.f32.mrf.mxu0
  %4271 = vdwg.mxu0
  %v4272 = vadd.f32 %v4242, %v2055
  %v4273 = vadd.f32 %v4245, %v2058
  %v4274 = vadd.f32 %v4250, %v2063
  %v4275 = vadd.f32 %v4253, %v2066
  %v4276 = vadd.f32 %v4258, %v2071
  %v4277 = vadd.f32 %v4261, %v2074
  %v4278 = vadd.f32 %v4266, %v2079
  %v4279 = vadd.f32 %v4269, %v2082
  %vm4280 = vcmp.gt.f32.partialorder %v4272, 0.0
  %vm4281 = vcmp.gt.f32.partialorder %v4273, 0.0
  %vm4282 = vcmp.gt.f32.partialorder %v4274, 0.0
  %vm4283 = vcmp.gt.f32.partialorder %v4275, 0.0
  %vm4284 = vcmp.gt.f32.partialorder %v4276, 0.0
  %vm4285 = vcmp.gt.f32.partialorder %v4277, 0.0
  %vm4286 = vcmp.gt.f32.partialorder %v4278, 0.0
  %vm4287 = vcmp.gt.f32.partialorder %v4279, 0.0
  %v4288 = vmul.f32 %v4272, 0.01
  %v4289 = vmul.f32 %v4273, 0.01
  %v4290 = vmul.f32 %v4274, 0.01
  %v4291 = vmul.f32 %v4275, 0.01
  %v4292 = vmul.f32 %v4276, 0.01
  %v4293 = vmul.f32 %v4277, 0.01
  %v4294 = vmul.f32 %v4278, 0.01
  %v4295 = vmul.f32 %v4279, 0.01
  %v4296 = vsel %vm4280, %v4272, %v4288
  %v4297 = vsel %vm4281, %v4273, %v4289
  %v4298 = vsel %vm4282, %v4274, %v4290
  %v4299 = vsel %vm4283, %v4275, %v4291
  %v4300 = vsel %vm4284, %v4276, %v4292
  %v4301 = vsel %vm4285, %v4277, %v4293
  %v4302 = vsel %vm4286, %v4278, %v4294
  %v4303 = vsel %vm4287, %v4279, %v4295
  %4304 = vst [vmem:[%s9] sm:$0xff] %v4296
  %4305 = vst [vmem:[%s9 + $0x8] sm:$0xff] %v4297
  %4306 = vst [vmem:[%s9 + $0x10] sm:$0xff] %v4298
  %4307 = vst [vmem:[%s9 + $0x18] sm:$0xff] %v4299
  %4308 = vst [vmem:[%s9 + $0x20] sm:$0xff] %v4300
  %4309 = vst [vmem:[%s9 + $0x28] sm:$0xff] %v4301
  %4310 = vst [vmem:[%s9 + $0x30] sm:$0xff] %v4302
  %4311 = vst [vmem:[%s9 + $0x38] sm:$0xff] %v4303
  // Predicated region
  $region38: #{network_forward.2} parent=0 // pred_check
    _
  $region39: #{network_forward.2} parent=0 // pred_check_branch
    %4313 = sbr.rel (0) target = $region41
  $region40: #{network_forward.2} parent=0 // pred_region
    _
  $region41: #{network_forward.2} parent=0 // pred_fallthru
    _
  // Predicated region
  $region42: #{network_forward.2} parent=0 // pred_check
    _
  $region43: #{network_forward.2} parent=0 // pred_check_branch
    %4315 = sbr.rel (0) target = $region45
  $region44: #{network_forward.2} parent=0 // pred_region
    _
  $region45: #{network_forward.2} parent=0 // pred_fallthru
    _

</llo_original>
